<compile_context>
chip_gen: v7x
topology: tpu7x:2x2x1
jax: 0.10.0
libtpu: 0.0.40
codegen_flags: <defaults>
</compile_context>

<pallas_src>
import math

import jax
import jax.numpy as jnp
from jax.experimental import pallas as pl
from jax.experimental.pallas import tpu as pltpu

EPS = 1e-5          # nn.BatchNorm1d default
NEG_SLOPE = 0.01    # nn.LeakyReLU default negative_slope
PAD = 8             # sublane-aligned left pad inside the conv scratch buffers


def _leaky(v):
    return jnp.where(v >= 0, v, NEG_SLOPE * v)


def _make_kernel(N, L, Cin, Cout, has_proj):
    inv_cnt = 1.0 / float(N * L)

    def kernel(*refs):
        if has_proj:
            (x_ref, w1_ref, b1_ref, g1_ref, be1_ref,
             w2_ref, b2_ref, g2_ref, be2_ref, wr_ref, br_ref,
             o_ref, xp1_ref, xp2_ref) = refs
        else:
            (x_ref, w1_ref, b1_ref, g1_ref, be1_ref,
             w2_ref, b2_ref, g2_ref, be2_ref,
             o_ref, xp1_ref, xp2_ref) = refs

        def conv3(xp_ref, w_ref, b_ref):
            # k=3 / pad=1 conv as 3 accumulating bf16 MXU dots on shifted views.
            outs = []
            for n in range(N):
                acc = jnp.zeros((L, Cout), jnp.float32)
                for t in range(3):                       # taps at offsets 7 / 8 / 9
                    lhs = xp_ref[n, PAD - 1 + t:PAD - 1 + t + L, :].astype(jnp.bfloat16)
                    acc += jnp.dot(lhs, w_ref[t], preferred_element_type=jnp.float32)
                outs.append(acc + b_ref[...])
            return outs

        def bn_lrelu(hs, g_ref, be_ref):
            # training-mode BN over all N*L rows, single-pass stats (sum, sumsq).
            s = sum(jnp.sum(h, axis=0, keepdims=True) for h in hs)
            ss = sum(jnp.sum(h * h, axis=0, keepdims=True) for h in hs)
            mean = s * inv_cnt
            var = ss * inv_cnt - mean * mean              # biased variance
            scale = g_ref[...] * jax.lax.rsqrt(var + EPS)
            shift = be_ref[...] - mean * scale
            return [_leaky(h * scale + shift) for h in hs]

        # ---------------- conv1 -> BN1 -> LeakyReLU ----------------
        xp1_ref[...] = jnp.zeros_like(xp1_ref)
        xp1_ref[:, PAD:PAD + L, :] = x_ref[...]           # aligned sublane store
        a1 = bn_lrelu(conv3(xp1_ref, w1_ref, b1_ref), g1_ref, be1_ref)

        # ---------------- conv2 -> BN2 -> LeakyReLU ----------------
        xp2_ref[...] = jnp.zeros_like(xp2_ref)
        for n in range(N):
            xp2_ref[n, PAD:PAD + L, :] = a1[n]
        a2 = bn_lrelu(conv3(xp2_ref, w2_ref, b2_ref), g2_ref, be2_ref)

        # -------- 1x1 shortcut + residual add + final LeakyReLU --------
        for n in range(N):
            if has_proj:
                res = jnp.dot(x_ref[n].astype(jnp.bfloat16), wr_ref[...],
                              preferred_element_type=jnp.float32) + br_ref[...]
            else:
                res = x_ref[n]
            o_ref[n] = _leaky(a2[n] + res)

    return kernel


def residual_block_forward(x_ncl, params):
    """x_ncl: (N, Cin, L) float32 (PyTorch Conv1d layout). Returns (N, Cout, L)."""
    N, Cin, L = x_ncl.shape
    Cout = params['w1'].shape[-1]
    has_proj = 'wr' in params
    assert has_proj == (Cin != Cout)

    x = jnp.transpose(x_ncl, (0, 2, 1)).astype(jnp.float32)   # channels-last (N, L, Cin)

    args = [x,
            params['w1'].astype(jnp.bfloat16), params['b1'],
            params['g1'], params['be1'],
            params['w2'].astype(jnp.bfloat16), params['b2'],
            params['g2'], params['be2']]
    if has_proj:
        args += [params['wr'].astype(jnp.bfloat16), params['br']]

    y = pl.pallas_call(
        _make_kernel(N, L, Cin, Cout, has_proj),
        out_shape=jax.ShapeDtypeStruct((N, L, Cout), jnp.float32),
        scratch_shapes=[pltpu.VMEM((N, L + 2 * PAD, Cin), jnp.float32),
                        pltpu.VMEM((N, L + 2 * PAD, Cout), jnp.float32)],
    )(*args)
    return jnp.transpose(y, (0, 2, 1))


# ------------------------------ parameters ----------------------------------
# Conv weights are tap-major (k, Cin, Cout).
# NOTE: porting real PyTorch Conv1d weights (Cout, Cin, k) requires w.permute(2, 1, 0).
def init_params(key, cin, cout):
    ks = iter(jax.random.split(key, 16))

    def nrm(shape, scale):
        return scale * jax.random.normal(next(ks), shape, jnp.float32)

    p = {
        'w1': nrm((3, cin, cout), 1.0 / math.sqrt(3 * cin)),
        'b1': nrm((1, cout), 0.01),
        'g1': 1.0 + nrm((1, cout), 0.1),
        'be1': nrm((1, cout), 0.1),
        'w2': nrm((3, cout, cout), 1.0 / math.sqrt(3 * cout)),
        'b2': nrm((1, cout), 0.01),
        'g2': 1.0 + nrm((1, cout), 0.1),
        'be2': nrm((1, cout), 0.1),
    }
    if cin != cout:
        p['wr'] = nrm((cin, cout), 1.0 / math.sqrt(cin))
        p['br'] = nrm((1, cout), 0.01)
    return p


# ------------------------- pure-JAX f32 reference ---------------------------
def reference_forward(x_ncl, params):
    x = jnp.transpose(x_ncl, (0, 2, 1)).astype(jnp.float32)
    L = x.shape[1]

    def conv3(h, w, b):
        hp = jnp.pad(h, ((0, 0), (1, 1), (0, 0)))
        return sum(jnp.einsum('nlc,cd->nld', hp[:, t:t + L, :], w[t]) for t in range(3)) + b

    def bn_lrelu(h, g, be):
        m = jnp.mean(h, axis=(0, 1), keepdims=True)
        v = jnp.mean((h - m) ** 2, axis=(0, 1), keepdims=True)
        y = (h - m) * jax.lax.rsqrt(v + EPS) * g + be
        return jnp.where(y >= 0, y, NEG_SLOPE * y)

    h = bn_lrelu(conv3(x, params['w1'], params['b1']), params['g1'], params['be1'])
    h = bn_lrelu(conv3(h, params['w2'], params['b2']), params['g2'], params['be2'])
    if 'wr' in params:
        res = jnp.einsum('nlc,cd->nld', x, params['wr']) + params['br']
    else:
        res = x
    o = h + res
    o = jnp.where(o >= 0, o, NEG_SLOPE * o)
    return jnp.transpose(o, (0, 2, 1))


# ---------------------------------- main -------------------------------------
if __name__ == "__main__":
    N, CIN, COUT, L = 2, 64, 128, 128       # Cin != Cout -> exercises conv_res path
    key = jax.random.PRNGKey(0)
    pkey, xkey = jax.random.split(key)
    params = init_params(pkey, CIN, COUT)
    x = jax.random.normal(xkey, (N, CIN, L), jnp.float32)

    fwd = jax.jit(residual_block_forward)
    out = fwd(x, params)
    jax.block_until_ready(out)

    assert out.shape == (N, COUT, L), out.shape
    assert bool(jnp.all(jnp.isfinite(out)))

    # Loose tolerance: kernel uses bf16 MXU operands, reference is pure f32.
    ref = reference_forward(x, params)
    max_err = float(jnp.max(jnp.abs(out - ref)))
    mean_err = float(jnp.mean(jnp.abs(out - ref)))
    assert max_err < 0.3 and mean_err < 0.03, (max_err, mean_err)

    print("KERNEL_OK")
</pallas_src>

<mosaic_0001>
module attributes {stable_mosaic.version = 11 : i64} {
  func.func @kernel(%arg0: memref<2x128x64xf32, #tpu.memory_space<vmem>>, %arg1: memref<3x64x128xbf16, #tpu.memory_space<vmem>>, %arg2: memref<1x128xf32, #tpu.memory_space<vmem>>, %arg3: memref<1x128xf32, #tpu.memory_space<vmem>>, %arg4: memref<1x128xf32, #tpu.memory_space<vmem>>, %arg5: memref<3x128x128xbf16, #tpu.memory_space<vmem>>, %arg6: memref<1x128xf32, #tpu.memory_space<vmem>>, %arg7: memref<1x128xf32, #tpu.memory_space<vmem>>, %arg8: memref<1x128xf32, #tpu.memory_space<vmem>>, %arg9: memref<64x128xbf16, #tpu.memory_space<vmem>>, %arg10: memref<1x128xf32, #tpu.memory_space<vmem>>, %arg11: memref<2x128x128xf32, #tpu.memory_space<vmem>>, %arg12: memref<2x144x64xf32, #tpu.memory_space<vmem>>, %arg13: memref<2x144x128xf32, #tpu.memory_space<vmem>>) attributes {dimension_semantics = [], scalar_prefetch = 0 : i64, scratch_operands = 2 : i64, tpu.core_type = #tpu.core_type<tc>} {
    %cst = arith.constant 0.000000e+00 : f32
    %0 = vector.broadcast %cst : f32 to vector<2x144x64xf32>
    %c0 = arith.constant 0 : index
    %c0_0 = arith.constant 0 : index
    %c0_1 = arith.constant 0 : index
    %1 = vector.load %arg12[%c0, %c0_0, %c0_1] : memref<2x144x64xf32, #tpu.memory_space<vmem>>, vector<2x144x64xf32>
    tpu.vector_store %arg12[%c0, %c0_0, %c0_1], %0 {strides = array<i32>} : memref<2x144x64xf32, #tpu.memory_space<vmem>>, vector<2x144x64xf32>,
    %c0_2 = arith.constant 0 : index
    %c0_3 = arith.constant 0 : index
    %c0_4 = arith.constant 0 : index
    %2 = vector.load %arg0[%c0_2, %c0_3, %c0_4] : memref<2x128x64xf32, #tpu.memory_space<vmem>>, vector<2x128x64xf32>
    %c0_5 = arith.constant 0 : index
    %c8 = arith.constant 8 : index
    %c0_6 = arith.constant 0 : index
    %3 = vector.load %arg12[%c0_5, %c8, %c0_6] : memref<2x144x64xf32, #tpu.memory_space<vmem>>, vector<2x128x64xf32>
    tpu.vector_store %arg12[%c0_5, %c8, %c0_6], %2 {strides = array<i32>} : memref<2x144x64xf32, #tpu.memory_space<vmem>>, vector<2x128x64xf32>,
    %cst_7 = arith.constant 0.000000e+00 : f32
    %4 = vector.broadcast %cst_7 : f32 to vector<128x128xf32>
    %c0_8 = arith.constant 0 : index
    %c7 = arith.constant 7 : index
    %c0_9 = arith.constant 0 : index
    %5 = vector.load %arg12[%c0_8, %c7, %c0_9] : memref<2x144x64xf32, #tpu.memory_space<vmem>>, vector<1x128x64xf32>
    %6 = vector.shape_cast %5 : vector<1x128x64xf32> to vector<128x64xf32>
    %7 = arith.truncf %6 : vector<128x64xf32> to vector<128x64xbf16>
    %c0_10 = arith.constant 0 : index
    %c0_11 = arith.constant 0 : index
    %c0_12 = arith.constant 0 : index
    %8 = vector.load %arg1[%c0_10, %c0_11, %c0_12] : memref<3x64x128xbf16, #tpu.memory_space<vmem>>, vector<1x64x128xbf16>
    %9 = vector.shape_cast %8 : vector<1x64x128xbf16> to vector<64x128xbf16>
    %cst_13 = arith.constant dense<0.000000e+00> : vector<128x128xf32>
    %10 = tpu.matmul %7, %9, %cst_13 {dimension_numbers = #tpu.dot_dimension_numbers<[1], [0], [0], [1], [0, 0, 1, 1], [], []>} : vector<128x64xbf16>, vector<64x128xbf16>, vector<128x128xf32> -> vector<128x128xf32>
    %11 = arith.addf %4, %10 : vector<128x128xf32>
    %c0_14 = arith.constant 0 : index
    %c8_15 = arith.constant 8 : index
    %c0_16 = arith.constant 0 : index
    %12 = vector.load %arg12[%c0_14, %c8_15, %c0_16] : memref<2x144x64xf32, #tpu.memory_space<vmem>>, vector<1x128x64xf32>
    %13 = vector.shape_cast %12 : vector<1x128x64xf32> to vector<128x64xf32>
    %14 = arith.truncf %13 : vector<128x64xf32> to vector<128x64xbf16>
    %c1 = arith.constant 1 : index
    %c0_17 = arith.constant 0 : index
    %c0_18 = arith.constant 0 : index
    %15 = vector.load %arg1[%c1, %c0_17, %c0_18] : memref<3x64x128xbf16, #tpu.memory_space<vmem>>, vector<1x64x128xbf16>
    %16 = vector.shape_cast %15 : vector<1x64x128xbf16> to vector<64x128xbf16>
    %cst_19 = arith.constant dense<0.000000e+00> : vector<128x128xf32>
    %17 = tpu.matmul %14, %16, %cst_19 {dimension_numbers = #tpu.dot_dimension_numbers<[1], [0], [0], [1], [0, 0, 1, 1], [], []>} : vector<128x64xbf16>, vector<64x128xbf16>, vector<128x128xf32> -> vector<128x128xf32>
    %18 = arith.addf %11, %17 : vector<128x128xf32>
    %c0_20 = arith.constant 0 : index
    %c9 = arith.constant 9 : index
    %c0_21 = arith.constant 0 : index
    %19 = vector.load %arg12[%c0_20, %c9, %c0_21] : memref<2x144x64xf32, #tpu.memory_space<vmem>>, vector<1x128x64xf32>
    %20 = vector.shape_cast %19 : vector<1x128x64xf32> to vector<128x64xf32>
    %21 = arith.truncf %20 : vector<128x64xf32> to vector<128x64xbf16>
    %c2 = arith.constant 2 : index
    %c0_22 = arith.constant 0 : index
    %c0_23 = arith.constant 0 : index
    %22 = vector.load %arg1[%c2, %c0_22, %c0_23] : memref<3x64x128xbf16, #tpu.memory_space<vmem>>, vector<1x64x128xbf16>
    %23 = vector.shape_cast %22 : vector<1x64x128xbf16> to vector<64x128xbf16>
    %cst_24 = arith.constant dense<0.000000e+00> : vector<128x128xf32>
    %24 = tpu.matmul %21, %23, %cst_24 {dimension_numbers = #tpu.dot_dimension_numbers<[1], [0], [0], [1], [0, 0, 1, 1], [], []>} : vector<128x64xbf16>, vector<64x128xbf16>, vector<128x128xf32> -> vector<128x128xf32>
    %25 = arith.addf %18, %24 : vector<128x128xf32>
    %c0_25 = arith.constant 0 : index
    %c0_26 = arith.constant 0 : index
    %26 = vector.load %arg2[%c0_25, %c0_26] : memref<1x128xf32, #tpu.memory_space<vmem>>, vector<1x128xf32>
    %27 = vector.broadcast %26 : vector<1x128xf32> to vector<128x128xf32>
    %28 = arith.addf %25, %27 : vector<128x128xf32>
    %cst_27 = arith.constant 0.000000e+00 : f32
    %29 = vector.broadcast %cst_27 : f32 to vector<128x128xf32>
    %c1_28 = arith.constant 1 : index
    %c7_29 = arith.constant 7 : index
    %c0_30 = arith.constant 0 : index
    %30 = vector.load %arg12[%c1_28, %c7_29, %c0_30] : memref<2x144x64xf32, #tpu.memory_space<vmem>>, vector<1x128x64xf32>
    %31 = vector.shape_cast %30 : vector<1x128x64xf32> to vector<128x64xf32>
    %32 = arith.truncf %31 : vector<128x64xf32> to vector<128x64xbf16>
    %c0_31 = arith.constant 0 : index
    %c0_32 = arith.constant 0 : index
    %c0_33 = arith.constant 0 : index
    %33 = vector.load %arg1[%c0_31, %c0_32, %c0_33] : memref<3x64x128xbf16, #tpu.memory_space<vmem>>, vector<1x64x128xbf16>
    %34 = vector.shape_cast %33 : vector<1x64x128xbf16> to vector<64x128xbf16>
    %cst_34 = arith.constant dense<0.000000e+00> : vector<128x128xf32>
    %35 = tpu.matmul %32, %34, %cst_34 {dimension_numbers = #tpu.dot_dimension_numbers<[1], [0], [0], [1], [0, 0, 1, 1], [], []>} : vector<128x64xbf16>, vector<64x128xbf16>, vector<128x128xf32> -> vector<128x128xf32>
    %36 = arith.addf %29, %35 : vector<128x128xf32>
    %c1_35 = arith.constant 1 : index
    %c8_36 = arith.constant 8 : index
    %c0_37 = arith.constant 0 : index
    %37 = vector.load %arg12[%c1_35, %c8_36, %c0_37] : memref<2x144x64xf32, #tpu.memory_space<vmem>>, vector<1x128x64xf32>
    %38 = vector.shape_cast %37 : vector<1x128x64xf32> to vector<128x64xf32>
    %39 = arith.truncf %38 : vector<128x64xf32> to vector<128x64xbf16>
    %c1_38 = arith.constant 1 : index
    %c0_39 = arith.constant 0 : index
    %c0_40 = arith.constant 0 : index
    %40 = vector.load %arg1[%c1_38, %c0_39, %c0_40] : memref<3x64x128xbf16, #tpu.memory_space<vmem>>, vector<1x64x128xbf16>
    %41 = vector.shape_cast %40 : vector<1x64x128xbf16> to vector<64x128xbf16>
    %cst_41 = arith.constant dense<0.000000e+00> : vector<128x128xf32>
    %42 = tpu.matmul %39, %41, %cst_41 {dimension_numbers = #tpu.dot_dimension_numbers<[1], [0], [0], [1], [0, 0, 1, 1], [], []>} : vector<128x64xbf16>, vector<64x128xbf16>, vector<128x128xf32> -> vector<128x128xf32>
    %43 = arith.addf %36, %42 : vector<128x128xf32>
    %c1_42 = arith.constant 1 : index
    %c9_43 = arith.constant 9 : index
    %c0_44 = arith.constant 0 : index
    %44 = vector.load %arg12[%c1_42, %c9_43, %c0_44] : memref<2x144x64xf32, #tpu.memory_space<vmem>>, vector<1x128x64xf32>
    %45 = vector.shape_cast %44 : vector<1x128x64xf32> to vector<128x64xf32>
    %46 = arith.truncf %45 : vector<128x64xf32> to vector<128x64xbf16>
    %c2_45 = arith.constant 2 : index
    %c0_46 = arith.constant 0 : index
    %c0_47 = arith.constant 0 : index
    %47 = vector.load %arg1[%c2_45, %c0_46, %c0_47] : memref<3x64x128xbf16, #tpu.memory_space<vmem>>, vector<1x64x128xbf16>
    %48 = vector.shape_cast %47 : vector<1x64x128xbf16> to vector<64x128xbf16>
    %cst_48 = arith.constant dense<0.000000e+00> : vector<128x128xf32>
    %49 = tpu.matmul %46, %48, %cst_48 {dimension_numbers = #tpu.dot_dimension_numbers<[1], [0], [0], [1], [0, 0, 1, 1], [], []>} : vector<128x64xbf16>, vector<64x128xbf16>, vector<128x128xf32> -> vector<128x128xf32>
    %50 = arith.addf %43, %49 : vector<128x128xf32>
    %c0_49 = arith.constant 0 : index
    %c0_50 = arith.constant 0 : index
    %51 = vector.load %arg2[%c0_49, %c0_50] : memref<1x128xf32, #tpu.memory_space<vmem>>, vector<1x128xf32>
    %52 = vector.broadcast %51 : vector<1x128xf32> to vector<128x128xf32>
    %53 = arith.addf %50, %52 : vector<128x128xf32>
    %cst_51 = arith.constant dense<0.000000e+00> : vector<128xf32>
    %54 = vector.multi_reduction <add>, %28, %cst_51 [0] : vector<128x128xf32> to vector<128xf32>
    %55 = vector.shape_cast %54 : vector<128xf32> to vector<1x128xf32>
    %cst_52 = arith.constant 0.000000e+00 : f32
    %56 = vector.broadcast %cst_52 : f32 to vector<1x128xf32>
    %57 = arith.addf %56, %55 : vector<1x128xf32>
    %cst_53 = arith.constant dense<0.000000e+00> : vector<128xf32>
    %58 = vector.multi_reduction <add>, %53, %cst_53 [0] : vector<128x128xf32> to vector<128xf32>
    %59 = vector.shape_cast %58 : vector<128xf32> to vector<1x128xf32>
    %60 = arith.addf %57, %59 : vector<1x128xf32>
    %61 = arith.mulf %28, %28 : vector<128x128xf32>
    %cst_54 = arith.constant dense<0.000000e+00> : vector<128xf32>
    %62 = vector.multi_reduction <add>, %61, %cst_54 [0] : vector<128x128xf32> to vector<128xf32>
    %63 = vector.shape_cast %62 : vector<128xf32> to vector<1x128xf32>
    %cst_55 = arith.constant 0.000000e+00 : f32
    %64 = vector.broadcast %cst_55 : f32 to vector<1x128xf32>
    %65 = arith.addf %64, %63 : vector<1x128xf32>
    %66 = arith.mulf %53, %53 : vector<128x128xf32>
    %cst_56 = arith.constant dense<0.000000e+00> : vector<128xf32>
    %67 = vector.multi_reduction <add>, %66, %cst_56 [0] : vector<128x128xf32> to vector<128xf32>
    %68 = vector.shape_cast %67 : vector<128xf32> to vector<1x128xf32>
    %69 = arith.addf %65, %68 : vector<1x128xf32>
    %cst_57 = arith.constant 3.906250e-03 : f32
    %70 = vector.broadcast %cst_57 : f32 to vector<1x128xf32>
    %71 = arith.mulf %60, %70 : vector<1x128xf32>
    %cst_58 = arith.constant 3.906250e-03 : f32
    %72 = vector.broadcast %cst_58 : f32 to vector<1x128xf32>
    %73 = arith.mulf %69, %72 : vector<1x128xf32>
    %74 = arith.mulf %71, %71 : vector<1x128xf32>
    %75 = arith.subf %73, %74 : vector<1x128xf32>
    %c0_59 = arith.constant 0 : index
    %c0_60 = arith.constant 0 : index
    %76 = vector.load %arg3[%c0_59, %c0_60] : memref<1x128xf32, #tpu.memory_space<vmem>>, vector<1x128xf32>
    %cst_61 = arith.constant 9.99999974E-6 : f32
    %77 = vector.broadcast %cst_61 : f32 to vector<1x128xf32>
    %78 = arith.addf %75, %77 : vector<1x128xf32>
    %79 = math.rsqrt %78 : vector<1x128xf32>
    %80 = arith.mulf %76, %79 : vector<1x128xf32>
    %c0_62 = arith.constant 0 : index
    %c0_63 = arith.constant 0 : index
    %81 = vector.load %arg4[%c0_62, %c0_63] : memref<1x128xf32, #tpu.memory_space<vmem>>, vector<1x128xf32>
    %82 = arith.mulf %71, %80 : vector<1x128xf32>
    %83 = arith.subf %81, %82 : vector<1x128xf32>
    %84 = vector.broadcast %80 : vector<1x128xf32> to vector<128x128xf32>
    %85 = arith.mulf %28, %84 : vector<128x128xf32>
    %86 = vector.broadcast %83 : vector<1x128xf32> to vector<128x128xf32>
    %87 = arith.addf %85, %86 : vector<128x128xf32>
    %cst_64 = arith.constant 0.000000e+00 : f32
    %88 = vector.broadcast %cst_64 : f32 to vector<128x128xf32>
    %89 = arith.cmpf oge, %87, %88 : vector<128x128xf32>
    %cst_65 = arith.constant 0.00999999977 : f32
    %90 = vector.broadcast %cst_65 : f32 to vector<128x128xf32>
    %91 = arith.mulf %90, %87 : vector<128x128xf32>
    %92 = arith.select %89, %87, %91 : vector<128x128xi1>, vector<128x128xf32>
    %93 = vector.broadcast %80 : vector<1x128xf32> to vector<128x128xf32>
    %94 = arith.mulf %53, %93 : vector<128x128xf32>
    %95 = vector.broadcast %83 : vector<1x128xf32> to vector<128x128xf32>
    %96 = arith.addf %94, %95 : vector<128x128xf32>
    %cst_66 = arith.constant 0.000000e+00 : f32
    %97 = vector.broadcast %cst_66 : f32 to vector<128x128xf32>
    %98 = arith.cmpf oge, %96, %97 : vector<128x128xf32>
    %cst_67 = arith.constant 0.00999999977 : f32
    %99 = vector.broadcast %cst_67 : f32 to vector<128x128xf32>
    %100 = arith.mulf %99, %96 : vector<128x128xf32>
    %101 = arith.select %98, %96, %100 : vector<128x128xi1>, vector<128x128xf32>
    %cst_68 = arith.constant 0.000000e+00 : f32
    %102 = vector.broadcast %cst_68 : f32 to vector<2x144x128xf32>
    %c0_69 = arith.constant 0 : index
    %c0_70 = arith.constant 0 : index
    %c0_71 = arith.constant 0 : index
    %103 = vector.load %arg13[%c0_69, %c0_70, %c0_71] : memref<2x144x128xf32, #tpu.memory_space<vmem>>, vector<2x144x128xf32>
    tpu.vector_store %arg13[%c0_69, %c0_70, %c0_71], %102 {strides = array<i32>} : memref<2x144x128xf32, #tpu.memory_space<vmem>>, vector<2x144x128xf32>,
    %c0_72 = arith.constant 0 : index
    %c8_73 = arith.constant 8 : index
    %c0_74 = arith.constant 0 : index
    %104 = vector.load %arg13[%c0_72, %c8_73, %c0_74] : memref<2x144x128xf32, #tpu.memory_space<vmem>>, vector<1x128x128xf32>
    %105 = vector.shape_cast %104 : vector<1x128x128xf32> to vector<128x128xf32>
    %106 = vector.shape_cast %92 : vector<128x128xf32> to vector<1x128x128xf32>
    tpu.vector_store %arg13[%c0_72, %c8_73, %c0_74], %106 {strides = array<i32>} : memref<2x144x128xf32, #tpu.memory_space<vmem>>, vector<1x128x128xf32>,
    %c1_75 = arith.constant 1 : index
    %c8_76 = arith.constant 8 : index
    %c0_77 = arith.constant 0 : index
    %107 = vector.load %arg13[%c1_75, %c8_76, %c0_77] : memref<2x144x128xf32, #tpu.memory_space<vmem>>, vector<1x128x128xf32>
    %108 = vector.shape_cast %107 : vector<1x128x128xf32> to vector<128x128xf32>
    %109 = vector.shape_cast %101 : vector<128x128xf32> to vector<1x128x128xf32>
    tpu.vector_store %arg13[%c1_75, %c8_76, %c0_77], %109 {strides = array<i32>} : memref<2x144x128xf32, #tpu.memory_space<vmem>>, vector<1x128x128xf32>,
    %cst_78 = arith.constant 0.000000e+00 : f32
    %110 = vector.broadcast %cst_78 : f32 to vector<128x128xf32>
    %c0_79 = arith.constant 0 : index
    %c7_80 = arith.constant 7 : index
    %c0_81 = arith.constant 0 : index
    %111 = vector.load %arg13[%c0_79, %c7_80, %c0_81] : memref<2x144x128xf32, #tpu.memory_space<vmem>>, vector<1x128x128xf32>
    %112 = vector.shape_cast %111 : vector<1x128x128xf32> to vector<128x128xf32>
    %113 = arith.truncf %112 : vector<128x128xf32> to vector<128x128xbf16>
    %c0_82 = arith.constant 0 : index
    %c0_83 = arith.constant 0 : index
    %c0_84 = arith.constant 0 : index
    %114 = vector.load %arg5[%c0_82, %c0_83, %c0_84] : memref<3x128x128xbf16, #tpu.memory_space<vmem>>, vector<1x128x128xbf16>
    %115 = vector.shape_cast %114 : vector<1x128x128xbf16> to vector<128x128xbf16>
    %cst_85 = arith.constant dense<0.000000e+00> : vector<128x128xf32>
    %116 = tpu.matmul %113, %115, %cst_85 {dimension_numbers = #tpu.dot_dimension_numbers<[1], [0], [0], [1], [0, 0, 1, 1], [], []>} : vector<128x128xbf16>, vector<128x128xbf16>, vector<128x128xf32> -> vector<128x128xf32>
    %117 = arith.addf %110, %116 : vector<128x128xf32>
    %c0_86 = arith.constant 0 : index
    %c8_87 = arith.constant 8 : index
    %c0_88 = arith.constant 0 : index
    %118 = vector.load %arg13[%c0_86, %c8_87, %c0_88] : memref<2x144x128xf32, #tpu.memory_space<vmem>>, vector<1x128x128xf32>
    %119 = vector.shape_cast %118 : vector<1x128x128xf32> to vector<128x128xf32>
    %120 = arith.truncf %119 : vector<128x128xf32> to vector<128x128xbf16>
    %c1_89 = arith.constant 1 : index
    %c0_90 = arith.constant 0 : index
    %c0_91 = arith.constant 0 : index
    %121 = vector.load %arg5[%c1_89, %c0_90, %c0_91] : memref<3x128x128xbf16, #tpu.memory_space<vmem>>, vector<1x128x128xbf16>
    %122 = vector.shape_cast %121 : vector<1x128x128xbf16> to vector<128x128xbf16>
    %cst_92 = arith.constant dense<0.000000e+00> : vector<128x128xf32>
    %123 = tpu.matmul %120, %122, %cst_92 {dimension_numbers = #tpu.dot_dimension_numbers<[1], [0], [0], [1], [0, 0, 1, 1], [], []>} : vector<128x128xbf16>, vector<128x128xbf16>, vector<128x128xf32> -> vector<128x128xf32>
    %124 = arith.addf %117, %123 : vector<128x128xf32>
    %c0_93 = arith.constant 0 : index
    %c9_94 = arith.constant 9 : index
    %c0_95 = arith.constant 0 : index
    %125 = vector.load %arg13[%c0_93, %c9_94, %c0_95] : memref<2x144x128xf32, #tpu.memory_space<vmem>>, vector<1x128x128xf32>
    %126 = vector.shape_cast %125 : vector<1x128x128xf32> to vector<128x128xf32>
    %127 = arith.truncf %126 : vector<128x128xf32> to vector<128x128xbf16>
    %c2_96 = arith.constant 2 : index
    %c0_97 = arith.constant 0 : index
    %c0_98 = arith.constant 0 : index
    %128 = vector.load %arg5[%c2_96, %c0_97, %c0_98] : memref<3x128x128xbf16, #tpu.memory_space<vmem>>, vector<1x128x128xbf16>
    %129 = vector.shape_cast %128 : vector<1x128x128xbf16> to vector<128x128xbf16>
    %cst_99 = arith.constant dense<0.000000e+00> : vector<128x128xf32>
    %130 = tpu.matmul %127, %129, %cst_99 {dimension_numbers = #tpu.dot_dimension_numbers<[1], [0], [0], [1], [0, 0, 1, 1], [], []>} : vector<128x128xbf16>, vector<128x128xbf16>, vector<128x128xf32> -> vector<128x128xf32>
    %131 = arith.addf %124, %130 : vector<128x128xf32>
    %c0_100 = arith.constant 0 : index
    %c0_101 = arith.constant 0 : index
    %132 = vector.load %arg6[%c0_100, %c0_101] : memref<1x128xf32, #tpu.memory_space<vmem>>, vector<1x128xf32>
    %133 = vector.broadcast %132 : vector<1x128xf32> to vector<128x128xf32>
    %134 = arith.addf %131, %133 : vector<128x128xf32>
    %cst_102 = arith.constant 0.000000e+00 : f32
    %135 = vector.broadcast %cst_102 : f32 to vector<128x128xf32>
    %c1_103 = arith.constant 1 : index
    %c7_104 = arith.constant 7 : index
    %c0_105 = arith.constant 0 : index
    %136 = vector.load %arg13[%c1_103, %c7_104, %c0_105] : memref<2x144x128xf32, #tpu.memory_space<vmem>>, vector<1x128x128xf32>
    %137 = vector.shape_cast %136 : vector<1x128x128xf32> to vector<128x128xf32>
    %138 = arith.truncf %137 : vector<128x128xf32> to vector<128x128xbf16>
    %c0_106 = arith.constant 0 : index
    %c0_107 = arith.constant 0 : index
    %c0_108 = arith.constant 0 : index
    %139 = vector.load %arg5[%c0_106, %c0_107, %c0_108] : memref<3x128x128xbf16, #tpu.memory_space<vmem>>, vector<1x128x128xbf16>
    %140 = vector.shape_cast %139 : vector<1x128x128xbf16> to vector<128x128xbf16>
    %cst_109 = arith.constant dense<0.000000e+00> : vector<128x128xf32>
    %141 = tpu.matmul %138, %140, %cst_109 {dimension_numbers = #tpu.dot_dimension_numbers<[1], [0], [0], [1], [0, 0, 1, 1], [], []>} : vector<128x128xbf16>, vector<128x128xbf16>, vector<128x128xf32> -> vector<128x128xf32>
    %142 = arith.addf %135, %141 : vector<128x128xf32>
    %c1_110 = arith.constant 1 : index
    %c8_111 = arith.constant 8 : index
    %c0_112 = arith.constant 0 : index
    %143 = vector.load %arg13[%c1_110, %c8_111, %c0_112] : memref<2x144x128xf32, #tpu.memory_space<vmem>>, vector<1x128x128xf32>
    %144 = vector.shape_cast %143 : vector<1x128x128xf32> to vector<128x128xf32>
    %145 = arith.truncf %144 : vector<128x128xf32> to vector<128x128xbf16>
    %c1_113 = arith.constant 1 : index
    %c0_114 = arith.constant 0 : index
    %c0_115 = arith.constant 0 : index
    %146 = vector.load %arg5[%c1_113, %c0_114, %c0_115] : memref<3x128x128xbf16, #tpu.memory_space<vmem>>, vector<1x128x128xbf16>
    %147 = vector.shape_cast %146 : vector<1x128x128xbf16> to vector<128x128xbf16>
    %cst_116 = arith.constant dense<0.000000e+00> : vector<128x128xf32>
    %148 = tpu.matmul %145, %147, %cst_116 {dimension_numbers = #tpu.dot_dimension_numbers<[1], [0], [0], [1], [0, 0, 1, 1], [], []>} : vector<128x128xbf16>, vector<128x128xbf16>, vector<128x128xf32> -> vector<128x128xf32>
    %149 = arith.addf %142, %148 : vector<128x128xf32>
    %c1_117 = arith.constant 1 : index
    %c9_118 = arith.constant 9 : index
    %c0_119 = arith.constant 0 : index
    %150 = vector.load %arg13[%c1_117, %c9_118, %c0_119] : memref<2x144x128xf32, #tpu.memory_space<vmem>>, vector<1x128x128xf32>
    %151 = vector.shape_cast %150 : vector<1x128x128xf32> to vector<128x128xf32>
    %152 = arith.truncf %151 : vector<128x128xf32> to vector<128x128xbf16>
    %c2_120 = arith.constant 2 : index
    %c0_121 = arith.constant 0 : index
    %c0_122 = arith.constant 0 : index
    %153 = vector.load %arg5[%c2_120, %c0_121, %c0_122] : memref<3x128x128xbf16, #tpu.memory_space<vmem>>, vector<1x128x128xbf16>
    %154 = vector.shape_cast %153 : vector<1x128x128xbf16> to vector<128x128xbf16>
    %cst_123 = arith.constant dense<0.000000e+00> : vector<128x128xf32>
    %155 = tpu.matmul %152, %154, %cst_123 {dimension_numbers = #tpu.dot_dimension_numbers<[1], [0], [0], [1], [0, 0, 1, 1], [], []>} : vector<128x128xbf16>, vector<128x128xbf16>, vector<128x128xf32> -> vector<128x128xf32>
    %156 = arith.addf %149, %155 : vector<128x128xf32>
    %c0_124 = arith.constant 0 : index
    %c0_125 = arith.constant 0 : index
    %157 = vector.load %arg6[%c0_124, %c0_125] : memref<1x128xf32, #tpu.memory_space<vmem>>, vector<1x128xf32>
    %158 = vector.broadcast %157 : vector<1x128xf32> to vector<128x128xf32>
    %159 = arith.addf %156, %158 : vector<128x128xf32>
    %cst_126 = arith.constant dense<0.000000e+00> : vector<128xf32>
    %160 = vector.multi_reduction <add>, %134, %cst_126 [0] : vector<128x128xf32> to vector<128xf32>
    %161 = vector.shape_cast %160 : vector<128xf32> to vector<1x128xf32>
    %cst_127 = arith.constant 0.000000e+00 : f32
    %162 = vector.broadcast %cst_127 : f32 to vector<1x128xf32>
    %163 = arith.addf %162, %161 : vector<1x128xf32>
    %cst_128 = arith.constant dense<0.000000e+00> : vector<128xf32>
    %164 = vector.multi_reduction <add>, %159, %cst_128 [0] : vector<128x128xf32> to vector<128xf32>
    %165 = vector.shape_cast %164 : vector<128xf32> to vector<1x128xf32>
    %166 = arith.addf %163, %165 : vector<1x128xf32>
    %167 = arith.mulf %134, %134 : vector<128x128xf32>
    %cst_129 = arith.constant dense<0.000000e+00> : vector<128xf32>
    %168 = vector.multi_reduction <add>, %167, %cst_129 [0] : vector<128x128xf32> to vector<128xf32>
    %169 = vector.shape_cast %168 : vector<128xf32> to vector<1x128xf32>
    %cst_130 = arith.constant 0.000000e+00 : f32
    %170 = vector.broadcast %cst_130 : f32 to vector<1x128xf32>
    %171 = arith.addf %170, %169 : vector<1x128xf32>
    %172 = arith.mulf %159, %159 : vector<128x128xf32>
    %cst_131 = arith.constant dense<0.000000e+00> : vector<128xf32>
    %173 = vector.multi_reduction <add>, %172, %cst_131 [0] : vector<128x128xf32> to vector<128xf32>
    %174 = vector.shape_cast %173 : vector<128xf32> to vector<1x128xf32>
    %175 = arith.addf %171, %174 : vector<1x128xf32>
    %cst_132 = arith.constant 3.906250e-03 : f32
    %176 = vector.broadcast %cst_132 : f32 to vector<1x128xf32>
    %177 = arith.mulf %166, %176 : vector<1x128xf32>
    %cst_133 = arith.constant 3.906250e-03 : f32
    %178 = vector.broadcast %cst_133 : f32 to vector<1x128xf32>
    %179 = arith.mulf %175, %178 : vector<1x128xf32>
    %180 = arith.mulf %177, %177 : vector<1x128xf32>
    %181 = arith.subf %179, %180 : vector<1x128xf32>
    %c0_134 = arith.constant 0 : index
    %c0_135 = arith.constant 0 : index
    %182 = vector.load %arg7[%c0_134, %c0_135] : memref<1x128xf32, #tpu.memory_space<vmem>>, vector<1x128xf32>
    %cst_136 = arith.constant 9.99999974E-6 : f32
    %183 = vector.broadcast %cst_136 : f32 to vector<1x128xf32>
    %184 = arith.addf %181, %183 : vector<1x128xf32>
    %185 = math.rsqrt %184 : vector<1x128xf32>
    %186 = arith.mulf %182, %185 : vector<1x128xf32>
    %c0_137 = arith.constant 0 : index
    %c0_138 = arith.constant 0 : index
    %187 = vector.load %arg8[%c0_137, %c0_138] : memref<1x128xf32, #tpu.memory_space<vmem>>, vector<1x128xf32>
    %188 = arith.mulf %177, %186 : vector<1x128xf32>
    %189 = arith.subf %187, %188 : vector<1x128xf32>
    %190 = vector.broadcast %186 : vector<1x128xf32> to vector<128x128xf32>
    %191 = arith.mulf %134, %190 : vector<128x128xf32>
    %192 = vector.broadcast %189 : vector<1x128xf32> to vector<128x128xf32>
    %193 = arith.addf %191, %192 : vector<128x128xf32>
    %cst_139 = arith.constant 0.000000e+00 : f32
    %194 = vector.broadcast %cst_139 : f32 to vector<128x128xf32>
    %195 = arith.cmpf oge, %193, %194 : vector<128x128xf32>
    %cst_140 = arith.constant 0.00999999977 : f32
    %196 = vector.broadcast %cst_140 : f32 to vector<128x128xf32>
    %197 = arith.mulf %196, %193 : vector<128x128xf32>
    %198 = arith.select %195, %193, %197 : vector<128x128xi1>, vector<128x128xf32>
    %199 = vector.broadcast %186 : vector<1x128xf32> to vector<128x128xf32>
    %200 = arith.mulf %159, %199 : vector<128x128xf32>
    %201 = vector.broadcast %189 : vector<1x128xf32> to vector<128x128xf32>
    %202 = arith.addf %200, %201 : vector<128x128xf32>
    %cst_141 = arith.constant 0.000000e+00 : f32
    %203 = vector.broadcast %cst_141 : f32 to vector<128x128xf32>
    %204 = arith.cmpf oge, %202, %203 : vector<128x128xf32>
    %cst_142 = arith.constant 0.00999999977 : f32
    %205 = vector.broadcast %cst_142 : f32 to vector<128x128xf32>
    %206 = arith.mulf %205, %202 : vector<128x128xf32>
    %207 = arith.select %204, %202, %206 : vector<128x128xi1>, vector<128x128xf32>
    %c0_143 = arith.constant 0 : index
    %c0_144 = arith.constant 0 : index
    %c0_145 = arith.constant 0 : index
    %208 = vector.load %arg0[%c0_143, %c0_144, %c0_145] : memref<2x128x64xf32, #tpu.memory_space<vmem>>, vector<1x128x64xf32>
    %209 = vector.shape_cast %208 : vector<1x128x64xf32> to vector<128x64xf32>
    %210 = arith.truncf %209 : vector<128x64xf32> to vector<128x64xbf16>
    %c0_146 = arith.constant 0 : index
    %c0_147 = arith.constant 0 : index
    %211 = vector.load %arg9[%c0_146, %c0_147] : memref<64x128xbf16, #tpu.memory_space<vmem>>, vector<64x128xbf16>
    %cst_148 = arith.constant dense<0.000000e+00> : vector<128x128xf32>
    %212 = tpu.matmul %210, %211, %cst_148 {dimension_numbers = #tpu.dot_dimension_numbers<[1], [0], [0], [1], [0, 0, 1, 1], [], []>} : vector<128x64xbf16>, vector<64x128xbf16>, vector<128x128xf32> -> vector<128x128xf32>
    %c0_149 = arith.constant 0 : index
    %c0_150 = arith.constant 0 : index
    %213 = vector.load %arg10[%c0_149, %c0_150] : memref<1x128xf32, #tpu.memory_space<vmem>>, vector<1x128xf32>
    %214 = vector.broadcast %213 : vector<1x128xf32> to vector<128x128xf32>
    %215 = arith.addf %212, %214 : vector<128x128xf32>
    %216 = arith.addf %198, %215 : vector<128x128xf32>
    %cst_151 = arith.constant 0.000000e+00 : f32
    %217 = vector.broadcast %cst_151 : f32 to vector<128x128xf32>
    %218 = arith.cmpf oge, %216, %217 : vector<128x128xf32>
    %cst_152 = arith.constant 0.00999999977 : f32
    %219 = vector.broadcast %cst_152 : f32 to vector<128x128xf32>
    %220 = arith.mulf %219, %216 : vector<128x128xf32>
    %221 = arith.select %218, %216, %220 : vector<128x128xi1>, vector<128x128xf32>
    %c0_153 = arith.constant 0 : index
    %c0_154 = arith.constant 0 : index
    %c0_155 = arith.constant 0 : index
    %222 = vector.load %arg11[%c0_153, %c0_154, %c0_155] : memref<2x128x128xf32, #tpu.memory_space<vmem>>, vector<1x128x128xf32>
    %223 = vector.shape_cast %222 : vector<1x128x128xf32> to vector<128x128xf32>
    %224 = vector.shape_cast %221 : vector<128x128xf32> to vector<1x128x128xf32>
    tpu.vector_store %arg11[%c0_153, %c0_154, %c0_155], %224 {strides = array<i32>} : memref<2x128x128xf32, #tpu.memory_space<vmem>>, vector<1x128x128xf32>,
    %c1_156 = arith.constant 1 : index
    %c0_157 = arith.constant 0 : index
    %c0_158 = arith.constant 0 : index
    %225 = vector.load %arg0[%c1_156, %c0_157, %c0_158] : memref<2x128x64xf32, #tpu.memory_space<vmem>>, vector<1x128x64xf32>
    %226 = vector.shape_cast %225 : vector<1x128x64xf32> to vector<128x64xf32>
    %227 = arith.truncf %226 : vector<128x64xf32> to vector<128x64xbf16>
    %c0_159 = arith.constant 0 : index
    %c0_160 = arith.constant 0 : index
    %228 = vector.load %arg9[%c0_159, %c0_160] : memref<64x128xbf16, #tpu.memory_space<vmem>>, vector<64x128xbf16>
    %cst_161 = arith.constant dense<0.000000e+00> : vector<128x128xf32>
    %229 = tpu.matmul %227, %228, %cst_161 {dimension_numbers = #tpu.dot_dimension_numbers<[1], [0], [0], [1], [0, 0, 1, 1], [], []>} : vector<128x64xbf16>, vector<64x128xbf16>, vector<128x128xf32> -> vector<128x128xf32>
    %c0_162 = arith.constant 0 : index
    %c0_163 = arith.constant 0 : index
    %230 = vector.load %arg10[%c0_162, %c0_163] : memref<1x128xf32, #tpu.memory_space<vmem>>, vector<1x128xf32>
    %231 = vector.broadcast %230 : vector<1x128xf32> to vector<128x128xf32>
    %232 = arith.addf %229, %231 : vector<128x128xf32>
    %233 = arith.addf %207, %232 : vector<128x128xf32>
    %cst_164 = arith.constant 0.000000e+00 : f32
    %234 = vector.broadcast %cst_164 : f32 to vector<128x128xf32>
    %235 = arith.cmpf oge, %233, %234 : vector<128x128xf32>
    %cst_165 = arith.constant 0.00999999977 : f32
    %236 = vector.broadcast %cst_165 : f32 to vector<128x128xf32>
    %237 = arith.mulf %236, %233 : vector<128x128xf32>
    %238 = arith.select %235, %233, %237 : vector<128x128xi1>, vector<128x128xf32>
    %c1_166 = arith.constant 1 : index
    %c0_167 = arith.constant 0 : index
    %c0_168 = arith.constant 0 : index
    %239 = vector.load %arg11[%c1_166, %c0_167, %c0_168] : memref<2x128x128xf32, #tpu.memory_space<vmem>>, vector<1x128x128xf32>
    %240 = vector.shape_cast %239 : vector<1x128x128xf32> to vector<128x128xf32>
    %241 = vector.shape_cast %238 : vector<128x128xf32> to vector<1x128x128xf32>
    tpu.vector_store %arg11[%c1_166, %c0_167, %c0_168], %241 {strides = array<i32>} : memref<2x128x128xf32, #tpu.memory_space<vmem>>, vector<1x128x128xf32>,
    return
  }
}

</mosaic_0001>

<llo_original>
// kernel: residual_block_forward.1
$region0: #{residual_block_forward.1}
  #allocation0 [shape = 'u32[]', space=smem, size = 0x4, offset = 0x4, fixed_abs, tag = 'smem constant byte address 0x4 - core index']
  #allocation1 [shape = 'u32[144,128]{1,0:T(1,128)}', space=vmem, size = 0x12000, scoped, tag = 'internal scratch']
  #allocation2 [shape = 'f32[2,144,64]{2,1,0:T(8,128)}', space=vmem, size = 0x24000, scoped, tag = 'scratch operand']
  #allocation3 [shape = 'f32[2,144,128]{2,1,0:T(8,128)}', space=vmem, size = 0x24000, scoped, tag = 'scratch operand']
  %s0 = inlined_call_operand.vmem [shape: f32[2,128,64], index: 0, kind: input, shape index: {}]
  %s1 = inlined_call_operand.vmem [shape: bf16[3,64,128], index: 1, kind: input, shape index: {}]
  %s2 = inlined_call_operand.vmem [shape: f32[1,128], index: 2, kind: input, shape index: {}]
  %s3 = inlined_call_operand.vmem [shape: f32[1,128], index: 3, kind: input, shape index: {}]
  %s4 = inlined_call_operand.vmem [shape: f32[1,128], index: 4, kind: input, shape index: {}]
  %s5 = inlined_call_operand.vmem [shape: bf16[3,128,128], index: 5, kind: input, shape index: {}]
  %s6 = inlined_call_operand.vmem [shape: f32[1,128], index: 6, kind: input, shape index: {}]
  %s7 = inlined_call_operand.vmem [shape: f32[1,128], index: 7, kind: input, shape index: {}]
  %s8 = inlined_call_operand.vmem [shape: f32[1,128], index: 8, kind: input, shape index: {}]
  %s9 = inlined_call_operand.vmem [shape: bf16[64,128], index: 9, kind: input, shape index: {}]
  %s10 = inlined_call_operand.vmem [shape: f32[1,128], index: 10, kind: input, shape index: {}]
  %s11 = inlined_call_operand.vmem [shape: f32[2,128,128], index: 11, kind: output, shape index: {}]
  %s12 = sld [smem:[#allocation0]]
  $region54: #{residual_block_forward.1} parent=0
    _
  %s14 = ssub.s32 1, %s12
  %s15 = scalar_select 0, %s14, %s12
  // Predicated region
  $region2: #{residual_block_forward.1} parent=0 // pred_check
    _
  $region3: #{residual_block_forward.1} parent=0 // pred_check_branch
    %17 = sbr.rel (0) target = $region5
  $region4: #{residual_block_forward.1} parent=0 // pred_region
    _
  $region5: #{residual_block_forward.1} parent=0 // pred_fallthru
    _
  // Predicated region
  $region6: #{residual_block_forward.1} parent=0 // pred_check
    _
  $region7: #{residual_block_forward.1} parent=0 // pred_check_branch
    %19 = sbr.rel (0) target = $region9
  $region8: #{residual_block_forward.1} parent=0 // pred_region
    _
  $region9: #{residual_block_forward.1} parent=0 // pred_fallthru
    _
  // Predicated region
  $region10: #{residual_block_forward.1} parent=0 // pred_check
    _
  $region11: #{residual_block_forward.1} parent=0 // pred_check_branch
    %21 = sbr.rel (0) target = $region13
  $region12: #{residual_block_forward.1} parent=0 // pred_region
    _
  $region13: #{residual_block_forward.1} parent=0 // pred_fallthru
    _
  // Predicated region
  $region14: #{residual_block_forward.1} parent=0 // pred_check
    _
  $region15: #{residual_block_forward.1} parent=0 // pred_check_branch
    %23 = sbr.rel (0) target = $region17
  $region16: #{residual_block_forward.1} parent=0 // pred_region
    _
  $region17: #{residual_block_forward.1} parent=0 // pred_fallthru
    _
  // Predicated region
  $region18: #{residual_block_forward.1} parent=0 // pred_check
    _
  $region19: #{residual_block_forward.1} parent=0 // pred_check_branch
    %25 = sbr.rel (0) target = $region21
  $region20: #{residual_block_forward.1} parent=0 // pred_region
    _
  $region21: #{residual_block_forward.1} parent=0 // pred_fallthru
    _
  // Predicated region
  $region22: #{residual_block_forward.1} parent=0 // pred_check
    _
  $region23: #{residual_block_forward.1} parent=0 // pred_check_branch
    %27 = sbr.rel (0) target = $region25
  $region24: #{residual_block_forward.1} parent=0 // pred_region
    _
  $region25: #{residual_block_forward.1} parent=0 // pred_fallthru
    _
  // Predicated region
  $region26: #{residual_block_forward.1} parent=0 // pred_check
    _
  $region27: #{residual_block_forward.1} parent=0 // pred_check_branch
    %29 = sbr.rel (0) target = $region29
  $region28: #{residual_block_forward.1} parent=0 // pred_region
    _
  $region29: #{residual_block_forward.1} parent=0 // pred_fallthru
    _
  // Predicated region
  $region30: #{residual_block_forward.1} parent=0 // pred_check
    _
  $region31: #{residual_block_forward.1} parent=0 // pred_check_branch
    %31 = sbr.rel (0) target = $region33
  $region32: #{residual_block_forward.1} parent=0 // pred_region
    _
  $region33: #{residual_block_forward.1} parent=0 // pred_fallthru
    _
  // Predicated region
  $region34: #{residual_block_forward.1} parent=0 // pred_check
    _
  $region35: #{residual_block_forward.1} parent=0 // pred_check_branch
    %33 = sbr.rel (0) target = $region37
  $region36: #{residual_block_forward.1} parent=0 // pred_region
    _
  $region37: #{residual_block_forward.1} parent=0 // pred_fallthru
    _
  // Predicated region
  $region38: #{residual_block_forward.1} parent=0 // pred_check
    _
  $region39: #{residual_block_forward.1} parent=0 // pred_check_branch
    %35 = sbr.rel (0) target = $region41
  $region40: #{residual_block_forward.1} parent=0 // pred_region
    _
  $region41: #{residual_block_forward.1} parent=0 // pred_fallthru
    _
  // Predicated region
  $region42: #{residual_block_forward.1} parent=0 // pred_check
    _
  $region43: #{residual_block_forward.1} parent=0 // pred_check_branch
    %37 = sbr.rel (0) target = $region45
  $region44: #{residual_block_forward.1} parent=0 // pred_region
    _
  $region45: #{residual_block_forward.1} parent=0 // pred_fallthru
    _
  %vm39 = vcmask 523264
  %40 = vst.msk [vmem:[#allocation2] sm:$0xff] %vm39, 0.0
  %41 = vst.msk [vmem:[#allocation2 + $0x8] sm:$0xff] %vm39, 0.0
  %42 = vst.msk [vmem:[#allocation2 + $0x10] sm:$0xff] %vm39, 0.0
  %43 = vst.msk [vmem:[#allocation2 + $0x18] sm:$0xff] %vm39, 0.0
  %44 = vst.msk [vmem:[#allocation2 + $0x20] sm:$0xff] %vm39, 0.0
  %45 = vst.msk [vmem:[#allocation2 + $0x28] sm:$0xff] %vm39, 0.0
  %46 = vst.msk [vmem:[#allocation2 + $0x30] sm:$0xff] %vm39, 0.0
  %47 = vst.msk [vmem:[#allocation2 + $0x38] sm:$0xff] %vm39, 0.0
  %48 = vst.msk [vmem:[#allocation2 + $0x40] sm:$0xff] %vm39, 0.0
  %49 = vst.msk [vmem:[#allocation2 + $0x48] sm:$0xff] %vm39, 0.0
  %50 = vst.msk [vmem:[#allocation2 + $0x50] sm:$0xff] %vm39, 0.0
  %51 = vst.msk [vmem:[#allocation2 + $0x58] sm:$0xff] %vm39, 0.0
  %52 = vst.msk [vmem:[#allocation2 + $0x60] sm:$0xff] %vm39, 0.0
  %53 = vst.msk [vmem:[#allocation2 + $0x68] sm:$0xff] %vm39, 0.0
  %54 = vst.msk [vmem:[#allocation2 + $0x70] sm:$0xff] %vm39, 0.0
  %55 = vst.msk [vmem:[#allocation2 + $0x78] sm:$0xff] %vm39, 0.0
  %56 = vst.msk [vmem:[#allocation2 + $0x80] sm:$0xff] %vm39, 0.0
  %57 = vst.msk [vmem:[#allocation2 + $0x88] sm:$0xff] %vm39, 0.0
  %58 = vst.msk [vmem:[#allocation2 + $0x90] sm:$0xff] %vm39, 0.0
  %59 = vst.msk [vmem:[#allocation2 + $0x98] sm:$0xff] %vm39, 0.0
  %60 = vst.msk [vmem:[#allocation2 + $0xa0] sm:$0xff] %vm39, 0.0
  %61 = vst.msk [vmem:[#allocation2 + $0xa8] sm:$0xff] %vm39, 0.0
  %62 = vst.msk [vmem:[#allocation2 + $0xb0] sm:$0xff] %vm39, 0.0
  %63 = vst.msk [vmem:[#allocation2 + $0xb8] sm:$0xff] %vm39, 0.0
  %64 = vst.msk [vmem:[#allocation2 + $0xc0] sm:$0xff] %vm39, 0.0
  %65 = vst.msk [vmem:[#allocation2 + $0xc8] sm:$0xff] %vm39, 0.0
  %66 = vst.msk [vmem:[#allocation2 + $0xd0] sm:$0xff] %vm39, 0.0
  %67 = vst.msk [vmem:[#allocation2 + $0xd8] sm:$0xff] %vm39, 0.0
  %68 = vst.msk [vmem:[#allocation2 + $0xe0] sm:$0xff] %vm39, 0.0
  %69 = vst.msk [vmem:[#allocation2 + $0xe8] sm:$0xff] %vm39, 0.0
  %70 = vst.msk [vmem:[#allocation2 + $0xf0] sm:$0xff] %vm39, 0.0
  %71 = vst.msk [vmem:[#allocation2 + $0xf8] sm:$0xff] %vm39, 0.0
  %72 = vst.msk [vmem:[#allocation2 + $0x100] sm:$0xff] %vm39, 0.0
  %73 = vst.msk [vmem:[#allocation2 + $0x108] sm:$0xff] %vm39, 0.0
  %74 = vst.msk [vmem:[#allocation2 + $0x110] sm:$0xff] %vm39, 0.0
  %75 = vst.msk [vmem:[#allocation2 + $0x118] sm:$0xff] %vm39, 0.0
  %v76 = vld [vmem:[%s0] sm:$0xff]
  %v77 = vld [vmem:[%s0 + $0x8] sm:$0xff]
  %v78 = vld [vmem:[%s0 + $0x10] sm:$0xff]
  %v79 = vld [vmem:[%s0 + $0x18] sm:$0xff]
  %v80 = vld [vmem:[%s0 + $0x20] sm:$0xff]
  %v81 = vld [vmem:[%s0 + $0x28] sm:$0xff]
  %v82 = vld [vmem:[%s0 + $0x30] sm:$0xff]
  %v83 = vld [vmem:[%s0 + $0x38] sm:$0xff]
  %v84 = vld [vmem:[%s0 + $0x40] sm:$0xff]
  %v85 = vld [vmem:[%s0 + $0x48] sm:$0xff]
  %v86 = vld [vmem:[%s0 + $0x50] sm:$0xff]
  %v87 = vld [vmem:[%s0 + $0x58] sm:$0xff]
  %v88 = vld [vmem:[%s0 + $0x60] sm:$0xff]
  %v89 = vld [vmem:[%s0 + $0x68] sm:$0xff]
  %v90 = vld [vmem:[%s0 + $0x70] sm:$0xff]
  %v91 = vld [vmem:[%s0 + $0x78] sm:$0xff]
  %v92 = vld [vmem:[%s0 + $0x80] sm:$0xff]
  %v93 = vld [vmem:[%s0 + $0x88] sm:$0xff]
  %v94 = vld [vmem:[%s0 + $0x90] sm:$0xff]
  %v95 = vld [vmem:[%s0 + $0x98] sm:$0xff]
  %v96 = vld [vmem:[%s0 + $0xa0] sm:$0xff]
  %v97 = vld [vmem:[%s0 + $0xa8] sm:$0xff]
  %v98 = vld [vmem:[%s0 + $0xb0] sm:$0xff]
  %v99 = vld [vmem:[%s0 + $0xb8] sm:$0xff]
  %v100 = vld [vmem:[%s0 + $0xc0] sm:$0xff]
  %v101 = vld [vmem:[%s0 + $0xc8] sm:$0xff]
  %v102 = vld [vmem:[%s0 + $0xd0] sm:$0xff]
  %v103 = vld [vmem:[%s0 + $0xd8] sm:$0xff]
  %v104 = vld [vmem:[%s0 + $0xe0] sm:$0xff]
  %v105 = vld [vmem:[%s0 + $0xe8] sm:$0xff]
  %v106 = vld [vmem:[%s0 + $0xf0] sm:$0xff]
  %v107 = vld [vmem:[%s0 + $0xf8] sm:$0xff]
  %108 = vst.msk [vmem:[#allocation2 + $0x8] sm:$0xff] %vm39, %v76
  %109 = vst.msk [vmem:[#allocation2 + $0x10] sm:$0xff] %vm39, %v77
  %110 = vst.msk [vmem:[#allocation2 + $0x18] sm:$0xff] %vm39, %v78
  %111 = vst.msk [vmem:[#allocation2 + $0x20] sm:$0xff] %vm39, %v79
  %112 = vst.msk [vmem:[#allocation2 + $0x28] sm:$0xff] %vm39, %v80
  %113 = vst.msk [vmem:[#allocation2 + $0x30] sm:$0xff] %vm39, %v81
  %114 = vst.msk [vmem:[#allocation2 + $0x38] sm:$0xff] %vm39, %v82
  %115 = vst.msk [vmem:[#allocation2 + $0x40] sm:$0xff] %vm39, %v83
  %116 = vst.msk [vmem:[#allocation2 + $0x48] sm:$0xff] %vm39, %v84
  %117 = vst.msk [vmem:[#allocation2 + $0x50] sm:$0xff] %vm39, %v85
  %118 = vst.msk [vmem:[#allocation2 + $0x58] sm:$0xff] %vm39, %v86
  %119 = vst.msk [vmem:[#allocation2 + $0x60] sm:$0xff] %vm39, %v87
  %120 = vst.msk [vmem:[#allocation2 + $0x68] sm:$0xff] %vm39, %v88
  %121 = vst.msk [vmem:[#allocation2 + $0x70] sm:$0xff] %vm39, %v89
  %122 = vst.msk [vmem:[#allocation2 + $0x78] sm:$0xff] %vm39, %v90
  %123 = vst.msk [vmem:[#allocation2 + $0x80] sm:$0xff] %vm39, %v91
  %124 = vst.msk [vmem:[#allocation2 + $0x98] sm:$0xff] %vm39, %v92
  %125 = vst.msk [vmem:[#allocation2 + $0xa0] sm:$0xff] %vm39, %v93
  %126 = vst.msk [vmem:[#allocation2 + $0xa8] sm:$0xff] %vm39, %v94
  %127 = vst.msk [vmem:[#allocation2 + $0xb0] sm:$0xff] %vm39, %v95
  %128 = vst.msk [vmem:[#allocation2 + $0xb8] sm:$0xff] %vm39, %v96
  %129 = vst.msk [vmem:[#allocation2 + $0xc0] sm:$0xff] %vm39, %v97
  %130 = vst.msk [vmem:[#allocation2 + $0xc8] sm:$0xff] %vm39, %v98
  %131 = vst.msk [vmem:[#allocation2 + $0xd0] sm:$0xff] %vm39, %v99
  %132 = vst.msk [vmem:[#allocation2 + $0xd8] sm:$0xff] %vm39, %v100
  %133 = vst.msk [vmem:[#allocation2 + $0xe0] sm:$0xff] %vm39, %v101
  %134 = vst.msk [vmem:[#allocation2 + $0xe8] sm:$0xff] %vm39, %v102
  %135 = vst.msk [vmem:[#allocation2 + $0xf0] sm:$0xff] %vm39, %v103
  %136 = vst.msk [vmem:[#allocation2 + $0xf8] sm:$0xff] %vm39, %v104
  %137 = vst.msk [vmem:[#allocation2 + $0x100] sm:$0xff] %vm39, %v105
  %138 = vst.msk [vmem:[#allocation2 + $0x108] sm:$0xff] %vm39, %v106
  %139 = vst.msk [vmem:[#allocation2 + $0x110] sm:$0xff] %vm39, %v107
  %v140 = vld [vmem:[#allocation2 + $0x7] sm:$0xff]
  %v141 = vld [vmem:[#allocation2 + $0xf] sm:$0xff]
  %v142 = vld [vmem:[#allocation2 + $0x17] sm:$0xff]
  %v143 = vld [vmem:[#allocation2 + $0x1f] sm:$0xff]
  %v144 = vld [vmem:[#allocation2 + $0x27] sm:$0xff]
  %v145 = vld [vmem:[#allocation2 + $0x2f] sm:$0xff]
  %v146 = vld [vmem:[#allocation2 + $0x37] sm:$0xff]
  %v147 = vld [vmem:[#allocation2 + $0x3f] sm:$0xff]
  %v148 = vld [vmem:[#allocation2 + $0x47] sm:$0xff]
  %v149 = vld [vmem:[#allocation2 + $0x4f] sm:$0xff]
  %v150 = vld [vmem:[#allocation2 + $0x57] sm:$0xff]
  %v151 = vld [vmem:[#allocation2 + $0x5f] sm:$0xff]
  %v152 = vld [vmem:[#allocation2 + $0x67] sm:$0xff]
  %v153 = vld [vmem:[#allocation2 + $0x6f] sm:$0xff]
  %v154 = vld [vmem:[#allocation2 + $0x77] sm:$0xff]
  %v155 = vld [vmem:[#allocation2 + $0x7f] sm:$0xff]
  %v156 = vpack.c.bf16 %v141, %v140
  %v157 = vpack.c.bf16 %v143, %v142
  %v158 = vpack.c.bf16 %v145, %v144
  %v159 = vpack.c.bf16 %v147, %v146
  %v160 = vpack.c.bf16 %v149, %v148
  %v161 = vpack.c.bf16 %v151, %v150
  %v162 = vpack.c.bf16 %v153, %v152
  %v163 = vpack.c.bf16 %v155, %v154
  %v164 = vld [vmem:[%s1] sm:$0xf]
  %v165 = vld [vmem:[%s1 + $0x4] sm:$0xf]
  %v166 = vld [vmem:[%s1 + $0x8] sm:$0xf]
  %v167 = vld [vmem:[%s1 + $0xc] sm:$0xf]
  %v168 = vld [vmem:[%s1 + $0x10] sm:$0xf]
  %v169 = vld [vmem:[%s1 + $0x14] sm:$0xf]
  %v170 = vld [vmem:[%s1 + $0x18] sm:$0xf]
  %v171 = vld [vmem:[%s1 + $0x1c] sm:$0xf]
  %v172 = vld [vmem:[#allocation2 + $0x8] sm:$0xff]
  %v173 = vld [vmem:[#allocation2 + $0x10] sm:$0xff]
  %v174 = vld [vmem:[#allocation2 + $0x18] sm:$0xff]
  %v175 = vld [vmem:[#allocation2 + $0x20] sm:$0xff]
  %v176 = vld [vmem:[#allocation2 + $0x28] sm:$0xff]
  %v177 = vld [vmem:[#allocation2 + $0x30] sm:$0xff]
  %v178 = vld [vmem:[#allocation2 + $0x38] sm:$0xff]
  %v179 = vld [vmem:[#allocation2 + $0x40] sm:$0xff]
  %v180 = vld [vmem:[#allocation2 + $0x48] sm:$0xff]
  %v181 = vld [vmem:[#allocation2 + $0x50] sm:$0xff]
  %v182 = vld [vmem:[#allocation2 + $0x58] sm:$0xff]
  %v183 = vld [vmem:[#allocation2 + $0x60] sm:$0xff]
  %v184 = vld [vmem:[#allocation2 + $0x68] sm:$0xff]
  %v185 = vld [vmem:[#allocation2 + $0x70] sm:$0xff]
  %v186 = vld [vmem:[#allocation2 + $0x78] sm:$0xff]
  %v187 = vld [vmem:[#allocation2 + $0x80] sm:$0xff]
  %v188 = vpack.c.bf16 %v173, %v172
  %v189 = vpack.c.bf16 %v175, %v174
  %v190 = vpack.c.bf16 %v177, %v176
  %v191 = vpack.c.bf16 %v179, %v178
  %v192 = vpack.c.bf16 %v181, %v180
  %v193 = vpack.c.bf16 %v183, %v182
  %v194 = vpack.c.bf16 %v185, %v184
  %v195 = vpack.c.bf16 %v187, %v186
  %s196 = scalar_lea.vmem %s1, 32
  %v197 = vld [vmem:[%s196] sm:$0xf]
  %v198 = vld [vmem:[%s196 + $0x4] sm:$0xf]
  %v199 = vld [vmem:[%s196 + $0x8] sm:$0xf]
  %v200 = vld [vmem:[%s196 + $0xc] sm:$0xf]
  %v201 = vld [vmem:[%s196 + $0x10] sm:$0xf]
  %v202 = vld [vmem:[%s196 + $0x14] sm:$0xf]
  %v203 = vld [vmem:[%s196 + $0x18] sm:$0xf]
  %v204 = vld [vmem:[%s196 + $0x1c] sm:$0xf]
  %v213 = vunpack.c.l.b16 %v197
  %v214 = vunpack.c.l.b16 %v198
  %v215 = vunpack.c.l.b16 %v199
  %v216 = vunpack.c.l.b16 %v200
  %v217 = vunpack.c.l.b16 %v201
  %v218 = vunpack.c.l.b16 %v202
  %v219 = vunpack.c.l.b16 %v203
  %v220 = vunpack.c.l.b16 %v204
  %v221 = vpack.c.b16 %v214, %v213
  %v222 = vpack.c.b16 %v216, %v215
  %v223 = vpack.c.b16 %v218, %v217
  %v224 = vpack.c.b16 %v220, %v219
  %v230 = vsel %vm39, %v188, 0
  %v233 = vsel %vm39, %v189, 0
  %v236 = vsel %vm39, %v190, 0
  %v239 = vsel %vm39, %v191, 0
  %v242 = vsel %vm39, %v192, 0
  %v245 = vsel %vm39, %v193, 0
  %v248 = vsel %vm39, %v194, 0
  %v251 = vsel %vm39, %v195, 0
  %253 = vmatprep.subr.bf16.mxu0 0
  %254 = vmatpush1.bf16.msra.mxu0 %v221
  %255 = vmatprep.subr.bf16.mxu0 0
  %256 = vmatpush1.bf16.msra.mxu0 %v222
  %257 = vmatprep.subr.bf16.mxu0 0
  %258 = vmatpush1.bf16.msra.mxu0 %v223
  %259 = vmatprep.subr.bf16.mxu0 0
  %260 = vmatpush1.bf16.msra.mxu0 %v224
  %261 = vmatprep.subr.bf16.mxu0 0
  %262 = vmatpush1.bf16.msra.mxu0 0
  %263 = vmatprep.subr.bf16.mxu0 0
  %264 = vmatpush1.bf16.msra.mxu0 0
  %265 = vmatprep.subr.bf16.mxu0 0
  %266 = vmatpush1.bf16.msra.mxu0 0
  %267 = vmatprep.subr.bf16.mxu0 0
  %268 = vmatpush1.bf16.msra.mxu0 0
  %269 = vmatprep.subr.bf16.mxu0 0
  %270 = vmatpush1.bf16.msra.mxu0 0
  %271 = vmatprep.subr.bf16.mxu0 0
  %272 = vmatpush1.bf16.msra.mxu0 0
  %273 = vmatprep.subr.bf16.mxu0 0
  %274 = vmatpush1.bf16.msra.mxu0 0
  %275 = vmatprep.subr.bf16.mxu0 0
  %276 = vmatpush1.bf16.msra.mxu0 0
  %277 = vmatprep.subr.bf16.mxu0 0
  %278 = vmatpush1.bf16.msra.mxu0 0
  %279 = vmatprep.subr.bf16.mxu0 0
  %280 = vmatpush1.bf16.msra.mxu0 0
  %281 = vmatprep.subr.bf16.mxu0 0
  %282 = vmatpush1.bf16.msra.mxu0 0
  %283 = vmatprep.subr.bf16.mxu0 0
  %284 = vmatpush1.bf16.msra.mxu0 0
  %285 = vmatprep.mubr.bf16.mxu0 0
  %286 = vmatmul.mubr.bf16.gmra.mrb[0].mxu0 %v230
  %v287 = vpop.f32.mrb[0].mxu0
  %v288 = vadd.f32 0.0, %v287
  %v289 = vpop.f32.mrb[0].mxu0
  %v290 = vpop.f32.mrb[0].mxu0
  %v291 = vadd.f32 0.0, %v290
  %v292 = vpop.f32.mrb[0].mxu0
  %293 = vmatprep.mubr.bf16.mxu0 0
  %294 = vmatmul.mubr.bf16.gmra.mrb[0].mxu0 %v233
  %v295 = vpop.f32.mrb[0].mxu0
  %v296 = vadd.f32 0.0, %v295
  %v297 = vpop.f32.mrb[0].mxu0
  %v298 = vpop.f32.mrb[0].mxu0
  %v299 = vadd.f32 0.0, %v298
  %v300 = vpop.f32.mrb[0].mxu0
  %301 = vmatprep.mubr.bf16.mxu0 0
  %302 = vmatmul.mubr.bf16.gmra.mrb[0].mxu0 %v236
  %v303 = vpop.f32.mrb[0].mxu0
  %v304 = vadd.f32 0.0, %v303
  %v305 = vpop.f32.mrb[0].mxu0
  %v306 = vpop.f32.mrb[0].mxu0
  %v307 = vadd.f32 0.0, %v306
  %v308 = vpop.f32.mrb[0].mxu0
  %309 = vmatprep.mubr.bf16.mxu0 0
  %310 = vmatmul.mubr.bf16.gmra.mrb[0].mxu0 %v239
  %v311 = vpop.f32.mrb[0].mxu0
  %v312 = vadd.f32 0.0, %v311
  %v313 = vpop.f32.mrb[0].mxu0
  %v314 = vpop.f32.mrb[0].mxu0
  %v315 = vadd.f32 0.0, %v314
  %v316 = vpop.f32.mrb[0].mxu0
  %317 = vmatprep.mubr.bf16.mxu0 0
  %318 = vmatmul.mubr.bf16.gmra.mrb[0].mxu0 %v242
  %v319 = vpop.f32.mrb[0].mxu0
  %v320 = vadd.f32 0.0, %v319
  %v321 = vpop.f32.mrb[0].mxu0
  %v322 = vpop.f32.mrb[0].mxu0
  %v323 = vadd.f32 0.0, %v322
  %v324 = vpop.f32.mrb[0].mxu0
  %325 = vmatprep.mubr.bf16.mxu0 0
  %326 = vmatmul.mubr.bf16.gmra.mrb[0].mxu0 %v245
  %v327 = vpop.f32.mrb[0].mxu0
  %v328 = vadd.f32 0.0, %v327
  %v329 = vpop.f32.mrb[0].mxu0
  %v330 = vpop.f32.mrb[0].mxu0
  %v331 = vadd.f32 0.0, %v330
  %v332 = vpop.f32.mrb[0].mxu0
  %333 = vmatprep.mubr.bf16.mxu0 0
  %334 = vmatmul.mubr.bf16.gmra.mrb[0].mxu0 %v248
  %v335 = vpop.f32.mrb[0].mxu0
  %v336 = vadd.f32 0.0, %v335
  %v337 = vpop.f32.mrb[0].mxu0
  %v338 = vpop.f32.mrb[0].mxu0
  %v339 = vadd.f32 0.0, %v338
  %v340 = vpop.f32.mrb[0].mxu0
  %341 = vmatprep.mubr.bf16.mxu0 0
  %342 = vmatmul.mubr.bf16.gmra.mrb[0].mxu0 %v251
  %v343 = vpop.f32.mrb[0].mxu0
  %v344 = vadd.f32 0.0, %v343
  %v345 = vpop.f32.mrb[0].mxu0
  %v346 = vpop.f32.mrb[0].mxu0
  %v347 = vadd.f32 0.0, %v346
  %v348 = vpop.f32.mrb[0].mxu0
  %349 = vdwg.mxu0
  %v358 = vunpack.c.l.b16 %v164
  %v359 = vunpack.c.l.b16 %v165
  %v360 = vunpack.c.l.b16 %v166
  %v361 = vunpack.c.l.b16 %v167
  %v362 = vunpack.c.l.b16 %v168
  %v363 = vunpack.c.l.b16 %v169
  %v364 = vunpack.c.l.b16 %v170
  %v365 = vunpack.c.l.b16 %v171
  %v366 = vpack.c.b16 %v359, %v358
  %v367 = vpack.c.b16 %v361, %v360
  %v368 = vpack.c.b16 %v363, %v362
  %v369 = vpack.c.b16 %v365, %v364
  %v375 = vsel %vm39, %v156, 0
  %v378 = vsel %vm39, %v157, 0
  %v381 = vsel %vm39, %v158, 0
  %v384 = vsel %vm39, %v159, 0
  %v387 = vsel %vm39, %v160, 0
  %v390 = vsel %vm39, %v161, 0
  %v393 = vsel %vm39, %v162, 0
  %v396 = vsel %vm39, %v163, 0
  %398 = vmatprep.subr.bf16.mxu0 0
  %399 = vmatpush1.bf16.msra.mxu0 %v366
  %400 = vmatprep.subr.bf16.mxu0 0
  %401 = vmatpush1.bf16.msra.mxu0 %v367
  %402 = vmatprep.subr.bf16.mxu0 0
  %403 = vmatpush1.bf16.msra.mxu0 %v368
  %404 = vmatprep.subr.bf16.mxu0 0
  %405 = vmatpush1.bf16.msra.mxu0 %v369
  %406 = vmatprep.subr.bf16.mxu0 0
  %407 = vmatpush1.bf16.msra.mxu0 0
  %408 = vmatprep.subr.bf16.mxu0 0
  %409 = vmatpush1.bf16.msra.mxu0 0
  %410 = vmatprep.subr.bf16.mxu0 0
  %411 = vmatpush1.bf16.msra.mxu0 0
  %412 = vmatprep.subr.bf16.mxu0 0
  %413 = vmatpush1.bf16.msra.mxu0 0
  %414 = vmatprep.subr.bf16.mxu0 0
  %415 = vmatpush1.bf16.msra.mxu0 0
  %416 = vmatprep.subr.bf16.mxu0 0
  %417 = vmatpush1.bf16.msra.mxu0 0
  %418 = vmatprep.subr.bf16.mxu0 0
  %419 = vmatpush1.bf16.msra.mxu0 0
  %420 = vmatprep.subr.bf16.mxu0 0
  %421 = vmatpush1.bf16.msra.mxu0 0
  %422 = vmatprep.subr.bf16.mxu0 0
  %423 = vmatpush1.bf16.msra.mxu0 0
  %424 = vmatprep.subr.bf16.mxu0 0
  %425 = vmatpush1.bf16.msra.mxu0 0
  %426 = vmatprep.subr.bf16.mxu0 0
  %427 = vmatpush1.bf16.msra.mxu0 0
  %428 = vmatprep.subr.bf16.mxu0 0
  %429 = vmatpush1.bf16.msra.mxu0 0
  %430 = vmatprep.mubr.bf16.mxu0 0
  %431 = vmatmul.mubr.bf16.gmra.mrb[0].mxu0 %v375
  %v432 = vpop.f32.mrb[0].mxu0
  %v433 = vadd.f32 %v288, %v432
  %v434 = vpop.f32.mrb[0].mxu0
  %v435 = vpop.f32.mrb[0].mxu0
  %v436 = vadd.f32 %v291, %v435
  %v437 = vpop.f32.mrb[0].mxu0
  %438 = vmatprep.mubr.bf16.mxu0 0
  %439 = vmatmul.mubr.bf16.gmra.mrb[0].mxu0 %v378
  %v440 = vpop.f32.mrb[0].mxu0
  %v441 = vadd.f32 %v296, %v440
  %v442 = vpop.f32.mrb[0].mxu0
  %v443 = vpop.f32.mrb[0].mxu0
  %v444 = vadd.f32 %v299, %v443
  %v445 = vpop.f32.mrb[0].mxu0
  %446 = vmatprep.mubr.bf16.mxu0 0
  %447 = vmatmul.mubr.bf16.gmra.mrb[0].mxu0 %v381
  %v448 = vpop.f32.mrb[0].mxu0
  %v449 = vadd.f32 %v304, %v448
  %v450 = vpop.f32.mrb[0].mxu0
  %v451 = vpop.f32.mrb[0].mxu0
  %v452 = vadd.f32 %v307, %v451
  %v453 = vpop.f32.mrb[0].mxu0
  %454 = vmatprep.mubr.bf16.mxu0 0
  %455 = vmatmul.mubr.bf16.gmra.mrb[0].mxu0 %v384
  %v456 = vpop.f32.mrb[0].mxu0
  %v457 = vadd.f32 %v312, %v456
  %v458 = vpop.f32.mrb[0].mxu0
  %v459 = vpop.f32.mrb[0].mxu0
  %v460 = vadd.f32 %v315, %v459
  %v461 = vpop.f32.mrb[0].mxu0
  %462 = vmatprep.mubr.bf16.mxu0 0
  %463 = vmatmul.mubr.bf16.gmra.mrb[0].mxu0 %v387
  %v464 = vpop.f32.mrb[0].mxu0
  %v465 = vadd.f32 %v320, %v464
  %v466 = vpop.f32.mrb[0].mxu0
  %v467 = vpop.f32.mrb[0].mxu0
  %v468 = vadd.f32 %v323, %v467
  %v469 = vpop.f32.mrb[0].mxu0
  %470 = vmatprep.mubr.bf16.mxu0 0
  %471 = vmatmul.mubr.bf16.gmra.mrb[0].mxu0 %v390
  %v472 = vpop.f32.mrb[0].mxu0
  %v473 = vadd.f32 %v328, %v472
  %v474 = vpop.f32.mrb[0].mxu0
  %v475 = vpop.f32.mrb[0].mxu0
  %v476 = vadd.f32 %v331, %v475
  %v477 = vpop.f32.mrb[0].mxu0
  %478 = vmatprep.mubr.bf16.mxu0 0
  %479 = vmatmul.mubr.bf16.gmra.mrb[0].mxu0 %v393
  %v480 = vpop.f32.mrb[0].mxu0
  %v481 = vadd.f32 %v336, %v480
  %v482 = vpop.f32.mrb[0].mxu0
  %v483 = vpop.f32.mrb[0].mxu0
  %v484 = vadd.f32 %v339, %v483
  %v485 = vpop.f32.mrb[0].mxu0
  %486 = vmatprep.mubr.bf16.mxu0 0
  %487 = vmatmul.mubr.bf16.gmra.mrb[0].mxu0 %v396
  %v488 = vpop.f32.mrb[0].mxu0
  %v489 = vadd.f32 %v344, %v488
  %v490 = vpop.f32.mrb[0].mxu0
  %v491 = vpop.f32.mrb[0].mxu0
  %v492 = vadd.f32 %v347, %v491
  %v493 = vpop.f32.mrb[0].mxu0
  %494 = vdwg.mxu0
  %v495 = vld [vmem:[#allocation2 + $0x9] sm:$0xff]
  %v496 = vld [vmem:[#allocation2 + $0x11] sm:$0xff]
  %v497 = vld [vmem:[#allocation2 + $0x19] sm:$0xff]
  %v498 = vld [vmem:[#allocation2 + $0x21] sm:$0xff]
  %v499 = vld [vmem:[#allocation2 + $0x29] sm:$0xff]
  %v500 = vld [vmem:[#allocation2 + $0x31] sm:$0xff]
  %v501 = vld [vmem:[#allocation2 + $0x39] sm:$0xff]
  %v502 = vld [vmem:[#allocation2 + $0x41] sm:$0xff]
  %v503 = vld [vmem:[#allocation2 + $0x49] sm:$0xff]
  %v504 = vld [vmem:[#allocation2 + $0x51] sm:$0xff]
  %v505 = vld [vmem:[#allocation2 + $0x59] sm:$0xff]
  %v506 = vld [vmem:[#allocation2 + $0x61] sm:$0xff]
  %v507 = vld [vmem:[#allocation2 + $0x69] sm:$0xff]
  %v508 = vld [vmem:[#allocation2 + $0x71] sm:$0xff]
  %v509 = vld [vmem:[#allocation2 + $0x79] sm:$0xff]
  %v510 = vld [vmem:[#allocation2 + $0x81] sm:$0xff]
  %v511 = vpack.c.bf16 %v496, %v495
  %v512 = vpack.c.bf16 %v498, %v497
  %v513 = vpack.c.bf16 %v500, %v499
  %v514 = vpack.c.bf16 %v502, %v501
  %v515 = vpack.c.bf16 %v504, %v503
  %v516 = vpack.c.bf16 %v506, %v505
  %v517 = vpack.c.bf16 %v508, %v507
  %v518 = vpack.c.bf16 %v510, %v509
  %s519 = scalar_lea.vmem %s1, 64
  %v520 = vld [vmem:[%s519] sm:$0xf]
  %v521 = vld [vmem:[%s519 + $0x4] sm:$0xf]
  %v522 = vld [vmem:[%s519 + $0x8] sm:$0xf]
  %v523 = vld [vmem:[%s519 + $0xc] sm:$0xf]
  %v524 = vld [vmem:[%s519 + $0x10] sm:$0xf]
  %v525 = vld [vmem:[%s519 + $0x14] sm:$0xf]
  %v526 = vld [vmem:[%s519 + $0x18] sm:$0xf]
  %v527 = vld [vmem:[%s519 + $0x1c] sm:$0xf]
  %v536 = vunpack.c.l.b16 %v520
  %v537 = vunpack.c.l.b16 %v521
  %v538 = vunpack.c.l.b16 %v522
  %v539 = vunpack.c.l.b16 %v523
  %v540 = vunpack.c.l.b16 %v524
  %v541 = vunpack.c.l.b16 %v525
  %v542 = vunpack.c.l.b16 %v526
  %v543 = vunpack.c.l.b16 %v527
  %v544 = vpack.c.b16 %v537, %v536
  %v545 = vpack.c.b16 %v539, %v538
  %v546 = vpack.c.b16 %v541, %v540
  %v547 = vpack.c.b16 %v543, %v542
  %v553 = vsel %vm39, %v511, 0
  %v556 = vsel %vm39, %v512, 0
  %v559 = vsel %vm39, %v513, 0
  %v562 = vsel %vm39, %v514, 0
  %v565 = vsel %vm39, %v515, 0
  %v568 = vsel %vm39, %v516, 0
  %v571 = vsel %vm39, %v517, 0
  %v574 = vsel %vm39, %v518, 0
  %576 = vmatprep.subr.bf16.mxu0 0
  %577 = vmatpush1.bf16.msra.mxu0 %v544
  %578 = vmatprep.subr.bf16.mxu0 0
  %579 = vmatpush1.bf16.msra.mxu0 %v545
  %580 = vmatprep.subr.bf16.mxu0 0
  %581 = vmatpush1.bf16.msra.mxu0 %v546
  %582 = vmatprep.subr.bf16.mxu0 0
  %583 = vmatpush1.bf16.msra.mxu0 %v547
  %584 = vmatprep.subr.bf16.mxu0 0
  %585 = vmatpush1.bf16.msra.mxu0 0
  %586 = vmatprep.subr.bf16.mxu0 0
  %587 = vmatpush1.bf16.msra.mxu0 0
  %588 = vmatprep.subr.bf16.mxu0 0
  %589 = vmatpush1.bf16.msra.mxu0 0
  %590 = vmatprep.subr.bf16.mxu0 0
  %591 = vmatpush1.bf16.msra.mxu0 0
  %592 = vmatprep.subr.bf16.mxu0 0
  %593 = vmatpush1.bf16.msra.mxu0 0
  %594 = vmatprep.subr.bf16.mxu0 0
  %595 = vmatpush1.bf16.msra.mxu0 0
  %596 = vmatprep.subr.bf16.mxu0 0
  %597 = vmatpush1.bf16.msra.mxu0 0
  %598 = vmatprep.subr.bf16.mxu0 0
  %599 = vmatpush1.bf16.msra.mxu0 0
  %600 = vmatprep.subr.bf16.mxu0 0
  %601 = vmatpush1.bf16.msra.mxu0 0
  %602 = vmatprep.subr.bf16.mxu0 0
  %603 = vmatpush1.bf16.msra.mxu0 0
  %604 = vmatprep.subr.bf16.mxu0 0
  %605 = vmatpush1.bf16.msra.mxu0 0
  %606 = vmatprep.subr.bf16.mxu0 0
  %607 = vmatpush1.bf16.msra.mxu0 0
  %608 = vmatprep.mubr.bf16.mxu0 0
  %609 = vmatmul.mubr.bf16.gmra.mrb[0].mxu0 %v553
  %v610 = vpop.f32.mrb[0].mxu0
  %v611 = vadd.f32 0.0, %v610
  %v612 = vpop.f32.mrb[0].mxu0
  %v613 = vpop.f32.mrb[0].mxu0
  %v614 = vadd.f32 0.0, %v613
  %v615 = vpop.f32.mrb[0].mxu0
  %616 = vmatprep.mubr.bf16.mxu0 0
  %617 = vmatmul.mubr.bf16.gmra.mrb[0].mxu0 %v556
  %v618 = vpop.f32.mrb[0].mxu0
  %v619 = vadd.f32 0.0, %v618
  %v620 = vpop.f32.mrb[0].mxu0
  %v621 = vpop.f32.mrb[0].mxu0
  %v622 = vadd.f32 0.0, %v621
  %v623 = vpop.f32.mrb[0].mxu0
  %624 = vmatprep.mubr.bf16.mxu0 0
  %625 = vmatmul.mubr.bf16.gmra.mrb[0].mxu0 %v559
  %v626 = vpop.f32.mrb[0].mxu0
  %v627 = vadd.f32 0.0, %v626
  %v628 = vpop.f32.mrb[0].mxu0
  %v629 = vpop.f32.mrb[0].mxu0
  %v630 = vadd.f32 0.0, %v629
  %v631 = vpop.f32.mrb[0].mxu0
  %632 = vmatprep.mubr.bf16.mxu0 0
  %633 = vmatmul.mubr.bf16.gmra.mrb[0].mxu0 %v562
  %v634 = vpop.f32.mrb[0].mxu0
  %v635 = vadd.f32 0.0, %v634
  %v636 = vpop.f32.mrb[0].mxu0
  %v637 = vpop.f32.mrb[0].mxu0
  %v638 = vadd.f32 0.0, %v637
  %v639 = vpop.f32.mrb[0].mxu0
  %640 = vmatprep.mubr.bf16.mxu0 0
  %641 = vmatmul.mubr.bf16.gmra.mrb[0].mxu0 %v565
  %v642 = vpop.f32.mrb[0].mxu0
  %v643 = vadd.f32 0.0, %v642
  %v644 = vpop.f32.mrb[0].mxu0
  %v645 = vpop.f32.mrb[0].mxu0
  %v646 = vadd.f32 0.0, %v645
  %v647 = vpop.f32.mrb[0].mxu0
  %648 = vmatprep.mubr.bf16.mxu0 0
  %649 = vmatmul.mubr.bf16.gmra.mrb[0].mxu0 %v568
  %v650 = vpop.f32.mrb[0].mxu0
  %v651 = vadd.f32 0.0, %v650
  %v652 = vpop.f32.mrb[0].mxu0
  %v653 = vpop.f32.mrb[0].mxu0
  %v654 = vadd.f32 0.0, %v653
  %v655 = vpop.f32.mrb[0].mxu0
  %656 = vmatprep.mubr.bf16.mxu0 0
  %657 = vmatmul.mubr.bf16.gmra.mrb[0].mxu0 %v571
  %v658 = vpop.f32.mrb[0].mxu0
  %v659 = vadd.f32 0.0, %v658
  %v660 = vpop.f32.mrb[0].mxu0
  %v661 = vpop.f32.mrb[0].mxu0
  %v662 = vadd.f32 0.0, %v661
  %v663 = vpop.f32.mrb[0].mxu0
  %664 = vmatprep.mubr.bf16.mxu0 0
  %665 = vmatmul.mubr.bf16.gmra.mrb[0].mxu0 %v574
  %v666 = vpop.f32.mrb[0].mxu0
  %v667 = vadd.f32 0.0, %v666
  %v668 = vpop.f32.mrb[0].mxu0
  %v669 = vpop.f32.mrb[0].mxu0
  %v670 = vadd.f32 0.0, %v669
  %v671 = vpop.f32.mrb[0].mxu0
  %672 = vdwg.mxu0
  %v673 = vadd.f32 %v433, %v611
  %v674 = vadd.f32 %v436, %v614
  %v675 = vadd.f32 %v441, %v619
  %v676 = vadd.f32 %v444, %v622
  %v677 = vadd.f32 %v449, %v627
  %v678 = vadd.f32 %v452, %v630
  %v679 = vadd.f32 %v457, %v635
  %v680 = vadd.f32 %v460, %v638
  %v681 = vadd.f32 %v465, %v643
  %v682 = vadd.f32 %v468, %v646
  %v683 = vadd.f32 %v473, %v651
  %v684 = vadd.f32 %v476, %v654
  %v685 = vadd.f32 %v481, %v659
  %v686 = vadd.f32 %v484, %v662
  %v687 = vadd.f32 %v489, %v667
  %v688 = vadd.f32 %v492, %v670
  %v689 = vld [vmem:[%s2] sm:$0x1]
  %v691 = vlaneseq
  %v692 = vshrl.u32 %v691, 7
  %v693 = vsub.s32 0, %v692
  %v694 = vrot.slane %v689, %v693
  %v696 = vadd.f32 %v673, %v694
  %v697 = vadd.f32 %v674, %v694
  %v698 = vadd.f32 %v675, %v694
  %v699 = vadd.f32 %v676, %v694
  %v700 = vadd.f32 %v677, %v694
  %v701 = vadd.f32 %v678, %v694
  %v702 = vadd.f32 %v679, %v694
  %v703 = vadd.f32 %v680, %v694
  %v704 = vadd.f32 %v681, %v694
  %v705 = vadd.f32 %v682, %v694
  %v706 = vadd.f32 %v683, %v694
  %v707 = vadd.f32 %v684, %v694
  %v708 = vadd.f32 %v685, %v694
  %v709 = vadd.f32 %v686, %v694
  %v710 = vadd.f32 %v687, %v694
  %v711 = vadd.f32 %v688, %v694
  %s712 = scalar_lea.vmem [#allocation2], 144
  %v713 = vld [vmem:[%s712 + $0x7] sm:$0xff]
  %v714 = vld [vmem:[%s712 + $0xf] sm:$0xff]
  %v715 = vld [vmem:[%s712 + $0x17] sm:$0xff]
  %v716 = vld [vmem:[%s712 + $0x1f] sm:$0xff]
  %v717 = vld [vmem:[%s712 + $0x27] sm:$0xff]
  %v718 = vld [vmem:[%s712 + $0x2f] sm:$0xff]
  %v719 = vld [vmem:[%s712 + $0x37] sm:$0xff]
  %v720 = vld [vmem:[%s712 + $0x3f] sm:$0xff]
  %v721 = vld [vmem:[%s712 + $0x47] sm:$0xff]
  %v722 = vld [vmem:[%s712 + $0x4f] sm:$0xff]
  %v723 = vld [vmem:[%s712 + $0x57] sm:$0xff]
  %v724 = vld [vmem:[%s712 + $0x5f] sm:$0xff]
  %v725 = vld [vmem:[%s712 + $0x67] sm:$0xff]
  %v726 = vld [vmem:[%s712 + $0x6f] sm:$0xff]
  %v727 = vld [vmem:[%s712 + $0x77] sm:$0xff]
  %v728 = vld [vmem:[%s712 + $0x7f] sm:$0xff]
  %v729 = vpack.c.bf16 %v714, %v713
  %v730 = vpack.c.bf16 %v716, %v715
  %v731 = vpack.c.bf16 %v718, %v717
  %v732 = vpack.c.bf16 %v720, %v719
  %v733 = vpack.c.bf16 %v722, %v721
  %v734 = vpack.c.bf16 %v724, %v723
  %v735 = vpack.c.bf16 %v726, %v725
  %v736 = vpack.c.bf16 %v728, %v727
  %v737 = vld [vmem:[%s712 + $0x8] sm:$0xff]
  %v738 = vld [vmem:[%s712 + $0x10] sm:$0xff]
  %v739 = vld [vmem:[%s712 + $0x18] sm:$0xff]
  %v740 = vld [vmem:[%s712 + $0x20] sm:$0xff]
  %v741 = vld [vmem:[%s712 + $0x28] sm:$0xff]
  %v742 = vld [vmem:[%s712 + $0x30] sm:$0xff]
  %v743 = vld [vmem:[%s712 + $0x38] sm:$0xff]
  %v744 = vld [vmem:[%s712 + $0x40] sm:$0xff]
  %v745 = vld [vmem:[%s712 + $0x48] sm:$0xff]
  %v746 = vld [vmem:[%s712 + $0x50] sm:$0xff]
  %v747 = vld [vmem:[%s712 + $0x58] sm:$0xff]
  %v748 = vld [vmem:[%s712 + $0x60] sm:$0xff]
  %v749 = vld [vmem:[%s712 + $0x68] sm:$0xff]
  %v750 = vld [vmem:[%s712 + $0x70] sm:$0xff]
  %v751 = vld [vmem:[%s712 + $0x78] sm:$0xff]
  %v752 = vld [vmem:[%s712 + $0x80] sm:$0xff]
  %v753 = vpack.c.bf16 %v738, %v737
  %v754 = vpack.c.bf16 %v740, %v739
  %v755 = vpack.c.bf16 %v742, %v741
  %v756 = vpack.c.bf16 %v744, %v743
  %v757 = vpack.c.bf16 %v746, %v745
  %v758 = vpack.c.bf16 %v748, %v747
  %v759 = vpack.c.bf16 %v750, %v749
  %v760 = vpack.c.bf16 %v752, %v751
  %v762 = vsel %vm39, %v753, 0
  %v765 = vsel %vm39, %v754, 0
  %v768 = vsel %vm39, %v755, 0
  %v771 = vsel %vm39, %v756, 0
  %v774 = vsel %vm39, %v757, 0
  %v777 = vsel %vm39, %v758, 0
  %v780 = vsel %vm39, %v759, 0
  %v783 = vsel %vm39, %v760, 0
  %785 = vmatprep.subr.bf16.mxu0 0
  %786 = vmatpush1.bf16.msra.mxu0 %v221
  %787 = vmatprep.subr.bf16.mxu0 0
  %788 = vmatpush1.bf16.msra.mxu0 %v222
  %789 = vmatprep.subr.bf16.mxu0 0
  %790 = vmatpush1.bf16.msra.mxu0 %v223
  %791 = vmatprep.subr.bf16.mxu0 0
  %792 = vmatpush1.bf16.msra.mxu0 %v224
  %793 = vmatprep.subr.bf16.mxu0 0
  %794 = vmatpush1.bf16.msra.mxu0 0
  %795 = vmatprep.subr.bf16.mxu0 0
  %796 = vmatpush1.bf16.msra.mxu0 0
  %797 = vmatprep.subr.bf16.mxu0 0
  %798 = vmatpush1.bf16.msra.mxu0 0
  %799 = vmatprep.subr.bf16.mxu0 0
  %800 = vmatpush1.bf16.msra.mxu0 0
  %801 = vmatprep.subr.bf16.mxu0 0
  %802 = vmatpush1.bf16.msra.mxu0 0
  %803 = vmatprep.subr.bf16.mxu0 0
  %804 = vmatpush1.bf16.msra.mxu0 0
  %805 = vmatprep.subr.bf16.mxu0 0
  %806 = vmatpush1.bf16.msra.mxu0 0
  %807 = vmatprep.subr.bf16.mxu0 0
  %808 = vmatpush1.bf16.msra.mxu0 0
  %809 = vmatprep.subr.bf16.mxu0 0
  %810 = vmatpush1.bf16.msra.mxu0 0
  %811 = vmatprep.subr.bf16.mxu0 0
  %812 = vmatpush1.bf16.msra.mxu0 0
  %813 = vmatprep.subr.bf16.mxu0 0
  %814 = vmatpush1.bf16.msra.mxu0 0
  %815 = vmatprep.subr.bf16.mxu0 0
  %816 = vmatpush1.bf16.msra.mxu0 0
  %817 = vmatprep.mubr.bf16.mxu0 0
  %818 = vmatmul.mubr.bf16.gmra.mrb[0].mxu0 %v762
  %v819 = vpop.f32.mrb[0].mxu0
  %v820 = vadd.f32 0.0, %v819
  %v821 = vpop.f32.mrb[0].mxu0
  %v822 = vpop.f32.mrb[0].mxu0
  %v823 = vadd.f32 0.0, %v822
  %v824 = vpop.f32.mrb[0].mxu0
  %825 = vmatprep.mubr.bf16.mxu0 0
  %826 = vmatmul.mubr.bf16.gmra.mrb[0].mxu0 %v765
  %v827 = vpop.f32.mrb[0].mxu0
  %v828 = vadd.f32 0.0, %v827
  %v829 = vpop.f32.mrb[0].mxu0
  %v830 = vpop.f32.mrb[0].mxu0
  %v831 = vadd.f32 0.0, %v830
  %v832 = vpop.f32.mrb[0].mxu0
  %833 = vmatprep.mubr.bf16.mxu0 0
  %834 = vmatmul.mubr.bf16.gmra.mrb[0].mxu0 %v768
  %v835 = vpop.f32.mrb[0].mxu0
  %v836 = vadd.f32 0.0, %v835
  %v837 = vpop.f32.mrb[0].mxu0
  %v838 = vpop.f32.mrb[0].mxu0
  %v839 = vadd.f32 0.0, %v838
  %v840 = vpop.f32.mrb[0].mxu0
  %841 = vmatprep.mubr.bf16.mxu0 0
  %842 = vmatmul.mubr.bf16.gmra.mrb[0].mxu0 %v771
  %v843 = vpop.f32.mrb[0].mxu0
  %v844 = vadd.f32 0.0, %v843
  %v845 = vpop.f32.mrb[0].mxu0
  %v846 = vpop.f32.mrb[0].mxu0
  %v847 = vadd.f32 0.0, %v846
  %v848 = vpop.f32.mrb[0].mxu0
  %849 = vmatprep.mubr.bf16.mxu0 0
  %850 = vmatmul.mubr.bf16.gmra.mrb[0].mxu0 %v774
  %v851 = vpop.f32.mrb[0].mxu0
  %v852 = vadd.f32 0.0, %v851
  %v853 = vpop.f32.mrb[0].mxu0
  %v854 = vpop.f32.mrb[0].mxu0
  %v855 = vadd.f32 0.0, %v854
  %v856 = vpop.f32.mrb[0].mxu0
  %857 = vmatprep.mubr.bf16.mxu0 0
  %858 = vmatmul.mubr.bf16.gmra.mrb[0].mxu0 %v777
  %v859 = vpop.f32.mrb[0].mxu0
  %v860 = vadd.f32 0.0, %v859
  %v861 = vpop.f32.mrb[0].mxu0
  %v862 = vpop.f32.mrb[0].mxu0
  %v863 = vadd.f32 0.0, %v862
  %v864 = vpop.f32.mrb[0].mxu0
  %865 = vmatprep.mubr.bf16.mxu0 0
  %866 = vmatmul.mubr.bf16.gmra.mrb[0].mxu0 %v780
  %v867 = vpop.f32.mrb[0].mxu0
  %v868 = vadd.f32 0.0, %v867
  %v869 = vpop.f32.mrb[0].mxu0
  %v870 = vpop.f32.mrb[0].mxu0
  %v871 = vadd.f32 0.0, %v870
  %v872 = vpop.f32.mrb[0].mxu0
  %873 = vmatprep.mubr.bf16.mxu0 0
  %874 = vmatmul.mubr.bf16.gmra.mrb[0].mxu0 %v783
  %v875 = vpop.f32.mrb[0].mxu0
  %v876 = vadd.f32 0.0, %v875
  %v877 = vpop.f32.mrb[0].mxu0
  %v878 = vpop.f32.mrb[0].mxu0
  %v879 = vadd.f32 0.0, %v878
  %v880 = vpop.f32.mrb[0].mxu0
  %881 = vdwg.mxu0
  %v883 = vsel %vm39, %v729, 0
  %v886 = vsel %vm39, %v730, 0
  %v889 = vsel %vm39, %v731, 0
  %v892 = vsel %vm39, %v732, 0
  %v895 = vsel %vm39, %v733, 0
  %v898 = vsel %vm39, %v734, 0
  %v901 = vsel %vm39, %v735, 0
  %v904 = vsel %vm39, %v736, 0
  %906 = vmatprep.subr.bf16.mxu0 0
  %907 = vmatpush1.bf16.msra.mxu0 %v366
  %908 = vmatprep.subr.bf16.mxu0 0
  %909 = vmatpush1.bf16.msra.mxu0 %v367
  %910 = vmatprep.subr.bf16.mxu0 0
  %911 = vmatpush1.bf16.msra.mxu0 %v368
  %912 = vmatprep.subr.bf16.mxu0 0
  %913 = vmatpush1.bf16.msra.mxu0 %v369
  %914 = vmatprep.subr.bf16.mxu0 0
  %915 = vmatpush1.bf16.msra.mxu0 0
  %916 = vmatprep.subr.bf16.mxu0 0
  %917 = vmatpush1.bf16.msra.mxu0 0
  %918 = vmatprep.subr.bf16.mxu0 0
  %919 = vmatpush1.bf16.msra.mxu0 0
  %920 = vmatprep.subr.bf16.mxu0 0
  %921 = vmatpush1.bf16.msra.mxu0 0
  %922 = vmatprep.subr.bf16.mxu0 0
  %923 = vmatpush1.bf16.msra.mxu0 0
  %924 = vmatprep.subr.bf16.mxu0 0
  %925 = vmatpush1.bf16.msra.mxu0 0
  %926 = vmatprep.subr.bf16.mxu0 0
  %927 = vmatpush1.bf16.msra.mxu0 0
  %928 = vmatprep.subr.bf16.mxu0 0
  %929 = vmatpush1.bf16.msra.mxu0 0
  %930 = vmatprep.subr.bf16.mxu0 0
  %931 = vmatpush1.bf16.msra.mxu0 0
  %932 = vmatprep.subr.bf16.mxu0 0
  %933 = vmatpush1.bf16.msra.mxu0 0
  %934 = vmatprep.subr.bf16.mxu0 0
  %935 = vmatpush1.bf16.msra.mxu0 0
  %936 = vmatprep.subr.bf16.mxu0 0
  %937 = vmatpush1.bf16.msra.mxu0 0
  %938 = vmatprep.mubr.bf16.mxu0 0
  %939 = vmatmul.mubr.bf16.gmra.mrb[0].mxu0 %v883
  %v940 = vpop.f32.mrb[0].mxu0
  %v941 = vadd.f32 %v820, %v940
  %v942 = vpop.f32.mrb[0].mxu0
  %v943 = vpop.f32.mrb[0].mxu0
  %v944 = vadd.f32 %v823, %v943
  %v945 = vpop.f32.mrb[0].mxu0
  %946 = vmatprep.mubr.bf16.mxu0 0
  %947 = vmatmul.mubr.bf16.gmra.mrb[0].mxu0 %v886
  %v948 = vpop.f32.mrb[0].mxu0
  %v949 = vadd.f32 %v828, %v948
  %v950 = vpop.f32.mrb[0].mxu0
  %v951 = vpop.f32.mrb[0].mxu0
  %v952 = vadd.f32 %v831, %v951
  %v953 = vpop.f32.mrb[0].mxu0
  %954 = vmatprep.mubr.bf16.mxu0 0
  %955 = vmatmul.mubr.bf16.gmra.mrb[0].mxu0 %v889
  %v956 = vpop.f32.mrb[0].mxu0
  %v957 = vadd.f32 %v836, %v956
  %v958 = vpop.f32.mrb[0].mxu0
  %v959 = vpop.f32.mrb[0].mxu0
  %v960 = vadd.f32 %v839, %v959
  %v961 = vpop.f32.mrb[0].mxu0
  %962 = vmatprep.mubr.bf16.mxu0 0
  %963 = vmatmul.mubr.bf16.gmra.mrb[0].mxu0 %v892
  %v964 = vpop.f32.mrb[0].mxu0
  %v965 = vadd.f32 %v844, %v964
  %v966 = vpop.f32.mrb[0].mxu0
  %v967 = vpop.f32.mrb[0].mxu0
  %v968 = vadd.f32 %v847, %v967
  %v969 = vpop.f32.mrb[0].mxu0
  %970 = vmatprep.mubr.bf16.mxu0 0
  %971 = vmatmul.mubr.bf16.gmra.mrb[0].mxu0 %v895
  %v972 = vpop.f32.mrb[0].mxu0
  %v973 = vadd.f32 %v852, %v972
  %v974 = vpop.f32.mrb[0].mxu0
  %v975 = vpop.f32.mrb[0].mxu0
  %v976 = vadd.f32 %v855, %v975
  %v977 = vpop.f32.mrb[0].mxu0
  %978 = vmatprep.mubr.bf16.mxu0 0
  %979 = vmatmul.mubr.bf16.gmra.mrb[0].mxu0 %v898
  %v980 = vpop.f32.mrb[0].mxu0
  %v981 = vadd.f32 %v860, %v980
  %v982 = vpop.f32.mrb[0].mxu0
  %v983 = vpop.f32.mrb[0].mxu0
  %v984 = vadd.f32 %v863, %v983
  %v985 = vpop.f32.mrb[0].mxu0
  %986 = vmatprep.mubr.bf16.mxu0 0
  %987 = vmatmul.mubr.bf16.gmra.mrb[0].mxu0 %v901
  %v988 = vpop.f32.mrb[0].mxu0
  %v989 = vadd.f32 %v868, %v988
  %v990 = vpop.f32.mrb[0].mxu0
  %v991 = vpop.f32.mrb[0].mxu0
  %v992 = vadd.f32 %v871, %v991
  %v993 = vpop.f32.mrb[0].mxu0
  %994 = vmatprep.mubr.bf16.mxu0 0
  %995 = vmatmul.mubr.bf16.gmra.mrb[0].mxu0 %v904
  %v996 = vpop.f32.mrb[0].mxu0
  %v997 = vadd.f32 %v876, %v996
  %v998 = vpop.f32.mrb[0].mxu0
  %v999 = vpop.f32.mrb[0].mxu0
  %v1000 = vadd.f32 %v879, %v999
  %v1001 = vpop.f32.mrb[0].mxu0
  %1002 = vdwg.mxu0
  %v1003 = vld [vmem:[%s712 + $0x9] sm:$0xff]
  %v1004 = vld [vmem:[%s712 + $0x11] sm:$0xff]
  %v1005 = vld [vmem:[%s712 + $0x19] sm:$0xff]
  %v1006 = vld [vmem:[%s712 + $0x21] sm:$0xff]
  %v1007 = vld [vmem:[%s712 + $0x29] sm:$0xff]
  %v1008 = vld [vmem:[%s712 + $0x31] sm:$0xff]
  %v1009 = vld [vmem:[%s712 + $0x39] sm:$0xff]
  %v1010 = vld [vmem:[%s712 + $0x41] sm:$0xff]
  %v1011 = vld [vmem:[%s712 + $0x49] sm:$0xff]
  %v1012 = vld [vmem:[%s712 + $0x51] sm:$0xff]
  %v1013 = vld [vmem:[%s712 + $0x59] sm:$0xff]
  %v1014 = vld [vmem:[%s712 + $0x61] sm:$0xff]
  %v1015 = vld [vmem:[%s712 + $0x69] sm:$0xff]
  %v1016 = vld [vmem:[%s712 + $0x71] sm:$0xff]
  %v1017 = vld [vmem:[%s712 + $0x79] sm:$0xff]
  %v1018 = vld [vmem:[%s712 + $0x81] sm:$0xff]
  %v1019 = vpack.c.bf16 %v1004, %v1003
  %v1020 = vpack.c.bf16 %v1006, %v1005
  %v1021 = vpack.c.bf16 %v1008, %v1007
  %v1022 = vpack.c.bf16 %v1010, %v1009
  %v1023 = vpack.c.bf16 %v1012, %v1011
  %v1024 = vpack.c.bf16 %v1014, %v1013
  %v1025 = vpack.c.bf16 %v1016, %v1015
  %v1026 = vpack.c.bf16 %v1018, %v1017
  %v1028 = vsel %vm39, %v1019, 0
  %v1031 = vsel %vm39, %v1020, 0
  %v1034 = vsel %vm39, %v1021, 0
  %v1037 = vsel %vm39, %v1022, 0
  %v1040 = vsel %vm39, %v1023, 0
  %v1043 = vsel %vm39, %v1024, 0
  %v1046 = vsel %vm39, %v1025, 0
  %v1049 = vsel %vm39, %v1026, 0
  %1051 = vmatprep.subr.bf16.mxu0 0
  %1052 = vmatpush1.bf16.msra.mxu0 %v544
  %1053 = vmatprep.subr.bf16.mxu0 0
  %1054 = vmatpush1.bf16.msra.mxu0 %v545
  %1055 = vmatprep.subr.bf16.mxu0 0
  %1056 = vmatpush1.bf16.msra.mxu0 %v546
  %1057 = vmatprep.subr.bf16.mxu0 0
  %1058 = vmatpush1.bf16.msra.mxu0 %v547
  %1059 = vmatprep.subr.bf16.mxu0 0
  %1060 = vmatpush1.bf16.msra.mxu0 0
  %1061 = vmatprep.subr.bf16.mxu0 0
  %1062 = vmatpush1.bf16.msra.mxu0 0
  %1063 = vmatprep.subr.bf16.mxu0 0
  %1064 = vmatpush1.bf16.msra.mxu0 0
  %1065 = vmatprep.subr.bf16.mxu0 0
  %1066 = vmatpush1.bf16.msra.mxu0 0
  %1067 = vmatprep.subr.bf16.mxu0 0
  %1068 = vmatpush1.bf16.msra.mxu0 0
  %1069 = vmatprep.subr.bf16.mxu0 0
  %1070 = vmatpush1.bf16.msra.mxu0 0
  %1071 = vmatprep.subr.bf16.mxu0 0
  %1072 = vmatpush1.bf16.msra.mxu0 0
  %1073 = vmatprep.subr.bf16.mxu0 0
  %1074 = vmatpush1.bf16.msra.mxu0 0
  %1075 = vmatprep.subr.bf16.mxu0 0
  %1076 = vmatpush1.bf16.msra.mxu0 0
  %1077 = vmatprep.subr.bf16.mxu0 0
  %1078 = vmatpush1.bf16.msra.mxu0 0
  %1079 = vmatprep.subr.bf16.mxu0 0
  %1080 = vmatpush1.bf16.msra.mxu0 0
  %1081 = vmatprep.subr.bf16.mxu0 0
  %1082 = vmatpush1.bf16.msra.mxu0 0
  %1083 = vmatprep.mubr.bf16.mxu0 0
  %1084 = vmatmul.mubr.bf16.gmra.mrb[0].mxu0 %v1028
  %v1085 = vpop.f32.mrb[0].mxu0
  %v1086 = vadd.f32 0.0, %v1085
  %v1087 = vpop.f32.mrb[0].mxu0
  %v1088 = vpop.f32.mrb[0].mxu0
  %v1089 = vadd.f32 0.0, %v1088
  %v1090 = vpop.f32.mrb[0].mxu0
  %1091 = vmatprep.mubr.bf16.mxu0 0
  %1092 = vmatmul.mubr.bf16.gmra.mrb[0].mxu0 %v1031
  %v1093 = vpop.f32.mrb[0].mxu0
  %v1094 = vadd.f32 0.0, %v1093
  %v1095 = vpop.f32.mrb[0].mxu0
  %v1096 = vpop.f32.mrb[0].mxu0
  %v1097 = vadd.f32 0.0, %v1096
  %v1098 = vpop.f32.mrb[0].mxu0
  %1099 = vmatprep.mubr.bf16.mxu0 0
  %1100 = vmatmul.mubr.bf16.gmra.mrb[0].mxu0 %v1034
  %v1101 = vpop.f32.mrb[0].mxu0
  %v1102 = vadd.f32 0.0, %v1101
  %v1103 = vpop.f32.mrb[0].mxu0
  %v1104 = vpop.f32.mrb[0].mxu0
  %v1105 = vadd.f32 0.0, %v1104
  %v1106 = vpop.f32.mrb[0].mxu0
  %1107 = vmatprep.mubr.bf16.mxu0 0
  %1108 = vmatmul.mubr.bf16.gmra.mrb[0].mxu0 %v1037
  %v1109 = vpop.f32.mrb[0].mxu0
  %v1110 = vadd.f32 0.0, %v1109
  %v1111 = vpop.f32.mrb[0].mxu0
  %v1112 = vpop.f32.mrb[0].mxu0
  %v1113 = vadd.f32 0.0, %v1112
  %v1114 = vpop.f32.mrb[0].mxu0
  %1115 = vmatprep.mubr.bf16.mxu0 0
  %1116 = vmatmul.mubr.bf16.gmra.mrb[0].mxu0 %v1040
  %v1117 = vpop.f32.mrb[0].mxu0
  %v1118 = vadd.f32 0.0, %v1117
  %v1119 = vpop.f32.mrb[0].mxu0
  %v1120 = vpop.f32.mrb[0].mxu0
  %v1121 = vadd.f32 0.0, %v1120
  %v1122 = vpop.f32.mrb[0].mxu0
  %1123 = vmatprep.mubr.bf16.mxu0 0
  %1124 = vmatmul.mubr.bf16.gmra.mrb[0].mxu0 %v1043
  %v1125 = vpop.f32.mrb[0].mxu0
  %v1126 = vadd.f32 0.0, %v1125
  %v1127 = vpop.f32.mrb[0].mxu0
  %v1128 = vpop.f32.mrb[0].mxu0
  %v1129 = vadd.f32 0.0, %v1128
  %v1130 = vpop.f32.mrb[0].mxu0
  %1131 = vmatprep.mubr.bf16.mxu0 0
  %1132 = vmatmul.mubr.bf16.gmra.mrb[0].mxu0 %v1046
  %v1133 = vpop.f32.mrb[0].mxu0
  %v1134 = vadd.f32 0.0, %v1133
  %v1135 = vpop.f32.mrb[0].mxu0
  %v1136 = vpop.f32.mrb[0].mxu0
  %v1137 = vadd.f32 0.0, %v1136
  %v1138 = vpop.f32.mrb[0].mxu0
  %1139 = vmatprep.mubr.bf16.mxu0 0
  %1140 = vmatmul.mubr.bf16.gmra.mrb[0].mxu0 %v1049
  %v1141 = vpop.f32.mrb[0].mxu0
  %v1142 = vadd.f32 0.0, %v1141
  %v1143 = vpop.f32.mrb[0].mxu0
  %v1144 = vpop.f32.mrb[0].mxu0
  %v1145 = vadd.f32 0.0, %v1144
  %v1146 = vpop.f32.mrb[0].mxu0
  %1147 = vdwg.mxu0
  %v1148 = vadd.f32 %v941, %v1086
  %v1149 = vadd.f32 %v944, %v1089
  %v1150 = vadd.f32 %v949, %v1094
  %v1151 = vadd.f32 %v952, %v1097
  %v1152 = vadd.f32 %v957, %v1102
  %v1153 = vadd.f32 %v960, %v1105
  %v1154 = vadd.f32 %v965, %v1110
  %v1155 = vadd.f32 %v968, %v1113
  %v1156 = vadd.f32 %v973, %v1118
  %v1157 = vadd.f32 %v976, %v1121
  %v1158 = vadd.f32 %v981, %v1126
  %v1159 = vadd.f32 %v984, %v1129
  %v1160 = vadd.f32 %v989, %v1134
  %v1161 = vadd.f32 %v992, %v1137
  %v1162 = vadd.f32 %v997, %v1142
  %v1163 = vadd.f32 %v1000, %v1145
  %v1164 = vadd.f32 %v1148, %v694
  %v1165 = vadd.f32 %v1149, %v694
  %v1166 = vadd.f32 %v1150, %v694
  %v1167 = vadd.f32 %v1151, %v694
  %v1168 = vadd.f32 %v1152, %v694
  %v1169 = vadd.f32 %v1153, %v694
  %v1170 = vadd.f32 %v1154, %v694
  %v1171 = vadd.f32 %v1155, %v694
  %v1172 = vadd.f32 %v1156, %v694
  %v1173 = vadd.f32 %v1157, %v694
  %v1174 = vadd.f32 %v1158, %v694
  %v1175 = vadd.f32 %v1159, %v694
  %v1176 = vadd.f32 %v1160, %v694
  %v1177 = vadd.f32 %v1161, %v694
  %v1178 = vadd.f32 %v1162, %v694
  %v1179 = vadd.f32 %v1163, %v694
  %v1180 = vadd.f32 %v696, %v697
  %v1181 = vadd.f32 %v1180, %v698
  %v1182 = vadd.f32 %v1181, %v699
  %v1183 = vadd.f32 %v1182, %v700
  %v1184 = vadd.f32 %v1183, %v701
  %v1185 = vadd.f32 %v1184, %v702
  %v1186 = vadd.f32 %v1185, %v703
  %v1187 = vadd.f32 %v1186, %v704
  %v1188 = vadd.f32 %v1187, %v705
  %v1189 = vadd.f32 %v1188, %v706
  %v1190 = vadd.f32 %v1189, %v707
  %v1191 = vadd.f32 %v1190, %v708
  %v1192 = vadd.f32 %v1191, %v709
  %v1193 = vadd.f32 %v1192, %v710
  %v1194 = vadd.f32 %v1193, %v711
  %v1195 = vrot.slane %v1194, 4
  %v1196 = vadd.f32 %v1194, %v1195
  %v1197 = vrot.slane %v1196, 2
  %v1198 = vadd.f32 %v1196, %v1197
  %v1199 = vrot.slane %v1198, 1
  %v1200 = vadd.f32 %v1198, %v1199
  %v1201 = vadd.f32 %v1200, 0.0
  %v1202 = vadd.f32 %v1164, %v1165
  %v1203 = vadd.f32 %v1202, %v1166
  %v1204 = vadd.f32 %v1203, %v1167
  %v1205 = vadd.f32 %v1204, %v1168
  %v1206 = vadd.f32 %v1205, %v1169
  %v1207 = vadd.f32 %v1206, %v1170
  %v1208 = vadd.f32 %v1207, %v1171
  %v1209 = vadd.f32 %v1208, %v1172
  %v1210 = vadd.f32 %v1209, %v1173
  %v1211 = vadd.f32 %v1210, %v1174
  %v1212 = vadd.f32 %v1211, %v1175
  %v1213 = vadd.f32 %v1212, %v1176
  %v1214 = vadd.f32 %v1213, %v1177
  %v1215 = vadd.f32 %v1214, %v1178
  %v1216 = vadd.f32 %v1215, %v1179
  %v1217 = vrot.slane %v1216, 4
  %v1218 = vadd.f32 %v1216, %v1217
  %v1219 = vrot.slane %v1218, 2
  %v1220 = vadd.f32 %v1218, %v1219
  %v1221 = vrot.slane %v1220, 1
  %v1222 = vadd.f32 %v1220, %v1221
  %v1223 = vadd.f32 %v1201, %v1222
  %v1224 = vmul.f32 %v696, %v696
  %v1225 = vmul.f32 %v697, %v697
  %v1226 = vmul.f32 %v698, %v698
  %v1227 = vmul.f32 %v699, %v699
  %v1228 = vmul.f32 %v700, %v700
  %v1229 = vmul.f32 %v701, %v701
  %v1230 = vmul.f32 %v702, %v702
  %v1231 = vmul.f32 %v703, %v703
  %v1232 = vmul.f32 %v704, %v704
  %v1233 = vmul.f32 %v705, %v705
  %v1234 = vmul.f32 %v706, %v706
  %v1235 = vmul.f32 %v707, %v707
  %v1236 = vmul.f32 %v708, %v708
  %v1237 = vmul.f32 %v709, %v709
  %v1238 = vmul.f32 %v710, %v710
  %v1239 = vmul.f32 %v711, %v711
  %v1240 = vadd.f32 %v1224, %v1225
  %v1241 = vadd.f32 %v1240, %v1226
  %v1242 = vadd.f32 %v1241, %v1227
  %v1243 = vadd.f32 %v1242, %v1228
  %v1244 = vadd.f32 %v1243, %v1229
  %v1245 = vadd.f32 %v1244, %v1230
  %v1246 = vadd.f32 %v1245, %v1231
  %v1247 = vadd.f32 %v1246, %v1232
  %v1248 = vadd.f32 %v1247, %v1233
  %v1249 = vadd.f32 %v1248, %v1234
  %v1250 = vadd.f32 %v1249, %v1235
  %v1251 = vadd.f32 %v1250, %v1236
  %v1252 = vadd.f32 %v1251, %v1237
  %v1253 = vadd.f32 %v1252, %v1238
  %v1254 = vadd.f32 %v1253, %v1239
  %v1255 = vrot.slane %v1254, 4
  %v1256 = vadd.f32 %v1254, %v1255
  %v1257 = vrot.slane %v1256, 2
  %v1258 = vadd.f32 %v1256, %v1257
  %v1259 = vrot.slane %v1258, 1
  %v1260 = vadd.f32 %v1258, %v1259
  %v1261 = vadd.f32 %v1260, 0.0
  %v1262 = vmul.f32 %v1164, %v1164
  %v1263 = vmul.f32 %v1165, %v1165
  %v1264 = vmul.f32 %v1166, %v1166
  %v1265 = vmul.f32 %v1167, %v1167
  %v1266 = vmul.f32 %v1168, %v1168
  %v1267 = vmul.f32 %v1169, %v1169
  %v1268 = vmul.f32 %v1170, %v1170
  %v1269 = vmul.f32 %v1171, %v1171
  %v1270 = vmul.f32 %v1172, %v1172
  %v1271 = vmul.f32 %v1173, %v1173
  %v1272 = vmul.f32 %v1174, %v1174
  %v1273 = vmul.f32 %v1175, %v1175
  %v1274 = vmul.f32 %v1176, %v1176
  %v1275 = vmul.f32 %v1177, %v1177
  %v1276 = vmul.f32 %v1178, %v1178
  %v1277 = vmul.f32 %v1179, %v1179
  %v1278 = vadd.f32 %v1262, %v1263
  %v1279 = vadd.f32 %v1278, %v1264
  %v1280 = vadd.f32 %v1279, %v1265
  %v1281 = vadd.f32 %v1280, %v1266
  %v1282 = vadd.f32 %v1281, %v1267
  %v1283 = vadd.f32 %v1282, %v1268
  %v1284 = vadd.f32 %v1283, %v1269
  %v1285 = vadd.f32 %v1284, %v1270
  %v1286 = vadd.f32 %v1285, %v1271
  %v1287 = vadd.f32 %v1286, %v1272
  %v1288 = vadd.f32 %v1287, %v1273
  %v1289 = vadd.f32 %v1288, %v1274
  %v1290 = vadd.f32 %v1289, %v1275
  %v1291 = vadd.f32 %v1290, %v1276
  %v1292 = vadd.f32 %v1291, %v1277
  %v1293 = vrot.slane %v1292, 4
  %v1294 = vadd.f32 %v1292, %v1293
  %v1295 = vrot.slane %v1294, 2
  %v1296 = vadd.f32 %v1294, %v1295
  %v1297 = vrot.slane %v1296, 1
  %v1298 = vadd.f32 %v1296, %v1297
  %v1299 = vadd.f32 %v1261, %v1298
  %v1300 = vmul.f32 %v1223, 0.00390625
  %v1301 = vmul.f32 %v1299, 0.00390625
  %v1302 = vmul.f32 %v1300, %v1300
  %v1303 = vsub.f32 %v1301, %v1302
  %v1304 = vld [vmem:[%s3] sm:$0x1]
  %v1305 = vadd.f32 %v1303, 1e-05
  %v1306 = vrsqrt.pop %v1305
  %v1307 = vmul.f32 %v1304, %v1306
  %v1308 = vld [vmem:[%s4] sm:$0x1]
  %v1309 = vmul.f32 %v1300, %v1307
  %v1310 = vsub.f32 %v1308, %v1309
  %v1312 = vlaneseq
  %v1313 = vshrl.u32 %v1312, 7
  %v1314 = vsub.s32 0, %v1313
  %v1315 = vrot.slane %v1307, %v1314
  %v1317 = vmul.f32 %v696, %v1315
  %v1318 = vmul.f32 %v697, %v1315
  %v1319 = vmul.f32 %v698, %v1315
  %v1320 = vmul.f32 %v699, %v1315
  %v1321 = vmul.f32 %v700, %v1315
  %v1322 = vmul.f32 %v701, %v1315
  %v1323 = vmul.f32 %v702, %v1315
  %v1324 = vmul.f32 %v703, %v1315
  %v1325 = vmul.f32 %v704, %v1315
  %v1326 = vmul.f32 %v705, %v1315
  %v1327 = vmul.f32 %v706, %v1315
  %v1328 = vmul.f32 %v707, %v1315
  %v1329 = vmul.f32 %v708, %v1315
  %v1330 = vmul.f32 %v709, %v1315
  %v1331 = vmul.f32 %v710, %v1315
  %v1332 = vmul.f32 %v711, %v1315
  %v1334 = vlaneseq
  %v1335 = vshrl.u32 %v1334, 7
  %v1336 = vsub.s32 0, %v1335
  %v1337 = vrot.slane %v1310, %v1336
  %v1339 = vadd.f32 %v1317, %v1337
  %v1340 = vadd.f32 %v1318, %v1337
  %v1341 = vadd.f32 %v1319, %v1337
  %v1342 = vadd.f32 %v1320, %v1337
  %v1343 = vadd.f32 %v1321, %v1337
  %v1344 = vadd.f32 %v1322, %v1337
  %v1345 = vadd.f32 %v1323, %v1337
  %v1346 = vadd.f32 %v1324, %v1337
  %v1347 = vadd.f32 %v1325, %v1337
  %v1348 = vadd.f32 %v1326, %v1337
  %v1349 = vadd.f32 %v1327, %v1337
  %v1350 = vadd.f32 %v1328, %v1337
  %v1351 = vadd.f32 %v1329, %v1337
  %v1352 = vadd.f32 %v1330, %v1337
  %v1353 = vadd.f32 %v1331, %v1337
  %v1354 = vadd.f32 %v1332, %v1337
  %vm1355 = vcmp.ge.f32.partialorder %v1339, 0.0
  %vm1356 = vcmp.ge.f32.partialorder %v1340, 0.0
  %vm1357 = vcmp.ge.f32.partialorder %v1341, 0.0
  %vm1358 = vcmp.ge.f32.partialorder %v1342, 0.0
  %vm1359 = vcmp.ge.f32.partialorder %v1343, 0.0
  %vm1360 = vcmp.ge.f32.partialorder %v1344, 0.0
  %vm1361 = vcmp.ge.f32.partialorder %v1345, 0.0
  %vm1362 = vcmp.ge.f32.partialorder %v1346, 0.0
  %vm1363 = vcmp.ge.f32.partialorder %v1347, 0.0
  %vm1364 = vcmp.ge.f32.partialorder %v1348, 0.0
  %vm1365 = vcmp.ge.f32.partialorder %v1349, 0.0
  %vm1366 = vcmp.ge.f32.partialorder %v1350, 0.0
  %vm1367 = vcmp.ge.f32.partialorder %v1351, 0.0
  %vm1368 = vcmp.ge.f32.partialorder %v1352, 0.0
  %vm1369 = vcmp.ge.f32.partialorder %v1353, 0.0
  %vm1370 = vcmp.ge.f32.partialorder %v1354, 0.0
  %v1371 = vmul.f32 %v1339, 0.01
  %v1372 = vmul.f32 %v1340, 0.01
  %v1373 = vmul.f32 %v1341, 0.01
  %v1374 = vmul.f32 %v1342, 0.01
  %v1375 = vmul.f32 %v1343, 0.01
  %v1376 = vmul.f32 %v1344, 0.01
  %v1377 = vmul.f32 %v1345, 0.01
  %v1378 = vmul.f32 %v1346, 0.01
  %v1379 = vmul.f32 %v1347, 0.01
  %v1380 = vmul.f32 %v1348, 0.01
  %v1381 = vmul.f32 %v1349, 0.01
  %v1382 = vmul.f32 %v1350, 0.01
  %v1383 = vmul.f32 %v1351, 0.01
  %v1384 = vmul.f32 %v1352, 0.01
  %v1385 = vmul.f32 %v1353, 0.01
  %v1386 = vmul.f32 %v1354, 0.01
  %v1387 = vsel %vm1355, %v1339, %v1371
  %v1388 = vsel %vm1356, %v1340, %v1372
  %v1389 = vsel %vm1357, %v1341, %v1373
  %v1390 = vsel %vm1358, %v1342, %v1374
  %v1391 = vsel %vm1359, %v1343, %v1375
  %v1392 = vsel %vm1360, %v1344, %v1376
  %v1393 = vsel %vm1361, %v1345, %v1377
  %v1394 = vsel %vm1362, %v1346, %v1378
  %v1395 = vsel %vm1363, %v1347, %v1379
  %v1396 = vsel %vm1364, %v1348, %v1380
  %v1397 = vsel %vm1365, %v1349, %v1381
  %v1398 = vsel %vm1366, %v1350, %v1382
  %v1399 = vsel %vm1367, %v1351, %v1383
  %v1400 = vsel %vm1368, %v1352, %v1384
  %v1401 = vsel %vm1369, %v1353, %v1385
  %v1402 = vsel %vm1370, %v1354, %v1386
  %v1403 = vmul.f32 %v1164, %v1315
  %v1404 = vmul.f32 %v1165, %v1315
  %v1405 = vmul.f32 %v1166, %v1315
  %v1406 = vmul.f32 %v1167, %v1315
  %v1407 = vmul.f32 %v1168, %v1315
  %v1408 = vmul.f32 %v1169, %v1315
  %v1409 = vmul.f32 %v1170, %v1315
  %v1410 = vmul.f32 %v1171, %v1315
  %v1411 = vmul.f32 %v1172, %v1315
  %v1412 = vmul.f32 %v1173, %v1315
  %v1413 = vmul.f32 %v1174, %v1315
  %v1414 = vmul.f32 %v1175, %v1315
  %v1415 = vmul.f32 %v1176, %v1315
  %v1416 = vmul.f32 %v1177, %v1315
  %v1417 = vmul.f32 %v1178, %v1315
  %v1418 = vmul.f32 %v1179, %v1315
  %v1419 = vadd.f32 %v1403, %v1337
  %v1420 = vadd.f32 %v1404, %v1337
  %v1421 = vadd.f32 %v1405, %v1337
  %v1422 = vadd.f32 %v1406, %v1337
  %v1423 = vadd.f32 %v1407, %v1337
  %v1424 = vadd.f32 %v1408, %v1337
  %v1425 = vadd.f32 %v1409, %v1337
  %v1426 = vadd.f32 %v1410, %v1337
  %v1427 = vadd.f32 %v1411, %v1337
  %v1428 = vadd.f32 %v1412, %v1337
  %v1429 = vadd.f32 %v1413, %v1337
  %v1430 = vadd.f32 %v1414, %v1337
  %v1431 = vadd.f32 %v1415, %v1337
  %v1432 = vadd.f32 %v1416, %v1337
  %v1433 = vadd.f32 %v1417, %v1337
  %v1434 = vadd.f32 %v1418, %v1337
  %vm1435 = vcmp.ge.f32.partialorder %v1419, 0.0
  %vm1436 = vcmp.ge.f32.partialorder %v1420, 0.0
  %vm1437 = vcmp.ge.f32.partialorder %v1421, 0.0
  %vm1438 = vcmp.ge.f32.partialorder %v1422, 0.0
  %vm1439 = vcmp.ge.f32.partialorder %v1423, 0.0
  %vm1440 = vcmp.ge.f32.partialorder %v1424, 0.0
  %vm1441 = vcmp.ge.f32.partialorder %v1425, 0.0
  %vm1442 = vcmp.ge.f32.partialorder %v1426, 0.0
  %vm1443 = vcmp.ge.f32.partialorder %v1427, 0.0
  %vm1444 = vcmp.ge.f32.partialorder %v1428, 0.0
  %vm1445 = vcmp.ge.f32.partialorder %v1429, 0.0
  %vm1446 = vcmp.ge.f32.partialorder %v1430, 0.0
  %vm1447 = vcmp.ge.f32.partialorder %v1431, 0.0
  %vm1448 = vcmp.ge.f32.partialorder %v1432, 0.0
  %vm1449 = vcmp.ge.f32.partialorder %v1433, 0.0
  %vm1450 = vcmp.ge.f32.partialorder %v1434, 0.0
  %v1451 = vmul.f32 %v1419, 0.01
  %v1452 = vmul.f32 %v1420, 0.01
  %v1453 = vmul.f32 %v1421, 0.01
  %v1454 = vmul.f32 %v1422, 0.01
  %v1455 = vmul.f32 %v1423, 0.01
  %v1456 = vmul.f32 %v1424, 0.01
  %v1457 = vmul.f32 %v1425, 0.01
  %v1458 = vmul.f32 %v1426, 0.01
  %v1459 = vmul.f32 %v1427, 0.01
  %v1460 = vmul.f32 %v1428, 0.01
  %v1461 = vmul.f32 %v1429, 0.01
  %v1462 = vmul.f32 %v1430, 0.01
  %v1463 = vmul.f32 %v1431, 0.01
  %v1464 = vmul.f32 %v1432, 0.01
  %v1465 = vmul.f32 %v1433, 0.01
  %v1466 = vmul.f32 %v1434, 0.01
  %v1467 = vsel %vm1435, %v1419, %v1451
  %v1468 = vsel %vm1436, %v1420, %v1452
  %v1469 = vsel %vm1437, %v1421, %v1453
  %v1470 = vsel %vm1438, %v1422, %v1454
  %v1471 = vsel %vm1439, %v1423, %v1455
  %v1472 = vsel %vm1440, %v1424, %v1456
  %v1473 = vsel %vm1441, %v1425, %v1457
  %v1474 = vsel %vm1442, %v1426, %v1458
  %v1475 = vsel %vm1443, %v1427, %v1459
  %v1476 = vsel %vm1444, %v1428, %v1460
  %v1477 = vsel %vm1445, %v1429, %v1461
  %v1478 = vsel %vm1446, %v1430, %v1462
  %v1479 = vsel %vm1447, %v1431, %v1463
  %v1480 = vsel %vm1448, %v1432, %v1464
  %v1481 = vsel %vm1449, %v1433, %v1465
  %v1482 = vsel %vm1450, %v1434, %v1466
  %1483 = vst [vmem:[#allocation3] sm:$0xff] 0.0
  %1484 = vst [vmem:[#allocation3 + $0x8] sm:$0xff] 0.0
  %1485 = vst [vmem:[#allocation3 + $0x10] sm:$0xff] 0.0
  %1486 = vst [vmem:[#allocation3 + $0x18] sm:$0xff] 0.0
  %1487 = vst [vmem:[#allocation3 + $0x20] sm:$0xff] 0.0
  %1488 = vst [vmem:[#allocation3 + $0x28] sm:$0xff] 0.0
  %1489 = vst [vmem:[#allocation3 + $0x30] sm:$0xff] 0.0
  %1490 = vst [vmem:[#allocation3 + $0x38] sm:$0xff] 0.0
  %1491 = vst [vmem:[#allocation3 + $0x40] sm:$0xff] 0.0
  %1492 = vst [vmem:[#allocation3 + $0x48] sm:$0xff] 0.0
  %1493 = vst [vmem:[#allocation3 + $0x50] sm:$0xff] 0.0
  %1494 = vst [vmem:[#allocation3 + $0x58] sm:$0xff] 0.0
  %1495 = vst [vmem:[#allocation3 + $0x60] sm:$0xff] 0.0
  %1496 = vst [vmem:[#allocation3 + $0x68] sm:$0xff] 0.0
  %1497 = vst [vmem:[#allocation3 + $0x70] sm:$0xff] 0.0
  %1498 = vst [vmem:[#allocation3 + $0x78] sm:$0xff] 0.0
  %1499 = vst [vmem:[#allocation3 + $0x80] sm:$0xff] 0.0
  %1500 = vst [vmem:[#allocation3 + $0x88] sm:$0xff] 0.0
  %1501 = vst [vmem:[#allocation3 + $0x90] sm:$0xff] 0.0
  %1502 = vst [vmem:[#allocation3 + $0x98] sm:$0xff] 0.0
  %1503 = vst [vmem:[#allocation3 + $0xa0] sm:$0xff] 0.0
  %1504 = vst [vmem:[#allocation3 + $0xa8] sm:$0xff] 0.0
  %1505 = vst [vmem:[#allocation3 + $0xb0] sm:$0xff] 0.0
  %1506 = vst [vmem:[#allocation3 + $0xb8] sm:$0xff] 0.0
  %1507 = vst [vmem:[#allocation3 + $0xc0] sm:$0xff] 0.0
  %1508 = vst [vmem:[#allocation3 + $0xc8] sm:$0xff] 0.0
  %1509 = vst [vmem:[#allocation3 + $0xd0] sm:$0xff] 0.0
  %1510 = vst [vmem:[#allocation3 + $0xd8] sm:$0xff] 0.0
  %1511 = vst [vmem:[#allocation3 + $0xe0] sm:$0xff] 0.0
  %1512 = vst [vmem:[#allocation3 + $0xe8] sm:$0xff] 0.0
  %1513 = vst [vmem:[#allocation3 + $0xf0] sm:$0xff] 0.0
  %1514 = vst [vmem:[#allocation3 + $0xf8] sm:$0xff] 0.0
  %1515 = vst [vmem:[#allocation3 + $0x100] sm:$0xff] 0.0
  %1516 = vst [vmem:[#allocation3 + $0x108] sm:$0xff] 0.0
  %1517 = vst [vmem:[#allocation3 + $0x110] sm:$0xff] 0.0
  %1518 = vst [vmem:[#allocation3 + $0x118] sm:$0xff] 0.0
  %1519 = vst [vmem:[#allocation3 + $0x8] sm:$0xff] %v1387
  %1520 = vst [vmem:[#allocation3 + $0x10] sm:$0xff] %v1388
  %1521 = vst [vmem:[#allocation3 + $0x18] sm:$0xff] %v1389
  %1522 = vst [vmem:[#allocation3 + $0x20] sm:$0xff] %v1390
  %1523 = vst [vmem:[#allocation3 + $0x28] sm:$0xff] %v1391
  %1524 = vst [vmem:[#allocation3 + $0x30] sm:$0xff] %v1392
  %1525 = vst [vmem:[#allocation3 + $0x38] sm:$0xff] %v1393
  %1526 = vst [vmem:[#allocation3 + $0x40] sm:$0xff] %v1394
  %1527 = vst [vmem:[#allocation3 + $0x48] sm:$0xff] %v1395
  %1528 = vst [vmem:[#allocation3 + $0x50] sm:$0xff] %v1396
  %1529 = vst [vmem:[#allocation3 + $0x58] sm:$0xff] %v1397
  %1530 = vst [vmem:[#allocation3 + $0x60] sm:$0xff] %v1398
  %1531 = vst [vmem:[#allocation3 + $0x68] sm:$0xff] %v1399
  %1532 = vst [vmem:[#allocation3 + $0x70] sm:$0xff] %v1400
  %1533 = vst [vmem:[#allocation3 + $0x78] sm:$0xff] %v1401
  %1534 = vst [vmem:[#allocation3 + $0x80] sm:$0xff] %v1402
  %s1535 = scalar_lea.vmem [#allocation3], 144
  %1536 = vst [vmem:[%s1535 + $0x8] sm:$0xff] %v1467
  %1537 = vst [vmem:[%s1535 + $0x10] sm:$0xff] %v1468
  %1538 = vst [vmem:[%s1535 + $0x18] sm:$0xff] %v1469
  %1539 = vst [vmem:[%s1535 + $0x20] sm:$0xff] %v1470
  %1540 = vst [vmem:[%s1535 + $0x28] sm:$0xff] %v1471
  %1541 = vst [vmem:[%s1535 + $0x30] sm:$0xff] %v1472
  %1542 = vst [vmem:[%s1535 + $0x38] sm:$0xff] %v1473
  %1543 = vst [vmem:[%s1535 + $0x40] sm:$0xff] %v1474
  %1544 = vst [vmem:[%s1535 + $0x48] sm:$0xff] %v1475
  %1545 = vst [vmem:[%s1535 + $0x50] sm:$0xff] %v1476
  %1546 = vst [vmem:[%s1535 + $0x58] sm:$0xff] %v1477
  %1547 = vst [vmem:[%s1535 + $0x60] sm:$0xff] %v1478
  %1548 = vst [vmem:[%s1535 + $0x68] sm:$0xff] %v1479
  %1549 = vst [vmem:[%s1535 + $0x70] sm:$0xff] %v1480
  %1550 = vst [vmem:[%s1535 + $0x78] sm:$0xff] %v1481
  %1551 = vst [vmem:[%s1535 + $0x80] sm:$0xff] %v1482
  %v1552 = vld [vmem:[#allocation3 + $0x7] sm:$0xff]
  %v1553 = vld [vmem:[#allocation3 + $0xf] sm:$0xff]
  %v1554 = vld [vmem:[#allocation3 + $0x17] sm:$0xff]
  %v1555 = vld [vmem:[#allocation3 + $0x1f] sm:$0xff]
  %v1556 = vld [vmem:[#allocation3 + $0x27] sm:$0xff]
  %v1557 = vld [vmem:[#allocation3 + $0x2f] sm:$0xff]
  %v1558 = vld [vmem:[#allocation3 + $0x37] sm:$0xff]
  %v1559 = vld [vmem:[#allocation3 + $0x3f] sm:$0xff]
  %v1560 = vld [vmem:[#allocation3 + $0x47] sm:$0xff]
  %v1561 = vld [vmem:[#allocation3 + $0x4f] sm:$0xff]
  %v1562 = vld [vmem:[#allocation3 + $0x57] sm:$0xff]
  %v1563 = vld [vmem:[#allocation3 + $0x5f] sm:$0xff]
  %v1564 = vld [vmem:[#allocation3 + $0x67] sm:$0xff]
  %v1565 = vld [vmem:[#allocation3 + $0x6f] sm:$0xff]
  %v1566 = vld [vmem:[#allocation3 + $0x77] sm:$0xff]
  %v1567 = vld [vmem:[#allocation3 + $0x7f] sm:$0xff]
  %v1568 = vpack.c.bf16 %v1553, %v1552
  %v1569 = vpack.c.bf16 %v1555, %v1554
  %v1570 = vpack.c.bf16 %v1557, %v1556
  %v1571 = vpack.c.bf16 %v1559, %v1558
  %v1572 = vpack.c.bf16 %v1561, %v1560
  %v1573 = vpack.c.bf16 %v1563, %v1562
  %v1574 = vpack.c.bf16 %v1565, %v1564
  %v1575 = vpack.c.bf16 %v1567, %v1566
  %v1576 = vld [vmem:[%s5] sm:$0xf]
  %v1577 = vld [vmem:[%s5 + $0x4] sm:$0xf]
  %v1578 = vld [vmem:[%s5 + $0x8] sm:$0xf]
  %v1579 = vld [vmem:[%s5 + $0xc] sm:$0xf]
  %v1580 = vld [vmem:[%s5 + $0x10] sm:$0xf]
  %v1581 = vld [vmem:[%s5 + $0x14] sm:$0xf]
  %v1582 = vld [vmem:[%s5 + $0x18] sm:$0xf]
  %v1583 = vld [vmem:[%s5 + $0x1c] sm:$0xf]
  %v1584 = vld [vmem:[%s5 + $0x20] sm:$0xf]
  %v1585 = vld [vmem:[%s5 + $0x24] sm:$0xf]
  %v1586 = vld [vmem:[%s5 + $0x28] sm:$0xf]
  %v1587 = vld [vmem:[%s5 + $0x2c] sm:$0xf]
  %v1588 = vld [vmem:[%s5 + $0x30] sm:$0xf]
  %v1589 = vld [vmem:[%s5 + $0x34] sm:$0xf]
  %v1590 = vld [vmem:[%s5 + $0x38] sm:$0xf]
  %v1591 = vld [vmem:[%s5 + $0x3c] sm:$0xf]
  %v1592 = vld [vmem:[#allocation3 + $0x8] sm:$0xff]
  %v1593 = vld [vmem:[#allocation3 + $0x10] sm:$0xff]
  %v1594 = vld [vmem:[#allocation3 + $0x18] sm:$0xff]
  %v1595 = vld [vmem:[#allocation3 + $0x20] sm:$0xff]
  %v1596 = vld [vmem:[#allocation3 + $0x28] sm:$0xff]
  %v1597 = vld [vmem:[#allocation3 + $0x30] sm:$0xff]
  %v1598 = vld [vmem:[#allocation3 + $0x38] sm:$0xff]
  %v1599 = vld [vmem:[#allocation3 + $0x40] sm:$0xff]
  %v1600 = vld [vmem:[#allocation3 + $0x48] sm:$0xff]
  %v1601 = vld [vmem:[#allocation3 + $0x50] sm:$0xff]
  %v1602 = vld [vmem:[#allocation3 + $0x58] sm:$0xff]
  %v1603 = vld [vmem:[#allocation3 + $0x60] sm:$0xff]
  %v1604 = vld [vmem:[#allocation3 + $0x68] sm:$0xff]
  %v1605 = vld [vmem:[#allocation3 + $0x70] sm:$0xff]
  %v1606 = vld [vmem:[#allocation3 + $0x78] sm:$0xff]
  %v1607 = vld [vmem:[#allocation3 + $0x80] sm:$0xff]
  %v1608 = vpack.c.bf16 %v1593, %v1592
  %v1609 = vpack.c.bf16 %v1595, %v1594
  %v1610 = vpack.c.bf16 %v1597, %v1596
  %v1611 = vpack.c.bf16 %v1599, %v1598
  %v1612 = vpack.c.bf16 %v1601, %v1600
  %v1613 = vpack.c.bf16 %v1603, %v1602
  %v1614 = vpack.c.bf16 %v1605, %v1604
  %v1615 = vpack.c.bf16 %v1607, %v1606
  %s1616 = scalar_lea.vmem %s5, 64
  %v1617 = vld [vmem:[%s1616] sm:$0xf]
  %v1618 = vld [vmem:[%s1616 + $0x4] sm:$0xf]
  %v1619 = vld [vmem:[%s1616 + $0x8] sm:$0xf]
  %v1620 = vld [vmem:[%s1616 + $0xc] sm:$0xf]
  %v1621 = vld [vmem:[%s1616 + $0x10] sm:$0xf]
  %v1622 = vld [vmem:[%s1616 + $0x14] sm:$0xf]
  %v1623 = vld [vmem:[%s1616 + $0x18] sm:$0xf]
  %v1624 = vld [vmem:[%s1616 + $0x1c] sm:$0xf]
  %v1625 = vld [vmem:[%s1616 + $0x20] sm:$0xf]
  %v1626 = vld [vmem:[%s1616 + $0x24] sm:$0xf]
  %v1627 = vld [vmem:[%s1616 + $0x28] sm:$0xf]
  %v1628 = vld [vmem:[%s1616 + $0x2c] sm:$0xf]
  %v1629 = vld [vmem:[%s1616 + $0x30] sm:$0xf]
  %v1630 = vld [vmem:[%s1616 + $0x34] sm:$0xf]
  %v1631 = vld [vmem:[%s1616 + $0x38] sm:$0xf]
  %v1632 = vld [vmem:[%s1616 + $0x3c] sm:$0xf]
  %v1649 = vunpack.c.l.b16 %v1617
  %v1650 = vunpack.c.l.b16 %v1618
  %v1651 = vunpack.c.l.b16 %v1619
  %v1652 = vunpack.c.l.b16 %v1620
  %v1653 = vunpack.c.l.b16 %v1621
  %v1654 = vunpack.c.l.b16 %v1622
  %v1655 = vunpack.c.l.b16 %v1623
  %v1656 = vunpack.c.l.b16 %v1624
  %v1657 = vunpack.c.l.b16 %v1625
  %v1658 = vunpack.c.l.b16 %v1626
  %v1659 = vunpack.c.l.b16 %v1627
  %v1660 = vunpack.c.l.b16 %v1628
  %v1661 = vunpack.c.l.b16 %v1629
  %v1662 = vunpack.c.l.b16 %v1630
  %v1663 = vunpack.c.l.b16 %v1631
  %v1664 = vunpack.c.l.b16 %v1632
  %v1665 = vpack.c.b16 %v1650, %v1649
  %v1666 = vpack.c.b16 %v1652, %v1651
  %v1667 = vpack.c.b16 %v1654, %v1653
  %v1668 = vpack.c.b16 %v1656, %v1655
  %v1669 = vpack.c.b16 %v1658, %v1657
  %v1670 = vpack.c.b16 %v1660, %v1659
  %v1671 = vpack.c.b16 %v1662, %v1661
  %v1672 = vpack.c.b16 %v1664, %v1663
  %1681 = vmatprep.subr.bf16.mxu0 0
  %1682 = vmatpush1.bf16.msra.mxu0 %v1665
  %1683 = vmatprep.subr.bf16.mxu0 0
  %1684 = vmatpush1.bf16.msra.mxu0 %v1666
  %1685 = vmatprep.subr.bf16.mxu0 0
  %1686 = vmatpush1.bf16.msra.mxu0 %v1667
  %1687 = vmatprep.subr.bf16.mxu0 0
  %1688 = vmatpush1.bf16.msra.mxu0 %v1668
  %1689 = vmatprep.subr.bf16.mxu0 0
  %1690 = vmatpush1.bf16.msra.mxu0 %v1669
  %1691 = vmatprep.subr.bf16.mxu0 0
  %1692 = vmatpush1.bf16.msra.mxu0 %v1670
  %1693 = vmatprep.subr.bf16.mxu0 0
  %1694 = vmatpush1.bf16.msra.mxu0 %v1671
  %1695 = vmatprep.subr.bf16.mxu0 0
  %1696 = vmatpush1.bf16.msra.mxu0 %v1672
  %1697 = vmatprep.subr.bf16.mxu0 0
  %1698 = vmatpush1.bf16.msra.mxu0 0
  %1699 = vmatprep.subr.bf16.mxu0 0
  %1700 = vmatpush1.bf16.msra.mxu0 0
  %1701 = vmatprep.subr.bf16.mxu0 0
  %1702 = vmatpush1.bf16.msra.mxu0 0
  %1703 = vmatprep.subr.bf16.mxu0 0
  %1704 = vmatpush1.bf16.msra.mxu0 0
  %1705 = vmatprep.subr.bf16.mxu0 0
  %1706 = vmatpush1.bf16.msra.mxu0 0
  %1707 = vmatprep.subr.bf16.mxu0 0
  %1708 = vmatpush1.bf16.msra.mxu0 0
  %1709 = vmatprep.subr.bf16.mxu0 0
  %1710 = vmatpush1.bf16.msra.mxu0 0
  %1711 = vmatprep.subr.bf16.mxu0 0
  %1712 = vmatpush1.bf16.msra.mxu0 0
  %1713 = vmatprep.mubr.bf16.mxu0 0
  %1714 = vmatmul.mubr.bf16.gmra.mrb[0].mxu0 %v1608
  %v1715 = vpop.f32.mrb[0].mxu0
  %v1716 = vadd.f32 0.0, %v1715
  %v1717 = vpop.f32.mrb[0].mxu0
  %v1718 = vpop.f32.mrb[0].mxu0
  %v1719 = vadd.f32 0.0, %v1718
  %v1720 = vpop.f32.mrb[0].mxu0
  %1721 = vmatprep.mubr.bf16.mxu0 0
  %1722 = vmatmul.mubr.bf16.gmra.mrb[0].mxu0 %v1609
  %v1723 = vpop.f32.mrb[0].mxu0
  %v1724 = vadd.f32 0.0, %v1723
  %v1725 = vpop.f32.mrb[0].mxu0
  %v1726 = vpop.f32.mrb[0].mxu0
  %v1727 = vadd.f32 0.0, %v1726
  %v1728 = vpop.f32.mrb[0].mxu0
  %1729 = vmatprep.mubr.bf16.mxu0 0
  %1730 = vmatmul.mubr.bf16.gmra.mrb[0].mxu0 %v1610
  %v1731 = vpop.f32.mrb[0].mxu0
  %v1732 = vadd.f32 0.0, %v1731
  %v1733 = vpop.f32.mrb[0].mxu0
  %v1734 = vpop.f32.mrb[0].mxu0
  %v1735 = vadd.f32 0.0, %v1734
  %v1736 = vpop.f32.mrb[0].mxu0
  %1737 = vmatprep.mubr.bf16.mxu0 0
  %1738 = vmatmul.mubr.bf16.gmra.mrb[0].mxu0 %v1611
  %v1739 = vpop.f32.mrb[0].mxu0
  %v1740 = vadd.f32 0.0, %v1739
  %v1741 = vpop.f32.mrb[0].mxu0
  %v1742 = vpop.f32.mrb[0].mxu0
  %v1743 = vadd.f32 0.0, %v1742
  %v1744 = vpop.f32.mrb[0].mxu0
  %1745 = vmatprep.mubr.bf16.mxu0 0
  %1746 = vmatmul.mubr.bf16.gmra.mrb[0].mxu0 %v1612
  %v1747 = vpop.f32.mrb[0].mxu0
  %v1748 = vadd.f32 0.0, %v1747
  %v1749 = vpop.f32.mrb[0].mxu0
  %v1750 = vpop.f32.mrb[0].mxu0
  %v1751 = vadd.f32 0.0, %v1750
  %v1752 = vpop.f32.mrb[0].mxu0
  %1753 = vmatprep.mubr.bf16.mxu0 0
  %1754 = vmatmul.mubr.bf16.gmra.mrb[0].mxu0 %v1613
  %v1755 = vpop.f32.mrb[0].mxu0
  %v1756 = vadd.f32 0.0, %v1755
  %v1757 = vpop.f32.mrb[0].mxu0
  %v1758 = vpop.f32.mrb[0].mxu0
  %v1759 = vadd.f32 0.0, %v1758
  %v1760 = vpop.f32.mrb[0].mxu0
  %1761 = vmatprep.mubr.bf16.mxu0 0
  %1762 = vmatmul.mubr.bf16.gmra.mrb[0].mxu0 %v1614
  %v1763 = vpop.f32.mrb[0].mxu0
  %v1764 = vadd.f32 0.0, %v1763
  %v1765 = vpop.f32.mrb[0].mxu0
  %v1766 = vpop.f32.mrb[0].mxu0
  %v1767 = vadd.f32 0.0, %v1766
  %v1768 = vpop.f32.mrb[0].mxu0
  %1769 = vmatprep.mubr.bf16.mxu0 0
  %1770 = vmatmul.mubr.bf16.gmra.mrb[0].mxu0 %v1615
  %v1771 = vpop.f32.mrb[0].mxu0
  %v1772 = vadd.f32 0.0, %v1771
  %v1773 = vpop.f32.mrb[0].mxu0
  %v1774 = vpop.f32.mrb[0].mxu0
  %v1775 = vadd.f32 0.0, %v1774
  %v1776 = vpop.f32.mrb[0].mxu0
  %1777 = vdwg.mxu0
  %v1794 = vunpack.c.l.b16 %v1576
  %v1795 = vunpack.c.l.b16 %v1577
  %v1796 = vunpack.c.l.b16 %v1578
  %v1797 = vunpack.c.l.b16 %v1579
  %v1798 = vunpack.c.l.b16 %v1580
  %v1799 = vunpack.c.l.b16 %v1581
  %v1800 = vunpack.c.l.b16 %v1582
  %v1801 = vunpack.c.l.b16 %v1583
  %v1802 = vunpack.c.l.b16 %v1584
  %v1803 = vunpack.c.l.b16 %v1585
  %v1804 = vunpack.c.l.b16 %v1586
  %v1805 = vunpack.c.l.b16 %v1587
  %v1806 = vunpack.c.l.b16 %v1588
  %v1807 = vunpack.c.l.b16 %v1589
  %v1808 = vunpack.c.l.b16 %v1590
  %v1809 = vunpack.c.l.b16 %v1591
  %v1810 = vpack.c.b16 %v1795, %v1794
  %v1811 = vpack.c.b16 %v1797, %v1796
  %v1812 = vpack.c.b16 %v1799, %v1798
  %v1813 = vpack.c.b16 %v1801, %v1800
  %v1814 = vpack.c.b16 %v1803, %v1802
  %v1815 = vpack.c.b16 %v1805, %v1804
  %v1816 = vpack.c.b16 %v1807, %v1806
  %v1817 = vpack.c.b16 %v1809, %v1808
  %1826 = vmatprep.subr.bf16.mxu0 0
  %1827 = vmatpush1.bf16.msra.mxu0 %v1810
  %1828 = vmatprep.subr.bf16.mxu0 0
  %1829 = vmatpush1.bf16.msra.mxu0 %v1811
  %1830 = vmatprep.subr.bf16.mxu0 0
  %1831 = vmatpush1.bf16.msra.mxu0 %v1812
  %1832 = vmatprep.subr.bf16.mxu0 0
  %1833 = vmatpush1.bf16.msra.mxu0 %v1813
  %1834 = vmatprep.subr.bf16.mxu0 0
  %1835 = vmatpush1.bf16.msra.mxu0 %v1814
  %1836 = vmatprep.subr.bf16.mxu0 0
  %1837 = vmatpush1.bf16.msra.mxu0 %v1815
  %1838 = vmatprep.subr.bf16.mxu0 0
  %1839 = vmatpush1.bf16.msra.mxu0 %v1816
  %1840 = vmatprep.subr.bf16.mxu0 0
  %1841 = vmatpush1.bf16.msra.mxu0 %v1817
  %1842 = vmatprep.subr.bf16.mxu0 0
  %1843 = vmatpush1.bf16.msra.mxu0 0
  %1844 = vmatprep.subr.bf16.mxu0 0
  %1845 = vmatpush1.bf16.msra.mxu0 0
  %1846 = vmatprep.subr.bf16.mxu0 0
  %1847 = vmatpush1.bf16.msra.mxu0 0
  %1848 = vmatprep.subr.bf16.mxu0 0
  %1849 = vmatpush1.bf16.msra.mxu0 0
  %1850 = vmatprep.subr.bf16.mxu0 0
  %1851 = vmatpush1.bf16.msra.mxu0 0
  %1852 = vmatprep.subr.bf16.mxu0 0
  %1853 = vmatpush1.bf16.msra.mxu0 0
  %1854 = vmatprep.subr.bf16.mxu0 0
  %1855 = vmatpush1.bf16.msra.mxu0 0
  %1856 = vmatprep.subr.bf16.mxu0 0
  %1857 = vmatpush1.bf16.msra.mxu0 0
  %1858 = vmatprep.mubr.bf16.mxu0 0
  %1859 = vmatmul.mubr.bf16.gmra.mrb[0].mxu0 %v1568
  %v1860 = vpop.f32.mrb[0].mxu0
  %v1861 = vadd.f32 %v1716, %v1860
  %v1862 = vpop.f32.mrb[0].mxu0
  %v1863 = vpop.f32.mrb[0].mxu0
  %v1864 = vadd.f32 %v1719, %v1863
  %v1865 = vpop.f32.mrb[0].mxu0
  %1866 = vmatprep.mubr.bf16.mxu0 0
  %1867 = vmatmul.mubr.bf16.gmra.mrb[0].mxu0 %v1569
  %v1868 = vpop.f32.mrb[0].mxu0
  %v1869 = vadd.f32 %v1724, %v1868
  %v1870 = vpop.f32.mrb[0].mxu0
  %v1871 = vpop.f32.mrb[0].mxu0
  %v1872 = vadd.f32 %v1727, %v1871
  %v1873 = vpop.f32.mrb[0].mxu0
  %1874 = vmatprep.mubr.bf16.mxu0 0
  %1875 = vmatmul.mubr.bf16.gmra.mrb[0].mxu0 %v1570
  %v1876 = vpop.f32.mrb[0].mxu0
  %v1877 = vadd.f32 %v1732, %v1876
  %v1878 = vpop.f32.mrb[0].mxu0
  %v1879 = vpop.f32.mrb[0].mxu0
  %v1880 = vadd.f32 %v1735, %v1879
  %v1881 = vpop.f32.mrb[0].mxu0
  %1882 = vmatprep.mubr.bf16.mxu0 0
  %1883 = vmatmul.mubr.bf16.gmra.mrb[0].mxu0 %v1571
  %v1884 = vpop.f32.mrb[0].mxu0
  %v1885 = vadd.f32 %v1740, %v1884
  %v1886 = vpop.f32.mrb[0].mxu0
  %v1887 = vpop.f32.mrb[0].mxu0
  %v1888 = vadd.f32 %v1743, %v1887
  %v1889 = vpop.f32.mrb[0].mxu0
  %1890 = vmatprep.mubr.bf16.mxu0 0
  %1891 = vmatmul.mubr.bf16.gmra.mrb[0].mxu0 %v1572
  %v1892 = vpop.f32.mrb[0].mxu0
  %v1893 = vadd.f32 %v1748, %v1892
  %v1894 = vpop.f32.mrb[0].mxu0
  %v1895 = vpop.f32.mrb[0].mxu0
  %v1896 = vadd.f32 %v1751, %v1895
  %v1897 = vpop.f32.mrb[0].mxu0
  %1898 = vmatprep.mubr.bf16.mxu0 0
  %1899 = vmatmul.mubr.bf16.gmra.mrb[0].mxu0 %v1573
  %v1900 = vpop.f32.mrb[0].mxu0
  %v1901 = vadd.f32 %v1756, %v1900
  %v1902 = vpop.f32.mrb[0].mxu0
  %v1903 = vpop.f32.mrb[0].mxu0
  %v1904 = vadd.f32 %v1759, %v1903
  %v1905 = vpop.f32.mrb[0].mxu0
  %1906 = vmatprep.mubr.bf16.mxu0 0
  %1907 = vmatmul.mubr.bf16.gmra.mrb[0].mxu0 %v1574
  %v1908 = vpop.f32.mrb[0].mxu0
  %v1909 = vadd.f32 %v1764, %v1908
  %v1910 = vpop.f32.mrb[0].mxu0
  %v1911 = vpop.f32.mrb[0].mxu0
  %v1912 = vadd.f32 %v1767, %v1911
  %v1913 = vpop.f32.mrb[0].mxu0
  %1914 = vmatprep.mubr.bf16.mxu0 0
  %1915 = vmatmul.mubr.bf16.gmra.mrb[0].mxu0 %v1575
  %v1916 = vpop.f32.mrb[0].mxu0
  %v1917 = vadd.f32 %v1772, %v1916
  %v1918 = vpop.f32.mrb[0].mxu0
  %v1919 = vpop.f32.mrb[0].mxu0
  %v1920 = vadd.f32 %v1775, %v1919
  %v1921 = vpop.f32.mrb[0].mxu0
  %1922 = vdwg.mxu0
  %v1923 = vld [vmem:[#allocation3 + $0x9] sm:$0xff]
  %v1924 = vld [vmem:[#allocation3 + $0x11] sm:$0xff]
  %v1925 = vld [vmem:[#allocation3 + $0x19] sm:$0xff]
  %v1926 = vld [vmem:[#allocation3 + $0x21] sm:$0xff]
  %v1927 = vld [vmem:[#allocation3 + $0x29] sm:$0xff]
  %v1928 = vld [vmem:[#allocation3 + $0x31] sm:$0xff]
  %v1929 = vld [vmem:[#allocation3 + $0x39] sm:$0xff]
  %v1930 = vld [vmem:[#allocation3 + $0x41] sm:$0xff]
  %v1931 = vld [vmem:[#allocation3 + $0x49] sm:$0xff]
  %v1932 = vld [vmem:[#allocation3 + $0x51] sm:$0xff]
  %v1933 = vld [vmem:[#allocation3 + $0x59] sm:$0xff]
  %v1934 = vld [vmem:[#allocation3 + $0x61] sm:$0xff]
  %v1935 = vld [vmem:[#allocation3 + $0x69] sm:$0xff]
  %v1936 = vld [vmem:[#allocation3 + $0x71] sm:$0xff]
  %v1937 = vld [vmem:[#allocation3 + $0x79] sm:$0xff]
  %v1938 = vld [vmem:[#allocation3 + $0x81] sm:$0xff]
  %v1939 = vpack.c.bf16 %v1924, %v1923
  %v1940 = vpack.c.bf16 %v1926, %v1925
  %v1941 = vpack.c.bf16 %v1928, %v1927
  %v1942 = vpack.c.bf16 %v1930, %v1929
  %v1943 = vpack.c.bf16 %v1932, %v1931
  %v1944 = vpack.c.bf16 %v1934, %v1933
  %v1945 = vpack.c.bf16 %v1936, %v1935
  %v1946 = vpack.c.bf16 %v1938, %v1937
  %s1947 = scalar_lea.vmem %s5, 128
  %v1948 = vld [vmem:[%s1947] sm:$0xf]
  %v1949 = vld [vmem:[%s1947 + $0x4] sm:$0xf]
  %v1950 = vld [vmem:[%s1947 + $0x8] sm:$0xf]
  %v1951 = vld [vmem:[%s1947 + $0xc] sm:$0xf]
  %v1952 = vld [vmem:[%s1947 + $0x10] sm:$0xf]
  %v1953 = vld [vmem:[%s1947 + $0x14] sm:$0xf]
  %v1954 = vld [vmem:[%s1947 + $0x18] sm:$0xf]
  %v1955 = vld [vmem:[%s1947 + $0x1c] sm:$0xf]
  %v1956 = vld [vmem:[%s1947 + $0x20] sm:$0xf]
  %v1957 = vld [vmem:[%s1947 + $0x24] sm:$0xf]
  %v1958 = vld [vmem:[%s1947 + $0x28] sm:$0xf]
  %v1959 = vld [vmem:[%s1947 + $0x2c] sm:$0xf]
  %v1960 = vld [vmem:[%s1947 + $0x30] sm:$0xf]
  %v1961 = vld [vmem:[%s1947 + $0x34] sm:$0xf]
  %v1962 = vld [vmem:[%s1947 + $0x38] sm:$0xf]
  %v1963 = vld [vmem:[%s1947 + $0x3c] sm:$0xf]
  %v1980 = vunpack.c.l.b16 %v1948
  %v1981 = vunpack.c.l.b16 %v1949
  %v1982 = vunpack.c.l.b16 %v1950
  %v1983 = vunpack.c.l.b16 %v1951
  %v1984 = vunpack.c.l.b16 %v1952
  %v1985 = vunpack.c.l.b16 %v1953
  %v1986 = vunpack.c.l.b16 %v1954
  %v1987 = vunpack.c.l.b16 %v1955
  %v1988 = vunpack.c.l.b16 %v1956
  %v1989 = vunpack.c.l.b16 %v1957
  %v1990 = vunpack.c.l.b16 %v1958
  %v1991 = vunpack.c.l.b16 %v1959
  %v1992 = vunpack.c.l.b16 %v1960
  %v1993 = vunpack.c.l.b16 %v1961
  %v1994 = vunpack.c.l.b16 %v1962
  %v1995 = vunpack.c.l.b16 %v1963
  %v1996 = vpack.c.b16 %v1981, %v1980
  %v1997 = vpack.c.b16 %v1983, %v1982
  %v1998 = vpack.c.b16 %v1985, %v1984
  %v1999 = vpack.c.b16 %v1987, %v1986
  %v2000 = vpack.c.b16 %v1989, %v1988
  %v2001 = vpack.c.b16 %v1991, %v1990
  %v2002 = vpack.c.b16 %v1993, %v1992
  %v2003 = vpack.c.b16 %v1995, %v1994
  %2012 = vmatprep.subr.bf16.mxu0 0
  %2013 = vmatpush1.bf16.msra.mxu0 %v1996
  %2014 = vmatprep.subr.bf16.mxu0 0
  %2015 = vmatpush1.bf16.msra.mxu0 %v1997
  %2016 = vmatprep.subr.bf16.mxu0 0
  %2017 = vmatpush1.bf16.msra.mxu0 %v1998
  %2018 = vmatprep.subr.bf16.mxu0 0
  %2019 = vmatpush1.bf16.msra.mxu0 %v1999
  %2020 = vmatprep.subr.bf16.mxu0 0
  %2021 = vmatpush1.bf16.msra.mxu0 %v2000
  %2022 = vmatprep.subr.bf16.mxu0 0
  %2023 = vmatpush1.bf16.msra.mxu0 %v2001
  %2024 = vmatprep.subr.bf16.mxu0 0
  %2025 = vmatpush1.bf16.msra.mxu0 %v2002
  %2026 = vmatprep.subr.bf16.mxu0 0
  %2027 = vmatpush1.bf16.msra.mxu0 %v2003
  %2028 = vmatprep.subr.bf16.mxu0 0
  %2029 = vmatpush1.bf16.msra.mxu0 0
  %2030 = vmatprep.subr.bf16.mxu0 0
  %2031 = vmatpush1.bf16.msra.mxu0 0
  %2032 = vmatprep.subr.bf16.mxu0 0
  %2033 = vmatpush1.bf16.msra.mxu0 0
  %2034 = vmatprep.subr.bf16.mxu0 0
  %2035 = vmatpush1.bf16.msra.mxu0 0
  %2036 = vmatprep.subr.bf16.mxu0 0
  %2037 = vmatpush1.bf16.msra.mxu0 0
  %2038 = vmatprep.subr.bf16.mxu0 0
  %2039 = vmatpush1.bf16.msra.mxu0 0
  %2040 = vmatprep.subr.bf16.mxu0 0
  %2041 = vmatpush1.bf16.msra.mxu0 0
  %2042 = vmatprep.subr.bf16.mxu0 0
  %2043 = vmatpush1.bf16.msra.mxu0 0
  %2044 = vmatprep.mubr.bf16.mxu0 0
  %2045 = vmatmul.mubr.bf16.gmra.mrb[0].mxu0 %v1939
  %v2046 = vpop.f32.mrb[0].mxu0
  %v2047 = vadd.f32 0.0, %v2046
  %v2048 = vpop.f32.mrb[0].mxu0
  %v2049 = vpop.f32.mrb[0].mxu0
  %v2050 = vadd.f32 0.0, %v2049
  %v2051 = vpop.f32.mrb[0].mxu0
  %2052 = vmatprep.mubr.bf16.mxu0 0
  %2053 = vmatmul.mubr.bf16.gmra.mrb[0].mxu0 %v1940
  %v2054 = vpop.f32.mrb[0].mxu0
  %v2055 = vadd.f32 0.0, %v2054
  %v2056 = vpop.f32.mrb[0].mxu0
  %v2057 = vpop.f32.mrb[0].mxu0
  %v2058 = vadd.f32 0.0, %v2057
  %v2059 = vpop.f32.mrb[0].mxu0
  %2060 = vmatprep.mubr.bf16.mxu0 0
  %2061 = vmatmul.mubr.bf16.gmra.mrb[0].mxu0 %v1941
  %v2062 = vpop.f32.mrb[0].mxu0
  %v2063 = vadd.f32 0.0, %v2062
  %v2064 = vpop.f32.mrb[0].mxu0
  %v2065 = vpop.f32.mrb[0].mxu0
  %v2066 = vadd.f32 0.0, %v2065
  %v2067 = vpop.f32.mrb[0].mxu0
  %2068 = vmatprep.mubr.bf16.mxu0 0
  %2069 = vmatmul.mubr.bf16.gmra.mrb[0].mxu0 %v1942
  %v2070 = vpop.f32.mrb[0].mxu0
  %v2071 = vadd.f32 0.0, %v2070
  %v2072 = vpop.f32.mrb[0].mxu0
  %v2073 = vpop.f32.mrb[0].mxu0
  %v2074 = vadd.f32 0.0, %v2073
  %v2075 = vpop.f32.mrb[0].mxu0
  %2076 = vmatprep.mubr.bf16.mxu0 0
  %2077 = vmatmul.mubr.bf16.gmra.mrb[0].mxu0 %v1943
  %v2078 = vpop.f32.mrb[0].mxu0
  %v2079 = vadd.f32 0.0, %v2078
  %v2080 = vpop.f32.mrb[0].mxu0
  %v2081 = vpop.f32.mrb[0].mxu0
  %v2082 = vadd.f32 0.0, %v2081
  %v2083 = vpop.f32.mrb[0].mxu0
  %2084 = vmatprep.mubr.bf16.mxu0 0
  %2085 = vmatmul.mubr.bf16.gmra.mrb[0].mxu0 %v1944
  %v2086 = vpop.f32.mrb[0].mxu0
  %v2087 = vadd.f32 0.0, %v2086
  %v2088 = vpop.f32.mrb[0].mxu0
  %v2089 = vpop.f32.mrb[0].mxu0
  %v2090 = vadd.f32 0.0, %v2089
  %v2091 = vpop.f32.mrb[0].mxu0
  %2092 = vmatprep.mubr.bf16.mxu0 0
  %2093 = vmatmul.mubr.bf16.gmra.mrb[0].mxu0 %v1945
  %v2094 = vpop.f32.mrb[0].mxu0
  %v2095 = vadd.f32 0.0, %v2094
  %v2096 = vpop.f32.mrb[0].mxu0
  %v2097 = vpop.f32.mrb[0].mxu0
  %v2098 = vadd.f32 0.0, %v2097
  %v2099 = vpop.f32.mrb[0].mxu0
  %2100 = vmatprep.mubr.bf16.mxu0 0
  %2101 = vmatmul.mubr.bf16.gmra.mrb[0].mxu0 %v1946
  %v2102 = vpop.f32.mrb[0].mxu0
  %v2103 = vadd.f32 0.0, %v2102
  %v2104 = vpop.f32.mrb[0].mxu0
  %v2105 = vpop.f32.mrb[0].mxu0
  %v2106 = vadd.f32 0.0, %v2105
  %v2107 = vpop.f32.mrb[0].mxu0
  %2108 = vdwg.mxu0
  %v2109 = vadd.f32 %v1861, %v2047
  %v2110 = vadd.f32 %v1864, %v2050
  %v2111 = vadd.f32 %v1869, %v2055
  %v2112 = vadd.f32 %v1872, %v2058
  %v2113 = vadd.f32 %v1877, %v2063
  %v2114 = vadd.f32 %v1880, %v2066
  %v2115 = vadd.f32 %v1885, %v2071
  %v2116 = vadd.f32 %v1888, %v2074
  %v2117 = vadd.f32 %v1893, %v2079
  %v2118 = vadd.f32 %v1896, %v2082
  %v2119 = vadd.f32 %v1901, %v2087
  %v2120 = vadd.f32 %v1904, %v2090
  %v2121 = vadd.f32 %v1909, %v2095
  %v2122 = vadd.f32 %v1912, %v2098
  %v2123 = vadd.f32 %v1917, %v2103
  %v2124 = vadd.f32 %v1920, %v2106
  %v2125 = vld [vmem:[%s6] sm:$0x1]
  %v2127 = vlaneseq
  %v2128 = vshrl.u32 %v2127, 7
  %v2129 = vsub.s32 0, %v2128
  %v2130 = vrot.slane %v2125, %v2129
  %v2132 = vadd.f32 %v2109, %v2130
  %v2133 = vadd.f32 %v2110, %v2130
  %v2134 = vadd.f32 %v2111, %v2130
  %v2135 = vadd.f32 %v2112, %v2130
  %v2136 = vadd.f32 %v2113, %v2130
  %v2137 = vadd.f32 %v2114, %v2130
  %v2138 = vadd.f32 %v2115, %v2130
  %v2139 = vadd.f32 %v2116, %v2130
  %v2140 = vadd.f32 %v2117, %v2130
  %v2141 = vadd.f32 %v2118, %v2130
  %v2142 = vadd.f32 %v2119, %v2130
  %v2143 = vadd.f32 %v2120, %v2130
  %v2144 = vadd.f32 %v2121, %v2130
  %v2145 = vadd.f32 %v2122, %v2130
  %v2146 = vadd.f32 %v2123, %v2130
  %v2147 = vadd.f32 %v2124, %v2130
  %v2148 = vld [vmem:[%s1535 + $0x7] sm:$0xff]
  %v2149 = vld [vmem:[%s1535 + $0xf] sm:$0xff]
  %v2150 = vld [vmem:[%s1535 + $0x17] sm:$0xff]
  %v2151 = vld [vmem:[%s1535 + $0x1f] sm:$0xff]
  %v2152 = vld [vmem:[%s1535 + $0x27] sm:$0xff]
  %v2153 = vld [vmem:[%s1535 + $0x2f] sm:$0xff]
  %v2154 = vld [vmem:[%s1535 + $0x37] sm:$0xff]
  %v2155 = vld [vmem:[%s1535 + $0x3f] sm:$0xff]
  %v2156 = vld [vmem:[%s1535 + $0x47] sm:$0xff]
  %v2157 = vld [vmem:[%s1535 + $0x4f] sm:$0xff]
  %v2158 = vld [vmem:[%s1535 + $0x57] sm:$0xff]
  %v2159 = vld [vmem:[%s1535 + $0x5f] sm:$0xff]
  %v2160 = vld [vmem:[%s1535 + $0x67] sm:$0xff]
  %v2161 = vld [vmem:[%s1535 + $0x6f] sm:$0xff]
  %v2162 = vld [vmem:[%s1535 + $0x77] sm:$0xff]
  %v2163 = vld [vmem:[%s1535 + $0x7f] sm:$0xff]
  %v2164 = vpack.c.bf16 %v2149, %v2148
  %v2165 = vpack.c.bf16 %v2151, %v2150
  %v2166 = vpack.c.bf16 %v2153, %v2152
  %v2167 = vpack.c.bf16 %v2155, %v2154
  %v2168 = vpack.c.bf16 %v2157, %v2156
  %v2169 = vpack.c.bf16 %v2159, %v2158
  %v2170 = vpack.c.bf16 %v2161, %v2160
  %v2171 = vpack.c.bf16 %v2163, %v2162
  %v2172 = vld [vmem:[%s1535 + $0x8] sm:$0xff]
  %v2173 = vld [vmem:[%s1535 + $0x10] sm:$0xff]
  %v2174 = vld [vmem:[%s1535 + $0x18] sm:$0xff]
  %v2175 = vld [vmem:[%s1535 + $0x20] sm:$0xff]
  %v2176 = vld [vmem:[%s1535 + $0x28] sm:$0xff]
  %v2177 = vld [vmem:[%s1535 + $0x30] sm:$0xff]
  %v2178 = vld [vmem:[%s1535 + $0x38] sm:$0xff]
  %v2179 = vld [vmem:[%s1535 + $0x40] sm:$0xff]
  %v2180 = vld [vmem:[%s1535 + $0x48] sm:$0xff]
  %v2181 = vld [vmem:[%s1535 + $0x50] sm:$0xff]
  %v2182 = vld [vmem:[%s1535 + $0x58] sm:$0xff]
  %v2183 = vld [vmem:[%s1535 + $0x60] sm:$0xff]
  %v2184 = vld [vmem:[%s1535 + $0x68] sm:$0xff]
  %v2185 = vld [vmem:[%s1535 + $0x70] sm:$0xff]
  %v2186 = vld [vmem:[%s1535 + $0x78] sm:$0xff]
  %v2187 = vld [vmem:[%s1535 + $0x80] sm:$0xff]
  %v2188 = vpack.c.bf16 %v2173, %v2172
  %v2189 = vpack.c.bf16 %v2175, %v2174
  %v2190 = vpack.c.bf16 %v2177, %v2176
  %v2191 = vpack.c.bf16 %v2179, %v2178
  %v2192 = vpack.c.bf16 %v2181, %v2180
  %v2193 = vpack.c.bf16 %v2183, %v2182
  %v2194 = vpack.c.bf16 %v2185, %v2184
  %v2195 = vpack.c.bf16 %v2187, %v2186
  %2196 = vmatprep.subr.bf16.mxu0 0
  %2197 = vmatpush1.bf16.msra.mxu0 %v1665
  %2198 = vmatprep.subr.bf16.mxu0 0
  %2199 = vmatpush1.bf16.msra.mxu0 %v1666
  %2200 = vmatprep.subr.bf16.mxu0 0
  %2201 = vmatpush1.bf16.msra.mxu0 %v1667
  %2202 = vmatprep.subr.bf16.mxu0 0
  %2203 = vmatpush1.bf16.msra.mxu0 %v1668
  %2204 = vmatprep.subr.bf16.mxu0 0
  %2205 = vmatpush1.bf16.msra.mxu0 %v1669
  %2206 = vmatprep.subr.bf16.mxu0 0
  %2207 = vmatpush1.bf16.msra.mxu0 %v1670
  %2208 = vmatprep.subr.bf16.mxu0 0
  %2209 = vmatpush1.bf16.msra.mxu0 %v1671
  %2210 = vmatprep.subr.bf16.mxu0 0
  %2211 = vmatpush1.bf16.msra.mxu0 %v1672
  %2212 = vmatprep.subr.bf16.mxu0 0
  %2213 = vmatpush1.bf16.msra.mxu0 0
  %2214 = vmatprep.subr.bf16.mxu0 0
  %2215 = vmatpush1.bf16.msra.mxu0 0
  %2216 = vmatprep.subr.bf16.mxu0 0
  %2217 = vmatpush1.bf16.msra.mxu0 0
  %2218 = vmatprep.subr.bf16.mxu0 0
  %2219 = vmatpush1.bf16.msra.mxu0 0
  %2220 = vmatprep.subr.bf16.mxu0 0
  %2221 = vmatpush1.bf16.msra.mxu0 0
  %2222 = vmatprep.subr.bf16.mxu0 0
  %2223 = vmatpush1.bf16.msra.mxu0 0
  %2224 = vmatprep.subr.bf16.mxu0 0
  %2225 = vmatpush1.bf16.msra.mxu0 0
  %2226 = vmatprep.subr.bf16.mxu0 0
  %2227 = vmatpush1.bf16.msra.mxu0 0
  %2228 = vmatprep.mubr.bf16.mxu0 0
  %2229 = vmatmul.mubr.bf16.gmra.mrb[0].mxu0 %v2188
  %v2230 = vpop.f32.mrb[0].mxu0
  %v2231 = vadd.f32 0.0, %v2230
  %v2232 = vpop.f32.mrb[0].mxu0
  %v2233 = vpop.f32.mrb[0].mxu0
  %v2234 = vadd.f32 0.0, %v2233
  %v2235 = vpop.f32.mrb[0].mxu0
  %2236 = vmatprep.mubr.bf16.mxu0 0
  %2237 = vmatmul.mubr.bf16.gmra.mrb[0].mxu0 %v2189
  %v2238 = vpop.f32.mrb[0].mxu0
  %v2239 = vadd.f32 0.0, %v2238
  %v2240 = vpop.f32.mrb[0].mxu0
  %v2241 = vpop.f32.mrb[0].mxu0
  %v2242 = vadd.f32 0.0, %v2241
  %v2243 = vpop.f32.mrb[0].mxu0
  %2244 = vmatprep.mubr.bf16.mxu0 0
  %2245 = vmatmul.mubr.bf16.gmra.mrb[0].mxu0 %v2190
  %v2246 = vpop.f32.mrb[0].mxu0
  %v2247 = vadd.f32 0.0, %v2246
  %v2248 = vpop.f32.mrb[0].mxu0
  %v2249 = vpop.f32.mrb[0].mxu0
  %v2250 = vadd.f32 0.0, %v2249
  %v2251 = vpop.f32.mrb[0].mxu0
  %2252 = vmatprep.mubr.bf16.mxu0 0
  %2253 = vmatmul.mubr.bf16.gmra.mrb[0].mxu0 %v2191
  %v2254 = vpop.f32.mrb[0].mxu0
  %v2255 = vadd.f32 0.0, %v2254
  %v2256 = vpop.f32.mrb[0].mxu0
  %v2257 = vpop.f32.mrb[0].mxu0
  %v2258 = vadd.f32 0.0, %v2257
  %v2259 = vpop.f32.mrb[0].mxu0
  %2260 = vmatprep.mubr.bf16.mxu0 0
  %2261 = vmatmul.mubr.bf16.gmra.mrb[0].mxu0 %v2192
  %v2262 = vpop.f32.mrb[0].mxu0
  %v2263 = vadd.f32 0.0, %v2262
  %v2264 = vpop.f32.mrb[0].mxu0
  %v2265 = vpop.f32.mrb[0].mxu0
  %v2266 = vadd.f32 0.0, %v2265
  %v2267 = vpop.f32.mrb[0].mxu0
  %2268 = vmatprep.mubr.bf16.mxu0 0
  %2269 = vmatmul.mubr.bf16.gmra.mrb[0].mxu0 %v2193
  %v2270 = vpop.f32.mrb[0].mxu0
  %v2271 = vadd.f32 0.0, %v2270
  %v2272 = vpop.f32.mrb[0].mxu0
  %v2273 = vpop.f32.mrb[0].mxu0
  %v2274 = vadd.f32 0.0, %v2273
  %v2275 = vpop.f32.mrb[0].mxu0
  %2276 = vmatprep.mubr.bf16.mxu0 0
  %2277 = vmatmul.mubr.bf16.gmra.mrb[0].mxu0 %v2194
  %v2278 = vpop.f32.mrb[0].mxu0
  %v2279 = vadd.f32 0.0, %v2278
  %v2280 = vpop.f32.mrb[0].mxu0
  %v2281 = vpop.f32.mrb[0].mxu0
  %v2282 = vadd.f32 0.0, %v2281
  %v2283 = vpop.f32.mrb[0].mxu0
  %2284 = vmatprep.mubr.bf16.mxu0 0
  %2285 = vmatmul.mubr.bf16.gmra.mrb[0].mxu0 %v2195
  %v2286 = vpop.f32.mrb[0].mxu0
  %v2287 = vadd.f32 0.0, %v2286
  %v2288 = vpop.f32.mrb[0].mxu0
  %v2289 = vpop.f32.mrb[0].mxu0
  %v2290 = vadd.f32 0.0, %v2289
  %v2291 = vpop.f32.mrb[0].mxu0
  %2292 = vdwg.mxu0
  %2293 = vmatprep.subr.bf16.mxu0 0
  %2294 = vmatpush1.bf16.msra.mxu0 %v1810
  %2295 = vmatprep.subr.bf16.mxu0 0
  %2296 = vmatpush1.bf16.msra.mxu0 %v1811
  %2297 = vmatprep.subr.bf16.mxu0 0
  %2298 = vmatpush1.bf16.msra.mxu0 %v1812
  %2299 = vmatprep.subr.bf16.mxu0 0
  %2300 = vmatpush1.bf16.msra.mxu0 %v1813
  %2301 = vmatprep.subr.bf16.mxu0 0
  %2302 = vmatpush1.bf16.msra.mxu0 %v1814
  %2303 = vmatprep.subr.bf16.mxu0 0
  %2304 = vmatpush1.bf16.msra.mxu0 %v1815
  %2305 = vmatprep.subr.bf16.mxu0 0
  %2306 = vmatpush1.bf16.msra.mxu0 %v1816
  %2307 = vmatprep.subr.bf16.mxu0 0
  %2308 = vmatpush1.bf16.msra.mxu0 %v1817
  %2309 = vmatprep.subr.bf16.mxu0 0
  %2310 = vmatpush1.bf16.msra.mxu0 0
  %2311 = vmatprep.subr.bf16.mxu0 0
  %2312 = vmatpush1.bf16.msra.mxu0 0
  %2313 = vmatprep.subr.bf16.mxu0 0
  %2314 = vmatpush1.bf16.msra.mxu0 0
  %2315 = vmatprep.subr.bf16.mxu0 0
  %2316 = vmatpush1.bf16.msra.mxu0 0
  %2317 = vmatprep.subr.bf16.mxu0 0
  %2318 = vmatpush1.bf16.msra.mxu0 0
  %2319 = vmatprep.subr.bf16.mxu0 0
  %2320 = vmatpush1.bf16.msra.mxu0 0
  %2321 = vmatprep.subr.bf16.mxu0 0
  %2322 = vmatpush1.bf16.msra.mxu0 0
  %2323 = vmatprep.subr.bf16.mxu0 0
  %2324 = vmatpush1.bf16.msra.mxu0 0
  %2325 = vmatprep.mubr.bf16.mxu0 0
  %2326 = vmatmul.mubr.bf16.gmra.mrb[0].mxu0 %v2164
  %v2327 = vpop.f32.mrb[0].mxu0
  %v2328 = vadd.f32 %v2231, %v2327
  %v2329 = vpop.f32.mrb[0].mxu0
  %v2330 = vpop.f32.mrb[0].mxu0
  %v2331 = vadd.f32 %v2234, %v2330
  %v2332 = vpop.f32.mrb[0].mxu0
  %2333 = vmatprep.mubr.bf16.mxu0 0
  %2334 = vmatmul.mubr.bf16.gmra.mrb[0].mxu0 %v2165
  %v2335 = vpop.f32.mrb[0].mxu0
  %v2336 = vadd.f32 %v2239, %v2335
  %v2337 = vpop.f32.mrb[0].mxu0
  %v2338 = vpop.f32.mrb[0].mxu0
  %v2339 = vadd.f32 %v2242, %v2338
  %v2340 = vpop.f32.mrb[0].mxu0
  %2341 = vmatprep.mubr.bf16.mxu0 0
  %2342 = vmatmul.mubr.bf16.gmra.mrb[0].mxu0 %v2166
  %v2343 = vpop.f32.mrb[0].mxu0
  %v2344 = vadd.f32 %v2247, %v2343
  %v2345 = vpop.f32.mrb[0].mxu0
  %v2346 = vpop.f32.mrb[0].mxu0
  %v2347 = vadd.f32 %v2250, %v2346
  %v2348 = vpop.f32.mrb[0].mxu0
  %2349 = vmatprep.mubr.bf16.mxu0 0
  %2350 = vmatmul.mubr.bf16.gmra.mrb[0].mxu0 %v2167
  %v2351 = vpop.f32.mrb[0].mxu0
  %v2352 = vadd.f32 %v2255, %v2351
  %v2353 = vpop.f32.mrb[0].mxu0
  %v2354 = vpop.f32.mrb[0].mxu0
  %v2355 = vadd.f32 %v2258, %v2354
  %v2356 = vpop.f32.mrb[0].mxu0
  %2357 = vmatprep.mubr.bf16.mxu0 0
  %2358 = vmatmul.mubr.bf16.gmra.mrb[0].mxu0 %v2168
  %v2359 = vpop.f32.mrb[0].mxu0
  %v2360 = vadd.f32 %v2263, %v2359
  %v2361 = vpop.f32.mrb[0].mxu0
  %v2362 = vpop.f32.mrb[0].mxu0
  %v2363 = vadd.f32 %v2266, %v2362
  %v2364 = vpop.f32.mrb[0].mxu0
  %2365 = vmatprep.mubr.bf16.mxu0 0
  %2366 = vmatmul.mubr.bf16.gmra.mrb[0].mxu0 %v2169
  %v2367 = vpop.f32.mrb[0].mxu0
  %v2368 = vadd.f32 %v2271, %v2367
  %v2369 = vpop.f32.mrb[0].mxu0
  %v2370 = vpop.f32.mrb[0].mxu0
  %v2371 = vadd.f32 %v2274, %v2370
  %v2372 = vpop.f32.mrb[0].mxu0
  %2373 = vmatprep.mubr.bf16.mxu0 0
  %2374 = vmatmul.mubr.bf16.gmra.mrb[0].mxu0 %v2170
  %v2375 = vpop.f32.mrb[0].mxu0
  %v2376 = vadd.f32 %v2279, %v2375
  %v2377 = vpop.f32.mrb[0].mxu0
  %v2378 = vpop.f32.mrb[0].mxu0
  %v2379 = vadd.f32 %v2282, %v2378
  %v2380 = vpop.f32.mrb[0].mxu0
  %2381 = vmatprep.mubr.bf16.mxu0 0
  %2382 = vmatmul.mubr.bf16.gmra.mrb[0].mxu0 %v2171
  %v2383 = vpop.f32.mrb[0].mxu0
  %v2384 = vadd.f32 %v2287, %v2383
  %v2385 = vpop.f32.mrb[0].mxu0
  %v2386 = vpop.f32.mrb[0].mxu0
  %v2387 = vadd.f32 %v2290, %v2386
  %v2388 = vpop.f32.mrb[0].mxu0
  %2389 = vdwg.mxu0
  %v2390 = vld [vmem:[%s1535 + $0x9] sm:$0xff]
  %v2391 = vld [vmem:[%s1535 + $0x11] sm:$0xff]
  %v2392 = vld [vmem:[%s1535 + $0x19] sm:$0xff]
  %v2393 = vld [vmem:[%s1535 + $0x21] sm:$0xff]
  %v2394 = vld [vmem:[%s1535 + $0x29] sm:$0xff]
  %v2395 = vld [vmem:[%s1535 + $0x31] sm:$0xff]
  %v2396 = vld [vmem:[%s1535 + $0x39] sm:$0xff]
  %v2397 = vld [vmem:[%s1535 + $0x41] sm:$0xff]
  %v2398 = vld [vmem:[%s1535 + $0x49] sm:$0xff]
  %v2399 = vld [vmem:[%s1535 + $0x51] sm:$0xff]
  %v2400 = vld [vmem:[%s1535 + $0x59] sm:$0xff]
  %v2401 = vld [vmem:[%s1535 + $0x61] sm:$0xff]
  %v2402 = vld [vmem:[%s1535 + $0x69] sm:$0xff]
  %v2403 = vld [vmem:[%s1535 + $0x71] sm:$0xff]
  %v2404 = vld [vmem:[%s1535 + $0x79] sm:$0xff]
  %v2405 = vld [vmem:[%s1535 + $0x81] sm:$0xff]
  %v2406 = vpack.c.bf16 %v2391, %v2390
  %v2407 = vpack.c.bf16 %v2393, %v2392
  %v2408 = vpack.c.bf16 %v2395, %v2394
  %v2409 = vpack.c.bf16 %v2397, %v2396
  %v2410 = vpack.c.bf16 %v2399, %v2398
  %v2411 = vpack.c.bf16 %v2401, %v2400
  %v2412 = vpack.c.bf16 %v2403, %v2402
  %v2413 = vpack.c.bf16 %v2405, %v2404
  %2414 = vmatprep.subr.bf16.mxu0 0
  %2415 = vmatpush1.bf16.msra.mxu0 %v1996
  %2416 = vmatprep.subr.bf16.mxu0 0
  %2417 = vmatpush1.bf16.msra.mxu0 %v1997
  %2418 = vmatprep.subr.bf16.mxu0 0
  %2419 = vmatpush1.bf16.msra.mxu0 %v1998
  %2420 = vmatprep.subr.bf16.mxu0 0
  %2421 = vmatpush1.bf16.msra.mxu0 %v1999
  %2422 = vmatprep.subr.bf16.mxu0 0
  %2423 = vmatpush1.bf16.msra.mxu0 %v2000
  %2424 = vmatprep.subr.bf16.mxu0 0
  %2425 = vmatpush1.bf16.msra.mxu0 %v2001
  %2426 = vmatprep.subr.bf16.mxu0 0
  %2427 = vmatpush1.bf16.msra.mxu0 %v2002
  %2428 = vmatprep.subr.bf16.mxu0 0
  %2429 = vmatpush1.bf16.msra.mxu0 %v2003
  %2430 = vmatprep.subr.bf16.mxu0 0
  %2431 = vmatpush1.bf16.msra.mxu0 0
  %2432 = vmatprep.subr.bf16.mxu0 0
  %2433 = vmatpush1.bf16.msra.mxu0 0
  %2434 = vmatprep.subr.bf16.mxu0 0
  %2435 = vmatpush1.bf16.msra.mxu0 0
  %2436 = vmatprep.subr.bf16.mxu0 0
  %2437 = vmatpush1.bf16.msra.mxu0 0
  %2438 = vmatprep.subr.bf16.mxu0 0
  %2439 = vmatpush1.bf16.msra.mxu0 0
  %2440 = vmatprep.subr.bf16.mxu0 0
  %2441 = vmatpush1.bf16.msra.mxu0 0
  %2442 = vmatprep.subr.bf16.mxu0 0
  %2443 = vmatpush1.bf16.msra.mxu0 0
  %2444 = vmatprep.subr.bf16.mxu0 0
  %2445 = vmatpush1.bf16.msra.mxu0 0
  %2446 = vmatprep.mubr.bf16.mxu0 0
  %2447 = vmatmul.mubr.bf16.gmra.mrb[0].mxu0 %v2406
  %v2448 = vpop.f32.mrb[0].mxu0
  %v2449 = vadd.f32 0.0, %v2448
  %v2450 = vpop.f32.mrb[0].mxu0
  %v2451 = vpop.f32.mrb[0].mxu0
  %v2452 = vadd.f32 0.0, %v2451
  %v2453 = vpop.f32.mrb[0].mxu0
  %2454 = vmatprep.mubr.bf16.mxu0 0
  %2455 = vmatmul.mubr.bf16.gmra.mrb[0].mxu0 %v2407
  %v2456 = vpop.f32.mrb[0].mxu0
  %v2457 = vadd.f32 0.0, %v2456
  %v2458 = vpop.f32.mrb[0].mxu0
  %v2459 = vpop.f32.mrb[0].mxu0
  %v2460 = vadd.f32 0.0, %v2459
  %v2461 = vpop.f32.mrb[0].mxu0
  %2462 = vmatprep.mubr.bf16.mxu0 0
  %2463 = vmatmul.mubr.bf16.gmra.mrb[0].mxu0 %v2408
  %v2464 = vpop.f32.mrb[0].mxu0
  %v2465 = vadd.f32 0.0, %v2464
  %v2466 = vpop.f32.mrb[0].mxu0
  %v2467 = vpop.f32.mrb[0].mxu0
  %v2468 = vadd.f32 0.0, %v2467
  %v2469 = vpop.f32.mrb[0].mxu0
  %2470 = vmatprep.mubr.bf16.mxu0 0
  %2471 = vmatmul.mubr.bf16.gmra.mrb[0].mxu0 %v2409
  %v2472 = vpop.f32.mrb[0].mxu0
  %v2473 = vadd.f32 0.0, %v2472
  %v2474 = vpop.f32.mrb[0].mxu0
  %v2475 = vpop.f32.mrb[0].mxu0
  %v2476 = vadd.f32 0.0, %v2475
  %v2477 = vpop.f32.mrb[0].mxu0
  %2478 = vmatprep.mubr.bf16.mxu0 0
  %2479 = vmatmul.mubr.bf16.gmra.mrb[0].mxu0 %v2410
  %v2480 = vpop.f32.mrb[0].mxu0
  %v2481 = vadd.f32 0.0, %v2480
  %v2482 = vpop.f32.mrb[0].mxu0
  %v2483 = vpop.f32.mrb[0].mxu0
  %v2484 = vadd.f32 0.0, %v2483
  %v2485 = vpop.f32.mrb[0].mxu0
  %2486 = vmatprep.mubr.bf16.mxu0 0
  %2487 = vmatmul.mubr.bf16.gmra.mrb[0].mxu0 %v2411
  %v2488 = vpop.f32.mrb[0].mxu0
  %v2489 = vadd.f32 0.0, %v2488
  %v2490 = vpop.f32.mrb[0].mxu0
  %v2491 = vpop.f32.mrb[0].mxu0
  %v2492 = vadd.f32 0.0, %v2491
  %v2493 = vpop.f32.mrb[0].mxu0
  %2494 = vmatprep.mubr.bf16.mxu0 0
  %2495 = vmatmul.mubr.bf16.gmra.mrb[0].mxu0 %v2412
  %v2496 = vpop.f32.mrb[0].mxu0
  %v2497 = vadd.f32 0.0, %v2496
  %v2498 = vpop.f32.mrb[0].mxu0
  %v2499 = vpop.f32.mrb[0].mxu0
  %v2500 = vadd.f32 0.0, %v2499
  %v2501 = vpop.f32.mrb[0].mxu0
  %2502 = vmatprep.mubr.bf16.mxu0 0
  %2503 = vmatmul.mubr.bf16.gmra.mrb[0].mxu0 %v2413
  %v2504 = vpop.f32.mrb[0].mxu0
  %v2505 = vadd.f32 0.0, %v2504
  %v2506 = vpop.f32.mrb[0].mxu0
  %v2507 = vpop.f32.mrb[0].mxu0
  %v2508 = vadd.f32 0.0, %v2507
  %v2509 = vpop.f32.mrb[0].mxu0
  %2510 = vdwg.mxu0
  %v2511 = vadd.f32 %v2328, %v2449
  %v2512 = vadd.f32 %v2331, %v2452
  %v2513 = vadd.f32 %v2336, %v2457
  %v2514 = vadd.f32 %v2339, %v2460
  %v2515 = vadd.f32 %v2344, %v2465
  %v2516 = vadd.f32 %v2347, %v2468
  %v2517 = vadd.f32 %v2352, %v2473
  %v2518 = vadd.f32 %v2355, %v2476
  %v2519 = vadd.f32 %v2360, %v2481
  %v2520 = vadd.f32 %v2363, %v2484
  %v2521 = vadd.f32 %v2368, %v2489
  %v2522 = vadd.f32 %v2371, %v2492
  %v2523 = vadd.f32 %v2376, %v2497
  %v2524 = vadd.f32 %v2379, %v2500
  %v2525 = vadd.f32 %v2384, %v2505
  %v2526 = vadd.f32 %v2387, %v2508
  %v2527 = vadd.f32 %v2511, %v2130
  %v2528 = vadd.f32 %v2512, %v2130
  %v2529 = vadd.f32 %v2513, %v2130
  %v2530 = vadd.f32 %v2514, %v2130
  %v2531 = vadd.f32 %v2515, %v2130
  %v2532 = vadd.f32 %v2516, %v2130
  %v2533 = vadd.f32 %v2517, %v2130
  %v2534 = vadd.f32 %v2518, %v2130
  %v2535 = vadd.f32 %v2519, %v2130
  %v2536 = vadd.f32 %v2520, %v2130
  %v2537 = vadd.f32 %v2521, %v2130
  %v2538 = vadd.f32 %v2522, %v2130
  %v2539 = vadd.f32 %v2523, %v2130
  %v2540 = vadd.f32 %v2524, %v2130
  %v2541 = vadd.f32 %v2525, %v2130
  %v2542 = vadd.f32 %v2526, %v2130
  %v2543 = vadd.f32 %v2132, %v2133
  %v2544 = vadd.f32 %v2543, %v2134
  %v2545 = vadd.f32 %v2544, %v2135
  %v2546 = vadd.f32 %v2545, %v2136
  %v2547 = vadd.f32 %v2546, %v2137
  %v2548 = vadd.f32 %v2547, %v2138
  %v2549 = vadd.f32 %v2548, %v2139
  %v2550 = vadd.f32 %v2549, %v2140
  %v2551 = vadd.f32 %v2550, %v2141
  %v2552 = vadd.f32 %v2551, %v2142
  %v2553 = vadd.f32 %v2552, %v2143
  %v2554 = vadd.f32 %v2553, %v2144
  %v2555 = vadd.f32 %v2554, %v2145
  %v2556 = vadd.f32 %v2555, %v2146
  %v2557 = vadd.f32 %v2556, %v2147
  %v2558 = vrot.slane %v2557, 4
  %v2559 = vadd.f32 %v2557, %v2558
  %v2560 = vrot.slane %v2559, 2
  %v2561 = vadd.f32 %v2559, %v2560
  %v2562 = vrot.slane %v2561, 1
  %v2563 = vadd.f32 %v2561, %v2562
  %v2564 = vadd.f32 %v2563, 0.0
  %v2565 = vadd.f32 %v2527, %v2528
  %v2566 = vadd.f32 %v2565, %v2529
  %v2567 = vadd.f32 %v2566, %v2530
  %v2568 = vadd.f32 %v2567, %v2531
  %v2569 = vadd.f32 %v2568, %v2532
  %v2570 = vadd.f32 %v2569, %v2533
  %v2571 = vadd.f32 %v2570, %v2534
  %v2572 = vadd.f32 %v2571, %v2535
  %v2573 = vadd.f32 %v2572, %v2536
  %v2574 = vadd.f32 %v2573, %v2537
  %v2575 = vadd.f32 %v2574, %v2538
  %v2576 = vadd.f32 %v2575, %v2539
  %v2577 = vadd.f32 %v2576, %v2540
  %v2578 = vadd.f32 %v2577, %v2541
  %v2579 = vadd.f32 %v2578, %v2542
  %v2580 = vrot.slane %v2579, 4
  %v2581 = vadd.f32 %v2579, %v2580
  %v2582 = vrot.slane %v2581, 2
  %v2583 = vadd.f32 %v2581, %v2582
  %v2584 = vrot.slane %v2583, 1
  %v2585 = vadd.f32 %v2583, %v2584
  %v2586 = vadd.f32 %v2564, %v2585
  %v2587 = vmul.f32 %v2132, %v2132
  %v2588 = vmul.f32 %v2133, %v2133
  %v2589 = vmul.f32 %v2134, %v2134
  %v2590 = vmul.f32 %v2135, %v2135
  %v2591 = vmul.f32 %v2136, %v2136
  %v2592 = vmul.f32 %v2137, %v2137
  %v2593 = vmul.f32 %v2138, %v2138
  %v2594 = vmul.f32 %v2139, %v2139
  %v2595 = vmul.f32 %v2140, %v2140
  %v2596 = vmul.f32 %v2141, %v2141
  %v2597 = vmul.f32 %v2142, %v2142
  %v2598 = vmul.f32 %v2143, %v2143
  %v2599 = vmul.f32 %v2144, %v2144
  %v2600 = vmul.f32 %v2145, %v2145
  %v2601 = vmul.f32 %v2146, %v2146
  %v2602 = vmul.f32 %v2147, %v2147
  %v2603 = vadd.f32 %v2587, %v2588
  %v2604 = vadd.f32 %v2603, %v2589
  %v2605 = vadd.f32 %v2604, %v2590
  %v2606 = vadd.f32 %v2605, %v2591
  %v2607 = vadd.f32 %v2606, %v2592
  %v2608 = vadd.f32 %v2607, %v2593
  %v2609 = vadd.f32 %v2608, %v2594
  %v2610 = vadd.f32 %v2609, %v2595
  %v2611 = vadd.f32 %v2610, %v2596
  %v2612 = vadd.f32 %v2611, %v2597
  %v2613 = vadd.f32 %v2612, %v2598
  %v2614 = vadd.f32 %v2613, %v2599
  %v2615 = vadd.f32 %v2614, %v2600
  %v2616 = vadd.f32 %v2615, %v2601
  %v2617 = vadd.f32 %v2616, %v2602
  %v2618 = vrot.slane %v2617, 4
  %v2619 = vadd.f32 %v2617, %v2618
  %v2620 = vrot.slane %v2619, 2
  %v2621 = vadd.f32 %v2619, %v2620
  %v2622 = vrot.slane %v2621, 1
  %v2623 = vadd.f32 %v2621, %v2622
  %v2624 = vadd.f32 %v2623, 0.0
  %v2625 = vmul.f32 %v2527, %v2527
  %v2626 = vmul.f32 %v2528, %v2528
  %v2627 = vmul.f32 %v2529, %v2529
  %v2628 = vmul.f32 %v2530, %v2530
  %v2629 = vmul.f32 %v2531, %v2531
  %v2630 = vmul.f32 %v2532, %v2532
  %v2631 = vmul.f32 %v2533, %v2533
  %v2632 = vmul.f32 %v2534, %v2534
  %v2633 = vmul.f32 %v2535, %v2535
  %v2634 = vmul.f32 %v2536, %v2536
  %v2635 = vmul.f32 %v2537, %v2537
  %v2636 = vmul.f32 %v2538, %v2538
  %v2637 = vmul.f32 %v2539, %v2539
  %v2638 = vmul.f32 %v2540, %v2540
  %v2639 = vmul.f32 %v2541, %v2541
  %v2640 = vmul.f32 %v2542, %v2542
  %v2641 = vadd.f32 %v2625, %v2626
  %v2642 = vadd.f32 %v2641, %v2627
  %v2643 = vadd.f32 %v2642, %v2628
  %v2644 = vadd.f32 %v2643, %v2629
  %v2645 = vadd.f32 %v2644, %v2630
  %v2646 = vadd.f32 %v2645, %v2631
  %v2647 = vadd.f32 %v2646, %v2632
  %v2648 = vadd.f32 %v2647, %v2633
  %v2649 = vadd.f32 %v2648, %v2634
  %v2650 = vadd.f32 %v2649, %v2635
  %v2651 = vadd.f32 %v2650, %v2636
  %v2652 = vadd.f32 %v2651, %v2637
  %v2653 = vadd.f32 %v2652, %v2638
  %v2654 = vadd.f32 %v2653, %v2639
  %v2655 = vadd.f32 %v2654, %v2640
  %v2656 = vrot.slane %v2655, 4
  %v2657 = vadd.f32 %v2655, %v2656
  %v2658 = vrot.slane %v2657, 2
  %v2659 = vadd.f32 %v2657, %v2658
  %v2660 = vrot.slane %v2659, 1
  %v2661 = vadd.f32 %v2659, %v2660
  %v2662 = vadd.f32 %v2624, %v2661
  %v2663 = vmul.f32 %v2586, 0.00390625
  %v2664 = vmul.f32 %v2662, 0.00390625
  %v2665 = vmul.f32 %v2663, %v2663
  %v2666 = vsub.f32 %v2664, %v2665
  %v2667 = vld [vmem:[%s7] sm:$0x1]
  %v2668 = vadd.f32 %v2666, 1e-05
  %v2669 = vrsqrt.pop %v2668
  %v2670 = vmul.f32 %v2667, %v2669
  %v2671 = vld [vmem:[%s8] sm:$0x1]
  %v2672 = vmul.f32 %v2663, %v2670
  %v2673 = vsub.f32 %v2671, %v2672
  %v2675 = vlaneseq
  %v2676 = vshrl.u32 %v2675, 7
  %v2677 = vsub.s32 0, %v2676
  %v2678 = vrot.slane %v2670, %v2677
  %v2680 = vmul.f32 %v2132, %v2678
  %v2681 = vmul.f32 %v2133, %v2678
  %v2682 = vmul.f32 %v2134, %v2678
  %v2683 = vmul.f32 %v2135, %v2678
  %v2684 = vmul.f32 %v2136, %v2678
  %v2685 = vmul.f32 %v2137, %v2678
  %v2686 = vmul.f32 %v2138, %v2678
  %v2687 = vmul.f32 %v2139, %v2678
  %v2688 = vmul.f32 %v2140, %v2678
  %v2689 = vmul.f32 %v2141, %v2678
  %v2690 = vmul.f32 %v2142, %v2678
  %v2691 = vmul.f32 %v2143, %v2678
  %v2692 = vmul.f32 %v2144, %v2678
  %v2693 = vmul.f32 %v2145, %v2678
  %v2694 = vmul.f32 %v2146, %v2678
  %v2695 = vmul.f32 %v2147, %v2678
  %v2697 = vlaneseq
  %v2698 = vshrl.u32 %v2697, 7
  %v2699 = vsub.s32 0, %v2698
  %v2700 = vrot.slane %v2673, %v2699
  %v2702 = vadd.f32 %v2680, %v2700
  %v2703 = vadd.f32 %v2681, %v2700
  %v2704 = vadd.f32 %v2682, %v2700
  %v2705 = vadd.f32 %v2683, %v2700
  %v2706 = vadd.f32 %v2684, %v2700
  %v2707 = vadd.f32 %v2685, %v2700
  %v2708 = vadd.f32 %v2686, %v2700
  %v2709 = vadd.f32 %v2687, %v2700
  %v2710 = vadd.f32 %v2688, %v2700
  %v2711 = vadd.f32 %v2689, %v2700
  %v2712 = vadd.f32 %v2690, %v2700
  %v2713 = vadd.f32 %v2691, %v2700
  %v2714 = vadd.f32 %v2692, %v2700
  %v2715 = vadd.f32 %v2693, %v2700
  %v2716 = vadd.f32 %v2694, %v2700
  %v2717 = vadd.f32 %v2695, %v2700
  %vm2718 = vcmp.ge.f32.partialorder %v2702, 0.0
  %vm2719 = vcmp.ge.f32.partialorder %v2703, 0.0
  %vm2720 = vcmp.ge.f32.partialorder %v2704, 0.0
  %vm2721 = vcmp.ge.f32.partialorder %v2705, 0.0
  %vm2722 = vcmp.ge.f32.partialorder %v2706, 0.0
  %vm2723 = vcmp.ge.f32.partialorder %v2707, 0.0
  %vm2724 = vcmp.ge.f32.partialorder %v2708, 0.0
  %vm2725 = vcmp.ge.f32.partialorder %v2709, 0.0
  %vm2726 = vcmp.ge.f32.partialorder %v2710, 0.0
  %vm2727 = vcmp.ge.f32.partialorder %v2711, 0.0
  %vm2728 = vcmp.ge.f32.partialorder %v2712, 0.0
  %vm2729 = vcmp.ge.f32.partialorder %v2713, 0.0
  %vm2730 = vcmp.ge.f32.partialorder %v2714, 0.0
  %vm2731 = vcmp.ge.f32.partialorder %v2715, 0.0
  %vm2732 = vcmp.ge.f32.partialorder %v2716, 0.0
  %vm2733 = vcmp.ge.f32.partialorder %v2717, 0.0
  %v2734 = vmul.f32 %v2702, 0.01
  %v2735 = vmul.f32 %v2703, 0.01
  %v2736 = vmul.f32 %v2704, 0.01
  %v2737 = vmul.f32 %v2705, 0.01
  %v2738 = vmul.f32 %v2706, 0.01
  %v2739 = vmul.f32 %v2707, 0.01
  %v2740 = vmul.f32 %v2708, 0.01
  %v2741 = vmul.f32 %v2709, 0.01
  %v2742 = vmul.f32 %v2710, 0.01
  %v2743 = vmul.f32 %v2711, 0.01
  %v2744 = vmul.f32 %v2712, 0.01
  %v2745 = vmul.f32 %v2713, 0.01
  %v2746 = vmul.f32 %v2714, 0.01
  %v2747 = vmul.f32 %v2715, 0.01
  %v2748 = vmul.f32 %v2716, 0.01
  %v2749 = vmul.f32 %v2717, 0.01
  %v2750 = vsel %vm2718, %v2702, %v2734
  %v2751 = vsel %vm2719, %v2703, %v2735
  %v2752 = vsel %vm2720, %v2704, %v2736
  %v2753 = vsel %vm2721, %v2705, %v2737
  %v2754 = vsel %vm2722, %v2706, %v2738
  %v2755 = vsel %vm2723, %v2707, %v2739
  %v2756 = vsel %vm2724, %v2708, %v2740
  %v2757 = vsel %vm2725, %v2709, %v2741
  %v2758 = vsel %vm2726, %v2710, %v2742
  %v2759 = vsel %vm2727, %v2711, %v2743
  %v2760 = vsel %vm2728, %v2712, %v2744
  %v2761 = vsel %vm2729, %v2713, %v2745
  %v2762 = vsel %vm2730, %v2714, %v2746
  %v2763 = vsel %vm2731, %v2715, %v2747
  %v2764 = vsel %vm2732, %v2716, %v2748
  %v2765 = vsel %vm2733, %v2717, %v2749
  %v2766 = vmul.f32 %v2527, %v2678
  %v2767 = vmul.f32 %v2528, %v2678
  %v2768 = vmul.f32 %v2529, %v2678
  %v2769 = vmul.f32 %v2530, %v2678
  %v2770 = vmul.f32 %v2531, %v2678
  %v2771 = vmul.f32 %v2532, %v2678
  %v2772 = vmul.f32 %v2533, %v2678
  %v2773 = vmul.f32 %v2534, %v2678
  %v2774 = vmul.f32 %v2535, %v2678
  %v2775 = vmul.f32 %v2536, %v2678
  %v2776 = vmul.f32 %v2537, %v2678
  %v2777 = vmul.f32 %v2538, %v2678
  %v2778 = vmul.f32 %v2539, %v2678
  %v2779 = vmul.f32 %v2540, %v2678
  %v2780 = vmul.f32 %v2541, %v2678
  %v2781 = vmul.f32 %v2542, %v2678
  %v2782 = vadd.f32 %v2766, %v2700
  %v2783 = vadd.f32 %v2767, %v2700
  %v2784 = vadd.f32 %v2768, %v2700
  %v2785 = vadd.f32 %v2769, %v2700
  %v2786 = vadd.f32 %v2770, %v2700
  %v2787 = vadd.f32 %v2771, %v2700
  %v2788 = vadd.f32 %v2772, %v2700
  %v2789 = vadd.f32 %v2773, %v2700
  %v2790 = vadd.f32 %v2774, %v2700
  %v2791 = vadd.f32 %v2775, %v2700
  %v2792 = vadd.f32 %v2776, %v2700
  %v2793 = vadd.f32 %v2777, %v2700
  %v2794 = vadd.f32 %v2778, %v2700
  %v2795 = vadd.f32 %v2779, %v2700
  %v2796 = vadd.f32 %v2780, %v2700
  %v2797 = vadd.f32 %v2781, %v2700
  %vm2798 = vcmp.ge.f32.partialorder %v2782, 0.0
  %vm2799 = vcmp.ge.f32.partialorder %v2783, 0.0
  %vm2800 = vcmp.ge.f32.partialorder %v2784, 0.0
  %vm2801 = vcmp.ge.f32.partialorder %v2785, 0.0
  %vm2802 = vcmp.ge.f32.partialorder %v2786, 0.0
  %vm2803 = vcmp.ge.f32.partialorder %v2787, 0.0
  %vm2804 = vcmp.ge.f32.partialorder %v2788, 0.0
  %vm2805 = vcmp.ge.f32.partialorder %v2789, 0.0
  %vm2806 = vcmp.ge.f32.partialorder %v2790, 0.0
  %vm2807 = vcmp.ge.f32.partialorder %v2791, 0.0
  %vm2808 = vcmp.ge.f32.partialorder %v2792, 0.0
  %vm2809 = vcmp.ge.f32.partialorder %v2793, 0.0
  %vm2810 = vcmp.ge.f32.partialorder %v2794, 0.0
  %vm2811 = vcmp.ge.f32.partialorder %v2795, 0.0
  %vm2812 = vcmp.ge.f32.partialorder %v2796, 0.0
  %vm2813 = vcmp.ge.f32.partialorder %v2797, 0.0
  %v2814 = vmul.f32 %v2782, 0.01
  %v2815 = vmul.f32 %v2783, 0.01
  %v2816 = vmul.f32 %v2784, 0.01
  %v2817 = vmul.f32 %v2785, 0.01
  %v2818 = vmul.f32 %v2786, 0.01
  %v2819 = vmul.f32 %v2787, 0.01
  %v2820 = vmul.f32 %v2788, 0.01
  %v2821 = vmul.f32 %v2789, 0.01
  %v2822 = vmul.f32 %v2790, 0.01
  %v2823 = vmul.f32 %v2791, 0.01
  %v2824 = vmul.f32 %v2792, 0.01
  %v2825 = vmul.f32 %v2793, 0.01
  %v2826 = vmul.f32 %v2794, 0.01
  %v2827 = vmul.f32 %v2795, 0.01
  %v2828 = vmul.f32 %v2796, 0.01
  %v2829 = vmul.f32 %v2797, 0.01
  %v2830 = vsel %vm2798, %v2782, %v2814
  %v2831 = vsel %vm2799, %v2783, %v2815
  %v2832 = vsel %vm2800, %v2784, %v2816
  %v2833 = vsel %vm2801, %v2785, %v2817
  %v2834 = vsel %vm2802, %v2786, %v2818
  %v2835 = vsel %vm2803, %v2787, %v2819
  %v2836 = vsel %vm2804, %v2788, %v2820
  %v2837 = vsel %vm2805, %v2789, %v2821
  %v2838 = vsel %vm2806, %v2790, %v2822
  %v2839 = vsel %vm2807, %v2791, %v2823
  %v2840 = vsel %vm2808, %v2792, %v2824
  %v2841 = vsel %vm2809, %v2793, %v2825
  %v2842 = vsel %vm2810, %v2794, %v2826
  %v2843 = vsel %vm2811, %v2795, %v2827
  %v2844 = vsel %vm2812, %v2796, %v2828
  %v2845 = vsel %vm2813, %v2797, %v2829
  %v2846 = vld [vmem:[%s0] sm:$0xff]
  %v2847 = vld [vmem:[%s0 + $0x8] sm:$0xff]
  %v2848 = vld [vmem:[%s0 + $0x10] sm:$0xff]
  %v2849 = vld [vmem:[%s0 + $0x18] sm:$0xff]
  %v2850 = vld [vmem:[%s0 + $0x20] sm:$0xff]
  %v2851 = vld [vmem:[%s0 + $0x28] sm:$0xff]
  %v2852 = vld [vmem:[%s0 + $0x30] sm:$0xff]
  %v2853 = vld [vmem:[%s0 + $0x38] sm:$0xff]
  %v2854 = vld [vmem:[%s0 + $0x40] sm:$0xff]
  %v2855 = vld [vmem:[%s0 + $0x48] sm:$0xff]
  %v2856 = vld [vmem:[%s0 + $0x50] sm:$0xff]
  %v2857 = vld [vmem:[%s0 + $0x58] sm:$0xff]
  %v2858 = vld [vmem:[%s0 + $0x60] sm:$0xff]
  %v2859 = vld [vmem:[%s0 + $0x68] sm:$0xff]
  %v2860 = vld [vmem:[%s0 + $0x70] sm:$0xff]
  %v2861 = vld [vmem:[%s0 + $0x78] sm:$0xff]
  %v2862 = vpack.c.bf16 %v2847, %v2846
  %v2863 = vpack.c.bf16 %v2849, %v2848
  %v2864 = vpack.c.bf16 %v2851, %v2850
  %v2865 = vpack.c.bf16 %v2853, %v2852
  %v2866 = vpack.c.bf16 %v2855, %v2854
  %v2867 = vpack.c.bf16 %v2857, %v2856
  %v2868 = vpack.c.bf16 %v2859, %v2858
  %v2869 = vpack.c.bf16 %v2861, %v2860
  %v2870 = vld [vmem:[%s9] sm:$0xf]
  %v2871 = vld [vmem:[%s9 + $0x4] sm:$0xf]
  %v2872 = vld [vmem:[%s9 + $0x8] sm:$0xf]
  %v2873 = vld [vmem:[%s9 + $0xc] sm:$0xf]
  %v2874 = vld [vmem:[%s9 + $0x10] sm:$0xf]
  %v2875 = vld [vmem:[%s9 + $0x14] sm:$0xf]
  %v2876 = vld [vmem:[%s9 + $0x18] sm:$0xf]
  %v2877 = vld [vmem:[%s9 + $0x1c] sm:$0xf]
  %v2878 = vld [vmem:[%s10] sm:$0x1]
  %v2880 = vlaneseq
  %v2881 = vshrl.u32 %v2880, 7
  %v2882 = vsub.s32 0, %v2881
  %v2883 = vrot.slane %v2878, %v2882
  %v2893 = vunpack.c.l.b16 %v2870
  %v2894 = vunpack.c.l.b16 %v2871
  %v2895 = vunpack.c.l.b16 %v2872
  %v2896 = vunpack.c.l.b16 %v2873
  %v2897 = vunpack.c.l.b16 %v2874
  %v2898 = vunpack.c.l.b16 %v2875
  %v2899 = vunpack.c.l.b16 %v2876
  %v2900 = vunpack.c.l.b16 %v2877
  %v2901 = vpack.c.b16 %v2894, %v2893
  %v2902 = vpack.c.b16 %v2896, %v2895
  %v2903 = vpack.c.b16 %v2898, %v2897
  %v2904 = vpack.c.b16 %v2900, %v2899
  %v2910 = vsel %vm39, %v2862, 0
  %v2913 = vsel %vm39, %v2863, 0
  %v2916 = vsel %vm39, %v2864, 0
  %v2919 = vsel %vm39, %v2865, 0
  %v2922 = vsel %vm39, %v2866, 0
  %v2925 = vsel %vm39, %v2867, 0
  %v2928 = vsel %vm39, %v2868, 0
  %v2931 = vsel %vm39, %v2869, 0
  %2933 = vmatprep.subr.bf16.mxu0 0
  %2934 = vmatpush1.bf16.msra.mxu0 %v2901
  %2935 = vmatprep.subr.bf16.mxu0 0
  %2936 = vmatpush1.bf16.msra.mxu0 %v2902
  %2937 = vmatprep.subr.bf16.mxu0 0
  %2938 = vmatpush1.bf16.msra.mxu0 %v2903
  %2939 = vmatprep.subr.bf16.mxu0 0
  %2940 = vmatpush1.bf16.msra.mxu0 %v2904
  %2941 = vmatprep.subr.bf16.mxu0 0
  %2942 = vmatpush1.bf16.msra.mxu0 0
  %2943 = vmatprep.subr.bf16.mxu0 0
  %2944 = vmatpush1.bf16.msra.mxu0 0
  %2945 = vmatprep.subr.bf16.mxu0 0
  %2946 = vmatpush1.bf16.msra.mxu0 0
  %2947 = vmatprep.subr.bf16.mxu0 0
  %2948 = vmatpush1.bf16.msra.mxu0 0
  %2949 = vmatprep.subr.bf16.mxu0 0
  %2950 = vmatpush1.bf16.msra.mxu0 0
  %2951 = vmatprep.subr.bf16.mxu0 0
  %2952 = vmatpush1.bf16.msra.mxu0 0
  %2953 = vmatprep.subr.bf16.mxu0 0
  %2954 = vmatpush1.bf16.msra.mxu0 0
  %2955 = vmatprep.subr.bf16.mxu0 0
  %2956 = vmatpush1.bf16.msra.mxu0 0
  %2957 = vmatprep.subr.bf16.mxu0 0
  %2958 = vmatpush1.bf16.msra.mxu0 0
  %2959 = vmatprep.subr.bf16.mxu0 0
  %2960 = vmatpush1.bf16.msra.mxu0 0
  %2961 = vmatprep.subr.bf16.mxu0 0
  %2962 = vmatpush1.bf16.msra.mxu0 0
  %2963 = vmatprep.subr.bf16.mxu0 0
  %2964 = vmatpush1.bf16.msra.mxu0 0
  %2965 = vmatprep.mubr.bf16.mxu0 0
  %2966 = vmatmul.mubr.bf16.gmra.mrb[0].mxu0 %v2910
  %v2967 = vpop.f32.mrb[0].mxu0
  %v2968 = vadd.f32 %v2883, %v2967
  %v2969 = vpop.f32.mrb[0].mxu0
  %v2970 = vpop.f32.mrb[0].mxu0
  %v2971 = vadd.f32 %v2883, %v2970
  %v2972 = vpop.f32.mrb[0].mxu0
  %2973 = vmatprep.mubr.bf16.mxu0 0
  %2974 = vmatmul.mubr.bf16.gmra.mrb[0].mxu0 %v2913
  %v2975 = vpop.f32.mrb[0].mxu0
  %v2976 = vadd.f32 %v2883, %v2975
  %v2977 = vpop.f32.mrb[0].mxu0
  %v2978 = vpop.f32.mrb[0].mxu0
  %v2979 = vadd.f32 %v2883, %v2978
  %v2980 = vpop.f32.mrb[0].mxu0
  %2981 = vmatprep.mubr.bf16.mxu0 0
  %2982 = vmatmul.mubr.bf16.gmra.mrb[0].mxu0 %v2916
  %v2983 = vpop.f32.mrb[0].mxu0
  %v2984 = vadd.f32 %v2883, %v2983
  %v2985 = vpop.f32.mrb[0].mxu0
  %v2986 = vpop.f32.mrb[0].mxu0
  %v2987 = vadd.f32 %v2883, %v2986
  %v2988 = vpop.f32.mrb[0].mxu0
  %2989 = vmatprep.mubr.bf16.mxu0 0
  %2990 = vmatmul.mubr.bf16.gmra.mrb[0].mxu0 %v2919
  %v2991 = vpop.f32.mrb[0].mxu0
  %v2992 = vadd.f32 %v2883, %v2991
  %v2993 = vpop.f32.mrb[0].mxu0
  %v2994 = vpop.f32.mrb[0].mxu0
  %v2995 = vadd.f32 %v2883, %v2994
  %v2996 = vpop.f32.mrb[0].mxu0
  %2997 = vmatprep.mubr.bf16.mxu0 0
  %2998 = vmatmul.mubr.bf16.gmra.mrb[0].mxu0 %v2922
  %v2999 = vpop.f32.mrb[0].mxu0
  %v3000 = vadd.f32 %v2883, %v2999
  %v3001 = vpop.f32.mrb[0].mxu0
  %v3002 = vpop.f32.mrb[0].mxu0
  %v3003 = vadd.f32 %v2883, %v3002
  %v3004 = vpop.f32.mrb[0].mxu0
  %3005 = vmatprep.mubr.bf16.mxu0 0
  %3006 = vmatmul.mubr.bf16.gmra.mrb[0].mxu0 %v2925
  %v3007 = vpop.f32.mrb[0].mxu0
  %v3008 = vadd.f32 %v2883, %v3007
  %v3009 = vpop.f32.mrb[0].mxu0
  %v3010 = vpop.f32.mrb[0].mxu0
  %v3011 = vadd.f32 %v2883, %v3010
  %v3012 = vpop.f32.mrb[0].mxu0
  %3013 = vmatprep.mubr.bf16.mxu0 0
  %3014 = vmatmul.mubr.bf16.gmra.mrb[0].mxu0 %v2928
  %v3015 = vpop.f32.mrb[0].mxu0
  %v3016 = vadd.f32 %v2883, %v3015
  %v3017 = vpop.f32.mrb[0].mxu0
  %v3018 = vpop.f32.mrb[0].mxu0
  %v3019 = vadd.f32 %v2883, %v3018
  %v3020 = vpop.f32.mrb[0].mxu0
  %3021 = vmatprep.mubr.bf16.mxu0 0
  %3022 = vmatmul.mubr.bf16.gmra.mrb[0].mxu0 %v2931
  %v3023 = vpop.f32.mrb[0].mxu0
  %v3024 = vadd.f32 %v2883, %v3023
  %v3025 = vpop.f32.mrb[0].mxu0
  %v3026 = vpop.f32.mrb[0].mxu0
  %v3027 = vadd.f32 %v2883, %v3026
  %v3028 = vpop.f32.mrb[0].mxu0
  %3029 = vdwg.mxu0
  %v3030 = vadd.f32 %v2750, %v2968
  %v3031 = vadd.f32 %v2751, %v2971
  %v3032 = vadd.f32 %v2752, %v2976
  %v3033 = vadd.f32 %v2753, %v2979
  %v3034 = vadd.f32 %v2754, %v2984
  %v3035 = vadd.f32 %v2755, %v2987
  %v3036 = vadd.f32 %v2756, %v2992
  %v3037 = vadd.f32 %v2757, %v2995
  %v3038 = vadd.f32 %v2758, %v3000
  %v3039 = vadd.f32 %v2759, %v3003
  %v3040 = vadd.f32 %v2760, %v3008
  %v3041 = vadd.f32 %v2761, %v3011
  %v3042 = vadd.f32 %v2762, %v3016
  %v3043 = vadd.f32 %v2763, %v3019
  %v3044 = vadd.f32 %v2764, %v3024
  %v3045 = vadd.f32 %v2765, %v3027
  %vm3046 = vcmp.ge.f32.partialorder %v3030, 0.0
  %vm3047 = vcmp.ge.f32.partialorder %v3031, 0.0
  %vm3048 = vcmp.ge.f32.partialorder %v3032, 0.0
  %vm3049 = vcmp.ge.f32.partialorder %v3033, 0.0
  %vm3050 = vcmp.ge.f32.partialorder %v3034, 0.0
  %vm3051 = vcmp.ge.f32.partialorder %v3035, 0.0
  %vm3052 = vcmp.ge.f32.partialorder %v3036, 0.0
  %vm3053 = vcmp.ge.f32.partialorder %v3037, 0.0
  %vm3054 = vcmp.ge.f32.partialorder %v3038, 0.0
  %vm3055 = vcmp.ge.f32.partialorder %v3039, 0.0
  %vm3056 = vcmp.ge.f32.partialorder %v3040, 0.0
  %vm3057 = vcmp.ge.f32.partialorder %v3041, 0.0
  %vm3058 = vcmp.ge.f32.partialorder %v3042, 0.0
  %vm3059 = vcmp.ge.f32.partialorder %v3043, 0.0
  %vm3060 = vcmp.ge.f32.partialorder %v3044, 0.0
  %vm3061 = vcmp.ge.f32.partialorder %v3045, 0.0
  %v3062 = vmul.f32 %v3030, 0.01
  %v3063 = vmul.f32 %v3031, 0.01
  %v3064 = vmul.f32 %v3032, 0.01
  %v3065 = vmul.f32 %v3033, 0.01
  %v3066 = vmul.f32 %v3034, 0.01
  %v3067 = vmul.f32 %v3035, 0.01
  %v3068 = vmul.f32 %v3036, 0.01
  %v3069 = vmul.f32 %v3037, 0.01
  %v3070 = vmul.f32 %v3038, 0.01
  %v3071 = vmul.f32 %v3039, 0.01
  %v3072 = vmul.f32 %v3040, 0.01
  %v3073 = vmul.f32 %v3041, 0.01
  %v3074 = vmul.f32 %v3042, 0.01
  %v3075 = vmul.f32 %v3043, 0.01
  %v3076 = vmul.f32 %v3044, 0.01
  %v3077 = vmul.f32 %v3045, 0.01
  %v3078 = vsel %vm3046, %v3030, %v3062
  %v3079 = vsel %vm3047, %v3031, %v3063
  %v3080 = vsel %vm3048, %v3032, %v3064
  %v3081 = vsel %vm3049, %v3033, %v3065
  %v3082 = vsel %vm3050, %v3034, %v3066
  %v3083 = vsel %vm3051, %v3035, %v3067
  %v3084 = vsel %vm3052, %v3036, %v3068
  %v3085 = vsel %vm3053, %v3037, %v3069
  %v3086 = vsel %vm3054, %v3038, %v3070
  %v3087 = vsel %vm3055, %v3039, %v3071
  %v3088 = vsel %vm3056, %v3040, %v3072
  %v3089 = vsel %vm3057, %v3041, %v3073
  %v3090 = vsel %vm3058, %v3042, %v3074
  %v3091 = vsel %vm3059, %v3043, %v3075
  %v3092 = vsel %vm3060, %v3044, %v3076
  %v3093 = vsel %vm3061, %v3045, %v3077
  %3094 = vst [vmem:[%s11] sm:$0xff] %v3078
  %3095 = vst [vmem:[%s11 + $0x8] sm:$0xff] %v3079
  %3096 = vst [vmem:[%s11 + $0x10] sm:$0xff] %v3080
  %3097 = vst [vmem:[%s11 + $0x18] sm:$0xff] %v3081
  %3098 = vst [vmem:[%s11 + $0x20] sm:$0xff] %v3082
  %3099 = vst [vmem:[%s11 + $0x28] sm:$0xff] %v3083
  %3100 = vst [vmem:[%s11 + $0x30] sm:$0xff] %v3084
  %3101 = vst [vmem:[%s11 + $0x38] sm:$0xff] %v3085
  %3102 = vst [vmem:[%s11 + $0x40] sm:$0xff] %v3086
  %3103 = vst [vmem:[%s11 + $0x48] sm:$0xff] %v3087
  %3104 = vst [vmem:[%s11 + $0x50] sm:$0xff] %v3088
  %3105 = vst [vmem:[%s11 + $0x58] sm:$0xff] %v3089
  %3106 = vst [vmem:[%s11 + $0x60] sm:$0xff] %v3090
  %3107 = vst [vmem:[%s11 + $0x68] sm:$0xff] %v3091
  %3108 = vst [vmem:[%s11 + $0x70] sm:$0xff] %v3092
  %3109 = vst [vmem:[%s11 + $0x78] sm:$0xff] %v3093
  %s3110 = scalar_lea.vmem %s0, 128
  %v3111 = vld [vmem:[%s3110] sm:$0xff]
  %v3112 = vld [vmem:[%s3110 + $0x8] sm:$0xff]
  %v3113 = vld [vmem:[%s3110 + $0x10] sm:$0xff]
  %v3114 = vld [vmem:[%s3110 + $0x18] sm:$0xff]
  %v3115 = vld [vmem:[%s3110 + $0x20] sm:$0xff]
  %v3116 = vld [vmem:[%s3110 + $0x28] sm:$0xff]
  %v3117 = vld [vmem:[%s3110 + $0x30] sm:$0xff]
  %v3118 = vld [vmem:[%s3110 + $0x38] sm:$0xff]
  %v3119 = vld [vmem:[%s3110 + $0x40] sm:$0xff]
  %v3120 = vld [vmem:[%s3110 + $0x48] sm:$0xff]
  %v3121 = vld [vmem:[%s3110 + $0x50] sm:$0xff]
  %v3122 = vld [vmem:[%s3110 + $0x58] sm:$0xff]
  %v3123 = vld [vmem:[%s3110 + $0x60] sm:$0xff]
  %v3124 = vld [vmem:[%s3110 + $0x68] sm:$0xff]
  %v3125 = vld [vmem:[%s3110 + $0x70] sm:$0xff]
  %v3126 = vld [vmem:[%s3110 + $0x78] sm:$0xff]
  %v3127 = vpack.c.bf16 %v3112, %v3111
  %v3128 = vpack.c.bf16 %v3114, %v3113
  %v3129 = vpack.c.bf16 %v3116, %v3115
  %v3130 = vpack.c.bf16 %v3118, %v3117
  %v3131 = vpack.c.bf16 %v3120, %v3119
  %v3132 = vpack.c.bf16 %v3122, %v3121
  %v3133 = vpack.c.bf16 %v3124, %v3123
  %v3134 = vpack.c.bf16 %v3126, %v3125
  %v3135 = vld [vmem:[%s9] sm:$0xf]
  %v3136 = vld [vmem:[%s9 + $0x4] sm:$0xf]
  %v3137 = vld [vmem:[%s9 + $0x8] sm:$0xf]
  %v3138 = vld [vmem:[%s9 + $0xc] sm:$0xf]
  %v3139 = vld [vmem:[%s9 + $0x10] sm:$0xf]
  %v3140 = vld [vmem:[%s9 + $0x14] sm:$0xf]
  %v3141 = vld [vmem:[%s9 + $0x18] sm:$0xf]
  %v3142 = vld [vmem:[%s9 + $0x1c] sm:$0xf]
  %v3143 = vld [vmem:[%s10] sm:$0x1]
  %v3145 = vlaneseq
  %v3146 = vshrl.u32 %v3145, 7
  %v3147 = vsub.s32 0, %v3146
  %v3148 = vrot.slane %v3143, %v3147
  %v3158 = vunpack.c.l.b16 %v3135
  %v3159 = vunpack.c.l.b16 %v3136
  %v3160 = vunpack.c.l.b16 %v3137
  %v3161 = vunpack.c.l.b16 %v3138
  %v3162 = vunpack.c.l.b16 %v3139
  %v3163 = vunpack.c.l.b16 %v3140
  %v3164 = vunpack.c.l.b16 %v3141
  %v3165 = vunpack.c.l.b16 %v3142
  %v3166 = vpack.c.b16 %v3159, %v3158
  %v3167 = vpack.c.b16 %v3161, %v3160
  %v3168 = vpack.c.b16 %v3163, %v3162
  %v3169 = vpack.c.b16 %v3165, %v3164
  %v3175 = vsel %vm39, %v3127, 0
  %v3178 = vsel %vm39, %v3128, 0
  %v3181 = vsel %vm39, %v3129, 0
  %v3184 = vsel %vm39, %v3130, 0
  %v3187 = vsel %vm39, %v3131, 0
  %v3190 = vsel %vm39, %v3132, 0
  %v3193 = vsel %vm39, %v3133, 0
  %v3196 = vsel %vm39, %v3134, 0
  %3198 = vmatprep.subr.bf16.mxu0 0
  %3199 = vmatpush1.bf16.msra.mxu0 %v3166
  %3200 = vmatprep.subr.bf16.mxu0 0
  %3201 = vmatpush1.bf16.msra.mxu0 %v3167
  %3202 = vmatprep.subr.bf16.mxu0 0
  %3203 = vmatpush1.bf16.msra.mxu0 %v3168
  %3204 = vmatprep.subr.bf16.mxu0 0
  %3205 = vmatpush1.bf16.msra.mxu0 %v3169
  %3206 = vmatprep.subr.bf16.mxu0 0
  %3207 = vmatpush1.bf16.msra.mxu0 0
  %3208 = vmatprep.subr.bf16.mxu0 0
  %3209 = vmatpush1.bf16.msra.mxu0 0
  %3210 = vmatprep.subr.bf16.mxu0 0
  %3211 = vmatpush1.bf16.msra.mxu0 0
  %3212 = vmatprep.subr.bf16.mxu0 0
  %3213 = vmatpush1.bf16.msra.mxu0 0
  %3214 = vmatprep.subr.bf16.mxu0 0
  %3215 = vmatpush1.bf16.msra.mxu0 0
  %3216 = vmatprep.subr.bf16.mxu0 0
  %3217 = vmatpush1.bf16.msra.mxu0 0
  %3218 = vmatprep.subr.bf16.mxu0 0
  %3219 = vmatpush1.bf16.msra.mxu0 0
  %3220 = vmatprep.subr.bf16.mxu0 0
  %3221 = vmatpush1.bf16.msra.mxu0 0
  %3222 = vmatprep.subr.bf16.mxu0 0
  %3223 = vmatpush1.bf16.msra.mxu0 0
  %3224 = vmatprep.subr.bf16.mxu0 0
  %3225 = vmatpush1.bf16.msra.mxu0 0
  %3226 = vmatprep.subr.bf16.mxu0 0
  %3227 = vmatpush1.bf16.msra.mxu0 0
  %3228 = vmatprep.subr.bf16.mxu0 0
  %3229 = vmatpush1.bf16.msra.mxu0 0
  %3230 = vmatprep.mubr.bf16.mxu0 0
  %3231 = vmatmul.mubr.bf16.gmra.mrb[0].mxu0 %v3175
  %v3232 = vpop.f32.mrb[0].mxu0
  %v3233 = vadd.f32 %v3148, %v3232
  %v3234 = vpop.f32.mrb[0].mxu0
  %v3235 = vpop.f32.mrb[0].mxu0
  %v3236 = vadd.f32 %v3148, %v3235
  %v3237 = vpop.f32.mrb[0].mxu0
  %3238 = vmatprep.mubr.bf16.mxu0 0
  %3239 = vmatmul.mubr.bf16.gmra.mrb[0].mxu0 %v3178
  %v3240 = vpop.f32.mrb[0].mxu0
  %v3241 = vadd.f32 %v3148, %v3240
  %v3242 = vpop.f32.mrb[0].mxu0
  %v3243 = vpop.f32.mrb[0].mxu0
  %v3244 = vadd.f32 %v3148, %v3243
  %v3245 = vpop.f32.mrb[0].mxu0
  %3246 = vmatprep.mubr.bf16.mxu0 0
  %3247 = vmatmul.mubr.bf16.gmra.mrb[0].mxu0 %v3181
  %v3248 = vpop.f32.mrb[0].mxu0
  %v3249 = vadd.f32 %v3148, %v3248
  %v3250 = vpop.f32.mrb[0].mxu0
  %v3251 = vpop.f32.mrb[0].mxu0
  %v3252 = vadd.f32 %v3148, %v3251
  %v3253 = vpop.f32.mrb[0].mxu0
  %3254 = vmatprep.mubr.bf16.mxu0 0
  %3255 = vmatmul.mubr.bf16.gmra.mrb[0].mxu0 %v3184
  %v3256 = vpop.f32.mrb[0].mxu0
  %v3257 = vadd.f32 %v3148, %v3256
  %v3258 = vpop.f32.mrb[0].mxu0
  %v3259 = vpop.f32.mrb[0].mxu0
  %v3260 = vadd.f32 %v3148, %v3259
  %v3261 = vpop.f32.mrb[0].mxu0
  %3262 = vmatprep.mubr.bf16.mxu0 0
  %3263 = vmatmul.mubr.bf16.gmra.mrb[0].mxu0 %v3187
  %v3264 = vpop.f32.mrb[0].mxu0
  %v3265 = vadd.f32 %v3148, %v3264
  %v3266 = vpop.f32.mrb[0].mxu0
  %v3267 = vpop.f32.mrb[0].mxu0
  %v3268 = vadd.f32 %v3148, %v3267
  %v3269 = vpop.f32.mrb[0].mxu0
  %3270 = vmatprep.mubr.bf16.mxu0 0
  %3271 = vmatmul.mubr.bf16.gmra.mrb[0].mxu0 %v3190
  %v3272 = vpop.f32.mrb[0].mxu0
  %v3273 = vadd.f32 %v3148, %v3272
  %v3274 = vpop.f32.mrb[0].mxu0
  %v3275 = vpop.f32.mrb[0].mxu0
  %v3276 = vadd.f32 %v3148, %v3275
  %v3277 = vpop.f32.mrb[0].mxu0
  %3278 = vmatprep.mubr.bf16.mxu0 0
  %3279 = vmatmul.mubr.bf16.gmra.mrb[0].mxu0 %v3193
  %v3280 = vpop.f32.mrb[0].mxu0
  %v3281 = vadd.f32 %v3148, %v3280
  %v3282 = vpop.f32.mrb[0].mxu0
  %v3283 = vpop.f32.mrb[0].mxu0
  %v3284 = vadd.f32 %v3148, %v3283
  %v3285 = vpop.f32.mrb[0].mxu0
  %3286 = vmatprep.mubr.bf16.mxu0 0
  %3287 = vmatmul.mubr.bf16.gmra.mrb[0].mxu0 %v3196
  %v3288 = vpop.f32.mrb[0].mxu0
  %v3289 = vadd.f32 %v3148, %v3288
  %v3290 = vpop.f32.mrb[0].mxu0
  %v3291 = vpop.f32.mrb[0].mxu0
  %v3292 = vadd.f32 %v3148, %v3291
  %v3293 = vpop.f32.mrb[0].mxu0
  %3294 = vdwg.mxu0
  %v3295 = vadd.f32 %v2830, %v3233
  %v3296 = vadd.f32 %v2831, %v3236
  %v3297 = vadd.f32 %v2832, %v3241
  %v3298 = vadd.f32 %v2833, %v3244
  %v3299 = vadd.f32 %v2834, %v3249
  %v3300 = vadd.f32 %v2835, %v3252
  %v3301 = vadd.f32 %v2836, %v3257
  %v3302 = vadd.f32 %v2837, %v3260
  %v3303 = vadd.f32 %v2838, %v3265
  %v3304 = vadd.f32 %v2839, %v3268
  %v3305 = vadd.f32 %v2840, %v3273
  %v3306 = vadd.f32 %v2841, %v3276
  %v3307 = vadd.f32 %v2842, %v3281
  %v3308 = vadd.f32 %v2843, %v3284
  %v3309 = vadd.f32 %v2844, %v3289
  %v3310 = vadd.f32 %v2845, %v3292
  %vm3311 = vcmp.ge.f32.partialorder %v3295, 0.0
  %vm3312 = vcmp.ge.f32.partialorder %v3296, 0.0
  %vm3313 = vcmp.ge.f32.partialorder %v3297, 0.0
  %vm3314 = vcmp.ge.f32.partialorder %v3298, 0.0
  %vm3315 = vcmp.ge.f32.partialorder %v3299, 0.0
  %vm3316 = vcmp.ge.f32.partialorder %v3300, 0.0
  %vm3317 = vcmp.ge.f32.partialorder %v3301, 0.0
  %vm3318 = vcmp.ge.f32.partialorder %v3302, 0.0
  %vm3319 = vcmp.ge.f32.partialorder %v3303, 0.0
  %vm3320 = vcmp.ge.f32.partialorder %v3304, 0.0
  %vm3321 = vcmp.ge.f32.partialorder %v3305, 0.0
  %vm3322 = vcmp.ge.f32.partialorder %v3306, 0.0
  %vm3323 = vcmp.ge.f32.partialorder %v3307, 0.0
  %vm3324 = vcmp.ge.f32.partialorder %v3308, 0.0
  %vm3325 = vcmp.ge.f32.partialorder %v3309, 0.0
  %vm3326 = vcmp.ge.f32.partialorder %v3310, 0.0
  %v3327 = vmul.f32 %v3295, 0.01
  %v3328 = vmul.f32 %v3296, 0.01
  %v3329 = vmul.f32 %v3297, 0.01
  %v3330 = vmul.f32 %v3298, 0.01
  %v3331 = vmul.f32 %v3299, 0.01
  %v3332 = vmul.f32 %v3300, 0.01
  %v3333 = vmul.f32 %v3301, 0.01
  %v3334 = vmul.f32 %v3302, 0.01
  %v3335 = vmul.f32 %v3303, 0.01
  %v3336 = vmul.f32 %v3304, 0.01
  %v3337 = vmul.f32 %v3305, 0.01
  %v3338 = vmul.f32 %v3306, 0.01
  %v3339 = vmul.f32 %v3307, 0.01
  %v3340 = vmul.f32 %v3308, 0.01
  %v3341 = vmul.f32 %v3309, 0.01
  %v3342 = vmul.f32 %v3310, 0.01
  %v3343 = vsel %vm3311, %v3295, %v3327
  %v3344 = vsel %vm3312, %v3296, %v3328
  %v3345 = vsel %vm3313, %v3297, %v3329
  %v3346 = vsel %vm3314, %v3298, %v3330
  %v3347 = vsel %vm3315, %v3299, %v3331
  %v3348 = vsel %vm3316, %v3300, %v3332
  %v3349 = vsel %vm3317, %v3301, %v3333
  %v3350 = vsel %vm3318, %v3302, %v3334
  %v3351 = vsel %vm3319, %v3303, %v3335
  %v3352 = vsel %vm3320, %v3304, %v3336
  %v3353 = vsel %vm3321, %v3305, %v3337
  %v3354 = vsel %vm3322, %v3306, %v3338
  %v3355 = vsel %vm3323, %v3307, %v3339
  %v3356 = vsel %vm3324, %v3308, %v3340
  %v3357 = vsel %vm3325, %v3309, %v3341
  %v3358 = vsel %vm3326, %v3310, %v3342
  %s3359 = scalar_lea.vmem %s11, 128
  %3360 = vst [vmem:[%s3359] sm:$0xff] %v3343
  %3361 = vst [vmem:[%s3359 + $0x8] sm:$0xff] %v3344
  %3362 = vst [vmem:[%s3359 + $0x10] sm:$0xff] %v3345
  %3363 = vst [vmem:[%s3359 + $0x18] sm:$0xff] %v3346
  %3364 = vst [vmem:[%s3359 + $0x20] sm:$0xff] %v3347
  %3365 = vst [vmem:[%s3359 + $0x28] sm:$0xff] %v3348
  %3366 = vst [vmem:[%s3359 + $0x30] sm:$0xff] %v3349
  %3367 = vst [vmem:[%s3359 + $0x38] sm:$0xff] %v3350
  %3368 = vst [vmem:[%s3359 + $0x40] sm:$0xff] %v3351
  %3369 = vst [vmem:[%s3359 + $0x48] sm:$0xff] %v3352
  %3370 = vst [vmem:[%s3359 + $0x50] sm:$0xff] %v3353
  %3371 = vst [vmem:[%s3359 + $0x58] sm:$0xff] %v3354
  %3372 = vst [vmem:[%s3359 + $0x60] sm:$0xff] %v3355
  %3373 = vst [vmem:[%s3359 + $0x68] sm:$0xff] %v3356
  %3374 = vst [vmem:[%s3359 + $0x70] sm:$0xff] %v3357
  %3375 = vst [vmem:[%s3359 + $0x78] sm:$0xff] %v3358
  // Predicated region
  $region46: #{residual_block_forward.1} parent=0 // pred_check
    _
  $region47: #{residual_block_forward.1} parent=0 // pred_check_branch
    %3377 = sbr.rel (0) target = $region49
  $region48: #{residual_block_forward.1} parent=0 // pred_region
    _
  $region49: #{residual_block_forward.1} parent=0 // pred_fallthru
    _
  // Predicated region
  $region50: #{residual_block_forward.1} parent=0 // pred_check
    _
  $region51: #{residual_block_forward.1} parent=0 // pred_check_branch
    %3379 = sbr.rel (0) target = $region53
  $region52: #{residual_block_forward.1} parent=0 // pred_region
    _
  $region53: #{residual_block_forward.1} parent=0 // pred_fallthru
    _

</llo_original>
